<compile_context>
chip_gen: v7x
topology: tpu7x:2x2x1
jax: 0.10.0
libtpu: 0.0.40
codegen_flags: <defaults>
</compile_context>

<pallas_src>
import functools
import math

import numpy as np
import jax
import jax.numpy as jnp
from jax import lax
from jax.experimental import pallas as pl
from jax.experimental.pallas import tpu as pltpu

EPS = 1e-5
CP = 128   # lane-padded channel width used by every kernel operand


def _pack_geometry(growth):
    """Lane-packing geometry for the 3x3 conv im2col matmul."""
    inter = 4 * growth
    assert inter <= CP, "4*growthRate must fit inside one 128-lane group"
    tpg = max(1, min(9, CP // inter))        # taps packed per 128-lane group
    n_groups = (9 + tpg - 1) // tpg          # K of packed 3x3 matmul = n_groups*128
    return inter, tpg, n_groups


# ---------------------------------------------------------------------------
# Kernel 1: plain matmul (stride-2 stem conv on im2col patches), bf16 operands
# ---------------------------------------------------------------------------
def _matmul_kernel(x_ref, w_ref, o_ref):
    o_ref[...] = jnp.dot(x_ref[...], w_ref[...], preferred_element_type=jnp.float32)


def matmul(x, w):
    rows, k = x.shape
    cout = w.shape[1]
    flops = 2 * rows * k * cout
    bytes_acc = rows * k * x.dtype.itemsize + k * cout * w.dtype.itemsize + rows * cout * 4
    return pl.pallas_call(
        _matmul_kernel,
        out_shape=jax.ShapeDtypeStruct((rows, cout), jnp.float32),
        grid=(1,),
        in_specs=[pl.BlockSpec((rows, k), lambda i: (0, 0)),
                  pl.BlockSpec((k, cout), lambda i: (0, 0))],
        out_specs=pl.BlockSpec((rows, cout), lambda i: (0, 0)),
        compiler_params=pltpu.CompilerParams(dimension_semantics=("arbitrary",)),
        cost_estimate=pl.CostEstimate(flops=int(flops), transcendentals=0,
                                      bytes_accessed=int(bytes_acc)),
    )(x, w)


# ---------------------------------------------------------------------------
# Kernel 2: a whole DenseBlock, one grid step per Bottleneck layer.
#   feat (rows, CP) is carried in a persistent VMEM scratch; per layer:
#   BN1(train)+ReLU -> 1x1 conv -> BN2(train)+ReLU -> lane-packed 3x3 conv.
#   "concat" == accumulate into the pre-zeroed growth columns (w2 packing).
# ---------------------------------------------------------------------------
def _dense_block_kernel(x_ref, g1_ref, b1_ref, w1_ref, g2_ref, b2_ref, w2_ref,
                        o_ref, feat_ref, pad_ref, *,
                        c0, rows, h_sp, w_sp, inter, tpg, n_groups):
    l = pl.program_id(0)
    last = pl.num_programs(0) - 1
    inv_n = 1.0 / rows

    @pl.when(l == 0)
    def _init():
        # Real input channels into the carry scratch, padded channels zero.
        ch = lax.broadcasted_iota(jnp.int32, (1, CP), 1)
        feat_ref[...] = jnp.where(ch < c0, x_ref[...], 0.0)
        # Zero the halo scratch ONCE; only the interior is rewritten per layer.
        pad_ref[...] = jnp.zeros(pad_ref.shape, pad_ref.dtype)

    feat = feat_ref[...]

    # ---- BN1 (single-pass batch stats) folded into scale/shift + ReLU ----
    s1 = jnp.sum(feat, axis=0, keepdims=True) * inv_n
    q1 = jnp.sum(feat * feat, axis=0, keepdims=True) * inv_n
    v1 = jnp.maximum(q1 - s1 * s1, 0.0)
    sc1 = g1_ref[0] * lax.rsqrt(v1 + EPS)
    a1 = jnp.maximum(feat * sc1 + (b1_ref[0] - s1 * sc1), 0.0)

    # ---- 1x1 conv (MXU, bf16 operands, f32 accumulation).  w1 carries the
    # inter channels replicated into every lane slot used by the 3x3 packing.
    h = jnp.dot(a1.astype(jnp.bfloat16), w1_ref[0],
                preferred_element_type=jnp.float32)                 # (rows, CP)

    # ---- BN2 (single-pass batch stats) + ReLU (g2/b2 are slot-replicated) ----
    s2 = jnp.sum(h, axis=0, keepdims=True) * inv_n
    q2 = jnp.sum(h * h, axis=0, keepdims=True) * inv_n
    v2 = jnp.maximum(q2 - s2 * s2, 0.0)
    sc2 = g2_ref[0] * lax.rsqrt(v2 + EPS)
    a2 = jnp.maximum(h * sc2 + (b2_ref[0] - s2 * sc2), 0.0)

    # ---- write the interior of the zero-halo scratch (borders stay zero) ----
    pad_ref[w_sp + 1:w_sp + 1 + rows, :] = a2

    # ---- spatial validity masks, generated in-kernel (no DMA'd mask tensor) --
    r = lax.broadcasted_iota(jnp.int32, (rows, 1), 0)
    hw = h_sp * w_sp
    if (w_sp & (w_sp - 1)) == 0 and (hw & (hw - 1)) == 0:
        jj = r & (w_sp - 1)                              # pow2: pure bit ops
        ii = (r & (hw - 1)) >> int(round(math.log2(w_sp)))
    else:
        jj = r % w_sp
        ii = (r % hw) // w_sp
    row_m = [(ii >= 1).astype(jnp.float32), None, (ii < h_sp - 1).astype(jnp.float32)]
    col_m = [(jj >= 1).astype(jnp.float32), None, (jj < w_sp - 1).astype(jnp.float32)]
    lane = lax.broadcasted_iota(jnp.int32, (1, CP), 1)

    # ---- lane-packed 3x3 conv: K = n_groups * 128 instead of 9 * 128 ----
    groups = []
    for g in range(n_groups):
        acc = None
        for slot in range(tpg):
            t = g * tpg + slot
            if t >= 9:
                break
            di3, dj3 = t // 3, t % 3                     # tap offsets + 1
            start = di3 * w_sp + dj3
            tap = pad_ref[start:start + rows, :]
            # pick the slot's lane copy out of the replicated a2
            sel = ((lane >= slot * inter) & (lane < (slot + 1) * inter)
                   ).astype(jnp.float32)
            sp = row_m[di3]
            if col_m[dj3] is not None:
                sp = col_m[dj3] if sp is None else sp * col_m[dj3]
            m = sel if sp is None else sp * sel
            tap = tap * m
            acc = tap if acc is None else acc + tap
        groups.append(acc.astype(jnp.bfloat16))
    patch = jnp.concatenate(groups, axis=-1)             # (rows, n_groups*CP) bf16
    new = jnp.dot(patch, w2_ref[0], preferred_element_type=jnp.float32)

    # ---- channel concat == accumulate into the pre-zeroed growth columns ----
    new_feat = feat + new
    feat_ref[...] = new_feat

    @pl.when(l == last)
    def _store():
        o_ref[...] = new_feat          # single lane-dense store of the block


def dense_block(x2d, block_arrays, *, depth, c0, rows, h_sp, w_sp,
                inter, tpg, n_groups):
    g1, b1, w1, g2, b2, w2 = block_arrays
    k2 = n_groups * CP
    kern = functools.partial(_dense_block_kernel, c0=c0, rows=rows, h_sp=h_sp,
                             w_sp=w_sp, inter=inter, tpg=tpg, n_groups=n_groups)
    flops = depth * (2 * rows * CP * CP + 2 * rows * k2 * CP + 12 * rows * CP)
    bytes_acc = (2 * rows * CP * 4
                 + depth * (CP * CP * 2 + k2 * CP * 2 + 4 * CP * 4))
    return pl.pallas_call(
        kern,
        out_shape=jax.ShapeDtypeStruct((rows, CP), jnp.float32),
        grid=(depth,),
        in_specs=[
            pl.BlockSpec((rows, CP), lambda l: (0, 0)),        # block input (resident)
            pl.BlockSpec((1, 1, CP), lambda l: (l, 0, 0)),     # g1[l]
            pl.BlockSpec((1, 1, CP), lambda l: (l, 0, 0)),     # b1[l]
            pl.BlockSpec((1, CP, CP), lambda l: (l, 0, 0)),    # w1[l]  (bf16)
            pl.BlockSpec((1, 1, CP), lambda l: (l, 0, 0)),     # g2[l]
            pl.BlockSpec((1, 1, CP), lambda l: (l, 0, 0)),     # b2[l]
            pl.BlockSpec((1, k2, CP), lambda l: (l, 0, 0)),    # w2[l]  (bf16, packed)
        ],
        out_specs=pl.BlockSpec((rows, CP), lambda l: (0, 0)),
        scratch_shapes=[pltpu.VMEM((rows, CP), jnp.float32),                       # feat carry
                        pltpu.VMEM((rows + 2 * (w_sp + 1), CP), jnp.float32)],     # zero-halo
        compiler_params=pltpu.CompilerParams(
            dimension_semantics=("arbitrary",),
            vmem_limit_bytes=32 * 1024 * 1024),
        cost_estimate=pl.CostEstimate(flops=int(flops),
                                      transcendentals=int(depth * 2 * CP),
                                      bytes_accessed=int(bytes_acc)),
    )(x2d, g1, b1, w1, g2, b2, w2)


# ---------------------------------------------------------------------------
# Kernel 3: fused BN(train) -> ReLU -> 1x1 conv (TransitionLayer, pre-pool)
# ---------------------------------------------------------------------------
def _bn_relu_pw_kernel(x_ref, g_ref, b_ref, w_ref, o_ref):
    x = x_ref[...]
    inv_n = 1.0 / x_ref.shape[0]
    s = jnp.sum(x, axis=0, keepdims=True) * inv_n
    q = jnp.sum(x * x, axis=0, keepdims=True) * inv_n
    v = jnp.maximum(q - s * s, 0.0)
    sc = g_ref[...] * lax.rsqrt(v + EPS)
    a = jnp.maximum(x * sc + (b_ref[...] - s * sc), 0.0)
    o_ref[...] = jnp.dot(a.astype(jnp.bfloat16), w_ref[...],
                         preferred_element_type=jnp.float32)


def bn_relu_pointwise(x2d, gamma, beta, w):
    rows = x2d.shape[0]
    cout = w.shape[1]
    return pl.pallas_call(
        _bn_relu_pw_kernel,
        out_shape=jax.ShapeDtypeStruct((rows, cout), jnp.float32),
        grid=(1,),
        in_specs=[pl.BlockSpec((rows, CP), lambda i: (0, 0)),
                  pl.BlockSpec((1, CP), lambda i: (0, 0)),
                  pl.BlockSpec((1, CP), lambda i: (0, 0)),
                  pl.BlockSpec((CP, cout), lambda i: (0, 0))],
        out_specs=pl.BlockSpec((rows, cout), lambda i: (0, 0)),
        compiler_params=pltpu.CompilerParams(dimension_semantics=("arbitrary",)),
    )(x2d, gamma, beta, w)


# ---------------------------------------------------------------------------
# Kernel 4: BN(train) only (network-level BatchNorm after main_blocks)
# ---------------------------------------------------------------------------
def _bn_kernel(x_ref, g_ref, b_ref, o_ref):
    x = x_ref[...]
    inv_n = 1.0 / x_ref.shape[0]
    s = jnp.sum(x, axis=0, keepdims=True) * inv_n
    q = jnp.sum(x * x, axis=0, keepdims=True) * inv_n
    v = jnp.maximum(q - s * s, 0.0)
    sc = g_ref[...] * lax.rsqrt(v + EPS)
    o_ref[...] = x * sc + (b_ref[...] - s * sc)


def batch_norm(x2d, gamma, beta):
    rows, c = x2d.shape
    return pl.pallas_call(
        _bn_kernel,
        out_shape=jax.ShapeDtypeStruct((rows, c), jnp.float32),
        grid=(1,),
        in_specs=[pl.BlockSpec((rows, c), lambda i: (0, 0)),
                  pl.BlockSpec((1, c), lambda i: (0, 0)),
                  pl.BlockSpec((1, c), lambda i: (0, 0))],
        out_specs=pl.BlockSpec((rows, c), lambda i: (0, 0)),
        compiler_params=pltpu.CompilerParams(dimension_semantics=("arbitrary",)),
    )(x2d, gamma, beta)


# ---------------------------------------------------------------------------
# Kernel 5: head = fc_part (1x1 convs + bias + ReLU) then the classifier
# ---------------------------------------------------------------------------
def _head_kernel(x_ref, wf_ref, bf_ref, wc_ref, bc_ref, o_ref, *, n_fc):
    h = x_ref[...]
    for i in range(n_fc):
        h = jnp.maximum(
            jnp.dot(h.astype(jnp.bfloat16), wf_ref[i],
                    preferred_element_type=jnp.float32) + bf_ref[i], 0.0)
    o_ref[...] = jnp.dot(h.astype(jnp.bfloat16), wc_ref[...],
                         preferred_element_type=jnp.float32) + bc_ref[...]


def head(x2d, wf, bf, wc, bc):
    rows = x2d.shape[0]
    n_fc = wf.shape[0]
    kern = functools.partial(_head_kernel, n_fc=n_fc)
    return pl.pallas_call(
        kern,
        out_shape=jax.ShapeDtypeStruct((rows, CP), jnp.float32),
        grid=(1,),
        in_specs=[pl.BlockSpec((rows, CP), lambda i: (0, 0)),
                  pl.BlockSpec((n_fc, CP, CP), lambda i: (0, 0, 0)),
                  pl.BlockSpec((n_fc, 1, CP), lambda i: (0, 0, 0)),
                  pl.BlockSpec((CP, CP), lambda i: (0, 0)),
                  pl.BlockSpec((1, CP), lambda i: (0, 0))],
        out_specs=pl.BlockSpec((rows, CP), lambda i: (0, 0)),
        compiler_params=pltpu.CompilerParams(dimension_semantics=("arbitrary",)),
    )(x2d, wf, bf, wc, bc)


# ---------------------------------------------------------------------------
# Host-side helpers (parameter padding, cheap pooling glue)
# ---------------------------------------------------------------------------
def _pad2(a, r, c):
    return jnp.zeros((r, c), jnp.float32).at[:a.shape[0], :a.shape[1]].set(a)


def _pad_row(a, c):
    return jnp.zeros((1, c), jnp.float32).at[0, :a.shape[0]].set(a)


def _avg_pool(x, k):      # NHWC, kernel=stride=k, floor mode (== F.avg_pool2d)
    n, h, w, c = x.shape
    ho, wo = h // k, w // k
    x = x[:, :ho * k, :wo * k, :].reshape(n, ho, k, wo, k, c)
    return x.mean(axis=(2, 4))


def _max_pool(x, k, s):   # NHWC, VALID (== F.max_pool2d without padding)
    return lax.reduce_window(x, -jnp.inf, lax.max, (1, k, k, 1), (1, s, s, 1), "VALID")


# ---------------------------------------------------------------------------
# Deterministic parameter construction (shapes follow FConvDenseNet.__init__)
# ---------------------------------------------------------------------------
def make_params(key, *, growth, n_layers, n_fc, reduction, n_classes, inp_channels):
    def nrm(k, shape, scale):
        return scale * jax.random.normal(k, shape, jnp.float32)

    p = {}
    nch = 2 * growth
    key, k = jax.random.split(key)
    p["w_stem"] = nrm(k, (3, 3, inp_channels, nch), 0.3)           # HWIO
    blocks, transitions = [], []
    for bi, depth in enumerate(n_layers):
        inter = 4 * growth
        layers = []
        for _ in range(depth):
            key, k1, k2, k3, k4, k5, k6 = jax.random.split(key, 7)
            layers.append(dict(
                g1=1.0 + nrm(k1, (nch,), 0.1), b1=nrm(k2, (nch,), 0.1),
                w1=nrm(k3, (nch, inter), 0.2),
                g2=1.0 + nrm(k4, (inter,), 0.1), b2=nrm(k5, (inter,), 0.1),
                w2=nrm(k6, (3, 3, inter, growth), 0.15)))
            nch += growth
        blocks.append(layers)
        if bi != len(n_layers) - 1:
            nout = int(math.floor(nch * reduction))
            key, k1, k2, k3 = jax.random.split(key, 4)
            transitions.append(dict(g=1.0 + nrm(k1, (nch,), 0.1),
                                    b=nrm(k2, (nch,), 0.1),
                                    w=nrm(k3, (nch, nout), 0.2)))
            nch = nout
    p["blocks"], p["transitions"] = blocks, transitions
    key, k1, k2 = jax.random.split(key, 3)
    p["bn_g"], p["bn_b"] = 1.0 + nrm(k1, (nch,), 0.1), nrm(k2, (nch,), 0.1)
    assert n_fc[0] == nch, "nFc[0] must equal the final dense-net channel count"
    fcs = []
    for i in range(len(n_fc) - 1):
        key, k1, k2 = jax.random.split(key, 3)
        fcs.append((nrm(k1, (n_fc[i], n_fc[i + 1]), 0.2), nrm(k2, (n_fc[i + 1],), 0.1)))
    p["fc"] = fcs
    key, k1, k2 = jax.random.split(key, 3)
    p["w_clf"], p["b_clf"] = nrm(k1, (n_fc[-1], n_classes), 0.3), nrm(k2, (n_classes,), 0.1)
    return p


def pack_params(p, *, growth):
    """Zero-pad / repack parameters for the lane-dense bf16 kernels."""
    inter, tpg, n_groups = _pack_geometry(growth)
    k2 = n_groups * CP
    packed = {}

    w = p["w_stem"]
    kdim = w.shape[0] * w.shape[1] * w.shape[2]
    assert kdim <= 128
    packed["w_stem"] = _pad2(w.reshape(kdim, w.shape[3]), 128, CP).astype(jnp.bfloat16)

    pblocks = []
    for layers in p["blocks"]:
        c0 = layers[0]["g1"].shape[0]
        g1 = jnp.stack([_pad_row(L["g1"], CP) for L in layers])
        b1 = jnp.stack([_pad_row(L["b1"], CP) for L in layers])
        w1l, g2l, b2l, w2l = [], [], [], []
        for li, L in enumerate(layers):
            cin = c0 + li * growth
            w1_np = np.asarray(L["w1"], np.float32)          # (cin, inter)
            w1r = np.zeros((CP, CP), np.float32)
            g2r = np.zeros((1, CP), np.float32)
            b2r = np.zeros((1, CP), np.float32)
            for s in range(tpg):                              # slot-replicate
                w1r[:cin, s * inter:(s + 1) * inter] = w1_np
                g2r[0, s * inter:(s + 1) * inter] = np.asarray(L["g2"], np.float32)
                b2r[0, s * inter:(s + 1) * inter] = np.asarray(L["b2"], np.float32)
            w1l.append(w1r)
            g2l.append(g2r)
            b2l.append(b2r)
            w2_np = np.asarray(L["w2"], np.float32)           # (3,3,inter,growth)
            w2p = np.zeros((k2, CP), np.float32)
            for di in range(3):
                for dj in range(3):
                    t = di * 3 + dj
                    g, s = divmod(t, tpg)
                    r0 = g * CP + s * inter
                    w2p[r0:r0 + inter, cin:cin + growth] = w2_np[di, dj]
            w2l.append(w2p)
        pblocks.append((g1, b1,
                        jnp.asarray(np.stack(w1l), dtype=jnp.bfloat16),
                        jnp.asarray(np.stack(g2l), dtype=jnp.float32),
                        jnp.asarray(np.stack(b2l), dtype=jnp.float32),
                        jnp.asarray(np.stack(w2l), dtype=jnp.bfloat16)))
    packed["blocks"] = pblocks

    packed["transitions"] = [dict(g=_pad_row(T["g"], CP), b=_pad_row(T["b"], CP),
                                  w=_pad2(T["w"], CP, CP).astype(jnp.bfloat16))
                             for T in p["transitions"]]
    packed["bn_g"], packed["bn_b"] = _pad_row(p["bn_g"], CP), _pad_row(p["bn_b"], CP)
    packed["wf"] = jnp.stack([_pad2(wi, CP, CP) for (wi, _) in p["fc"]]).astype(jnp.bfloat16)
    packed["bf"] = jnp.stack([_pad_row(bi, CP) for (_, bi) in p["fc"]])
    packed["wc"] = _pad2(p["w_clf"], CP, CP).astype(jnp.bfloat16)
    packed["bc"] = _pad_row(p["b_clf"], CP)
    return packed


# ---------------------------------------------------------------------------
# Full FConvDenseNet forward (Pallas path)
# ---------------------------------------------------------------------------
def fconv_densenet_forward(x_nchw, packed, *, growth, n_layers, reduction,
                           n_classes, avg_pool_size):
    inter, tpg, n_groups = _pack_geometry(growth)
    x = jnp.transpose(x_nchw, (0, 2, 3, 1)).astype(jnp.float32)      # NHWC
    n, hi, wi, cin = x.shape

    # --- stem: 3x3 stride-2 pad-1 conv == im2col (glue) + Pallas matmul ---
    # TODO(synk): im2col patch extraction and the window-pooling ops below are
    # plain-JAX data-movement glue; all conv/BN/ReLU/matmul compute is Pallas.
    ho, wo = (hi + 2 - 3) // 2 + 1, (wi + 2 - 3) // 2 + 1
    xp = jnp.pad(x, ((0, 0), (1, 1), (1, 1), (0, 0)))
    taps = [xp[:, di:di + 2 * ho:2, dj:dj + 2 * wo:2, :]
            for di in range(3) for dj in range(3)]
    patches = jnp.concatenate(taps, axis=-1).reshape(n * ho * wo, 9 * cin)
    patches = _pad2(patches, patches.shape[0], 128).astype(jnp.bfloat16)
    y = matmul(patches, packed["w_stem"]).reshape(n, ho, wo, CP)

    # --- max-pool 3x3 / stride 2 ---
    y = _max_pool(y, 3, 2)

    # --- dense blocks (+ transitions) ---
    nch = 2 * growth
    for bi, blk in enumerate(packed["blocks"]):
        depth = n_layers[bi]
        c0 = nch
        nb, hb, wb, _ = y.shape
        rows = nb * hb * wb
        y2d = dense_block(y.reshape(rows, CP), blk, depth=depth, c0=c0, rows=rows,
                          h_sp=hb, w_sp=wb, inter=inter, tpg=tpg, n_groups=n_groups)
        nch = c0 + depth * growth
        if bi != len(packed["blocks"]) - 1:
            T = packed["transitions"][bi]
            y2d = bn_relu_pointwise(y2d, T["g"], T["b"], T["w"])
            y = _avg_pool(y2d.reshape(nb, hb, wb, CP), 2)
            nch = int(math.floor(nch * reduction))
        else:
            y = y2d.reshape(nb, hb, wb, CP)

    # --- network-level BN ---
    nb, hb, wb, _ = y.shape
    y = batch_norm(y.reshape(nb * hb * wb, CP),
                   packed["bn_g"], packed["bn_b"]).reshape(nb, hb, wb, CP)

    # --- avg-pool -> features -> fc_part + classifier (fused head kernel) ---
    feats = _avg_pool(y, avg_pool_size)
    nf, hf, wf_, _ = feats.shape
    logits2d = head(feats.reshape(nf * hf * wf_, CP),
                    packed["wf"], packed["bf"], packed["wc"], packed["bc"])
    logits = logits2d[:, :n_classes].reshape(nf, hf, wf_, n_classes)

    # --- global max-pool over spatial, .view(batch), sigmoid ---
    pooled = jnp.max(logits, axis=(1, 2))                  # (N, nClasses)
    out = jax.nn.sigmoid(pooled.reshape(nf))               # valid: nClasses == 1
    return out, logits


# ---------------------------------------------------------------------------
# Pure-JAX reference (correctness check).  Matmul/conv operands are cast to
# bf16 with f32 accumulation, mirroring the Pallas kernels' MXU input
# precision; all other math (BN stats, pooling, biases) is f32.
# ---------------------------------------------------------------------------
def ref_forward(x_nchw, p, *, n_classes, avg_pool_size):
    bf = jnp.bfloat16
    x = jnp.transpose(x_nchw, (0, 2, 3, 1)).astype(jnp.float32)

    def bn(t, g, b):
        m = t.mean(axis=(0, 1, 2))
        v = ((t - m) ** 2).mean(axis=(0, 1, 2))
        return (t - m) / jnp.sqrt(v + EPS) * g + b

    def conv(t, w, stride, pad):
        return lax.conv_general_dilated(
            t.astype(bf), w.astype(bf), (stride, stride), pad,
            dimension_numbers=("NHWC", "HWIO", "NHWC"),
            preferred_element_type=jnp.float32)

    def pw(t, w):
        return jnp.einsum("nhwc,cd->nhwd", t.astype(bf), w.astype(bf),
                          preferred_element_type=jnp.float32)

    y = conv(x, p["w_stem"], 2, ((1, 1), (1, 1)))
    y = _max_pool(y, 3, 2)
    for bi, layers in enumerate(p["blocks"]):
        for L in layers:
            a1 = jax.nn.relu(bn(y, L["g1"], L["b1"]))
            h = pw(a1, L["w1"])
            a2 = jax.nn.relu(bn(h, L["g2"], L["b2"]))
            o = conv(a2, L["w2"], 1, "SAME")
            y = jnp.concatenate([y, o], axis=-1)
        if bi != len(p["blocks"]) - 1:
            T = p["transitions"][bi]
            a = jax.nn.relu(bn(y, T["g"], T["b"]))
            y = _avg_pool(pw(a, T["w"]), 2)
    y = bn(y, p["bn_g"], p["bn_b"])
    feats = _avg_pool(y, avg_pool_size)
    h = feats
    for (w, b) in p["fc"]:
        h = jax.nn.relu(pw(h, w) + b)
    logits = pw(h, p["w_clf"]) + p["b_clf"]
    pooled = jnp.max(logits, axis=(1, 2))
    out = jax.nn.sigmoid(pooled.reshape(pooled.shape[0]))
    return out, logits


if __name__ == "__main__":
    # Small, self-consistent FConvDenseNet config.
    growth = 8                    # growthRate
    n_layers = [2, 2]             # nLayers
    reduction = 0.5
    n_classes = 1                 # must be 1: forward() does .view(batch) at the end
    inp_channels = 1
    n_fc = [32, 16]               # nFc; nFc[0] == final channel count (32)
    avg_pool_size = 3

    key = jax.random.PRNGKey(0)
    key, kx = jax.random.split(key)
    x = jax.random.normal(kx, (2, inp_channels, 36, 36), jnp.float32)   # NCHW

    params = make_params(key, growth=growth, n_layers=n_layers, n_fc=n_fc,
                         reduction=reduction, n_classes=n_classes,
                         inp_channels=inp_channels)
    packed = pack_params(params, growth=growth)

    fwd = jax.jit(functools.partial(
        fconv_densenet_forward, growth=growth, n_layers=tuple(n_layers),
        reduction=reduction, n_classes=n_classes, avg_pool_size=avg_pool_size))

    out, logits = fwd(x, packed)
    out = jax.block_until_ready(out)

    out_ref, logits_ref = ref_forward(x, params, n_classes=n_classes,
                                      avg_pool_size=avg_pool_size)

    assert out.shape == (2,), out.shape
    # Tolerances account for bf16 MXU inputs + single-pass BN stats vs the
    # two-pass f32-stat reference (same bf16 operand values on both paths).
    assert jnp.allclose(logits, logits_ref, atol=1e-2, rtol=1e-2), \
        float(jnp.max(jnp.abs(logits - logits_ref)))
    assert jnp.allclose(out, out_ref, atol=5e-3, rtol=5e-3), \
        float(jnp.max(jnp.abs(out - out_ref)))
    print("KERNEL_OK")
</pallas_src>

<mosaic_0001>
module attributes {stable_mosaic.version = 11 : i64} {
  func.func @_matmul_kernel(%arg0: i32, %arg1: memref<648x128xbf16, #tpu.memory_space<vmem>>, %arg2: memref<128x128xbf16, #tpu.memory_space<vmem>>, %arg3: memref<648x128xf32, #tpu.memory_space<vmem>>) attributes {dimension_semantics = [#tpu.dimension_semantics<arbitrary>], iteration_bounds = array<i64: 1>, scalar_prefetch = 0 : i64, scratch_operands = 0 : i64, tpu.core_type = #tpu.core_type<tc>, window_params = [{pipeline_mode = #tpu.pipeline_mode<synchronous>, transform_indices = @transform_0, window_bounds = array<i64: 648, 128>}, {pipeline_mode = #tpu.pipeline_mode<synchronous>, transform_indices = @transform_1, window_bounds = array<i64: 128, 128>}, {pipeline_mode = #tpu.pipeline_mode<synchronous>, transform_indices = @transform_2, window_bounds = array<i64: 648, 128>}]} {
    %c0 = arith.constant 0 : index
    %c0_0 = arith.constant 0 : index
    %0 = vector.load %arg1[%c0, %c0_0] : memref<648x128xbf16, #tpu.memory_space<vmem>>, vector<648x128xbf16>
    %c0_1 = arith.constant 0 : index
    %c0_2 = arith.constant 0 : index
    %1 = vector.load %arg2[%c0_1, %c0_2] : memref<128x128xbf16, #tpu.memory_space<vmem>>, vector<128x128xbf16>
    %cst = arith.constant dense<0.000000e+00> : vector<648x128xf32>
    %2 = tpu.matmul %0, %1, %cst {dimension_numbers = #tpu.dot_dimension_numbers<[1], [0], [0], [1], [0, 0, 1, 1], [], []>} : vector<648x128xbf16>, vector<128x128xbf16>, vector<648x128xf32> -> vector<648x128xf32>
    %c0_3 = arith.constant 0 : index
    %c0_4 = arith.constant 0 : index
    %3 = vector.load %arg3[%c0_3, %c0_4] : memref<648x128xf32, #tpu.memory_space<vmem>>, vector<648x128xf32>
    tpu.vector_store %arg3[%c0_3, %c0_4], %2 {strides = array<i32>} : memref<648x128xf32, #tpu.memory_space<vmem>>, vector<648x128xf32>,
    return
  }
  func.func @transform_0(%arg0: i32) -> (i32, i32) {
    %c0_i32 = arith.constant 0 : i32
    %c0_i32_0 = arith.constant 0 : i32
    %c0_i32_1 = arith.constant 0 : i32
    return %c0_i32, %c0_i32_0 : i32, i32
  }
  func.func @transform_1(%arg0: i32) -> (i32, i32) {
    %c0_i32 = arith.constant 0 : i32
    %c0_i32_0 = arith.constant 0 : i32
    %c0_i32_1 = arith.constant 0 : i32
    return %c0_i32, %c0_i32_0 : i32, i32
  }
  func.func @transform_2(%arg0: i32) -> (i32, i32) {
    %c0_i32 = arith.constant 0 : i32
    %c0_i32_0 = arith.constant 0 : i32
    %c0_i32_1 = arith.constant 0 : i32
    return %c0_i32, %c0_i32_0 : i32, i32
  }
}

module attributes {stable_mosaic.version = 11 : i64} {
  func.func @_dense_block_kernel(%arg0: i32, %arg1: memref<128x128xf32, #tpu.memory_space<vmem>>, %arg2: memref<1x1x128xf32, #tpu.memory_space<vmem>>, %arg3: memref<1x1x128xf32, #tpu.memory_space<vmem>>, %arg4: memref<1x128x128xbf16, #tpu.memory_space<vmem>>, %arg5: memref<1x1x128xf32, #tpu.memory_space<vmem>>, %arg6: memref<1x1x128xf32, #tpu.memory_space<vmem>>, %arg7: memref<1x384x128xbf16, #tpu.memory_space<vmem>>, %arg8: memref<128x128xf32, #tpu.memory_space<vmem>>, %arg9: memref<128x128xf32, #tpu.memory_space<vmem>>, %arg10: memref<146x128xf32, #tpu.memory_space<vmem>>) attributes {dimension_semantics = [#tpu.dimension_semantics<arbitrary>], iteration_bounds = array<i64: 2>, scalar_prefetch = 0 : i64, scratch_operands = 2 : i64, tpu.core_type = #tpu.core_type<tc>, window_params = [{pipeline_mode = #tpu.pipeline_mode<synchronous>, transform_indices = @transform_0, window_bounds = array<i64: 128, 128>}, {transform_indices = @transform_1, window_bounds = array<i64: 1, 1, 128>}, {transform_indices = @transform_2, window_bounds = array<i64: 1, 1, 128>}, {transform_indices = @transform_3, window_bounds = array<i64: 1, 128, 128>}, {transform_indices = @transform_4, window_bounds = array<i64: 1, 1, 128>}, {transform_indices = @transform_5, window_bounds = array<i64: 1, 1, 128>}, {transform_indices = @transform_6, window_bounds = array<i64: 1, 384, 128>}, {pipeline_mode = #tpu.pipeline_mode<synchronous>, transform_indices = @transform_7, window_bounds = array<i64: 128, 128>}]} {
    %c0_i32 = arith.constant 0 : i32
    %0 = arith.cmpi eq, %arg0, %c0_i32 : i32
    %1 = arith.extui %0 : i1 to i32
    %c0_i32_0 = arith.constant 0 : i32
    %2 = arith.cmpi ne, %1, %c0_i32_0 : i32
    scf.if %2 {
      %219 = tpu.iota {dimensions = array<i32: 1>} : vector<1x128xi32>
      %c16_i32 = arith.constant 16 : i32
      %220 = vector.broadcast %c16_i32 : i32 to vector<1x128xi32>
      %221 = arith.cmpi slt, %219, %220 : vector<1x128xi32>
      %c0_68 = arith.constant 0 : index
      %c0_69 = arith.constant 0 : index
      %222 = vector.load %arg1[%c0_68, %c0_69] : memref<128x128xf32, #tpu.memory_space<vmem>>, vector<128x128xf32>
      %cst_70 = arith.constant 0.000000e+00 : f32
      %223 = vector.shape_cast %221 : vector<1x128xi1> to vector<1x128xi1>
      %224 = vector.broadcast %223 : vector<1x128xi1> to vector<128x128xi1>
      %225 = vector.broadcast %cst_70 : f32 to vector<128x128xf32>
      %226 = arith.select %224, %222, %225 : vector<128x128xi1>, vector<128x128xf32>
      %c0_71 = arith.constant 0 : index
      %c0_72 = arith.constant 0 : index
      %227 = vector.load %arg9[%c0_71, %c0_72] : memref<128x128xf32, #tpu.memory_space<vmem>>, vector<128x128xf32>
      tpu.vector_store %arg9[%c0_71, %c0_72], %226 {strides = array<i32>} : memref<128x128xf32, #tpu.memory_space<vmem>>, vector<128x128xf32>,
      %cst_73 = arith.constant 0.000000e+00 : f32
      %228 = vector.broadcast %cst_73 : f32 to vector<146x128xf32>
      %c0_74 = arith.constant 0 : index
      %c0_75 = arith.constant 0 : index
      %229 = vector.load %arg10[%c0_74, %c0_75] : memref<146x128xf32, #tpu.memory_space<vmem>>, vector<146x128xf32>
      tpu.vector_store %arg10[%c0_74, %c0_75], %228 {strides = array<i32>} : memref<146x128xf32, #tpu.memory_space<vmem>>, vector<146x128xf32>,
    } else {
    }
    %c0 = arith.constant 0 : index
    %c0_1 = arith.constant 0 : index
    %3 = vector.load %arg9[%c0, %c0_1] : memref<128x128xf32, #tpu.memory_space<vmem>>, vector<128x128xf32>
    %cst = arith.constant dense<0.000000e+00> : vector<128xf32>
    %4 = vector.multi_reduction <add>, %3, %cst [0] : vector<128x128xf32> to vector<128xf32>
    %5 = vector.shape_cast %4 : vector<128xf32> to vector<1x128xf32>
    %cst_2 = arith.constant 7.812500e-03 : f32
    %6 = vector.broadcast %cst_2 : f32 to vector<1x128xf32>
    %7 = arith.mulf %5, %6 : vector<1x128xf32>
    %8 = arith.mulf %3, %3 : vector<128x128xf32>
    %cst_3 = arith.constant dense<0.000000e+00> : vector<128xf32>
    %9 = vector.multi_reduction <add>, %8, %cst_3 [0] : vector<128x128xf32> to vector<128xf32>
    %10 = vector.shape_cast %9 : vector<128xf32> to vector<1x128xf32>
    %cst_4 = arith.constant 7.812500e-03 : f32
    %11 = vector.broadcast %cst_4 : f32 to vector<1x128xf32>
    %12 = arith.mulf %10, %11 : vector<1x128xf32>
    %13 = arith.mulf %7, %7 : vector<1x128xf32>
    %14 = arith.subf %12, %13 : vector<1x128xf32>
    %cst_5 = arith.constant 0.000000e+00 : f32
    %15 = vector.broadcast %cst_5 : f32 to vector<1x128xf32>
    %16 = arith.maximumf %14, %15 : vector<1x128xf32>
    %c0_6 = arith.constant 0 : index
    %c0_7 = arith.constant 0 : index
    %c0_8 = arith.constant 0 : index
    %17 = vector.load %arg2[%c0_6, %c0_7, %c0_8] : memref<1x1x128xf32, #tpu.memory_space<vmem>>, vector<1x1x128xf32>
    %18 = vector.shape_cast %17 : vector<1x1x128xf32> to vector<1x128xf32>
    %cst_9 = arith.constant 9.99999974E-6 : f32
    %19 = vector.broadcast %cst_9 : f32 to vector<1x128xf32>
    %20 = arith.addf %16, %19 : vector<1x128xf32>
    %21 = math.rsqrt %20 : vector<1x128xf32>
    %22 = arith.mulf %18, %21 : vector<1x128xf32>
    %23 = vector.broadcast %22 : vector<1x128xf32> to vector<128x128xf32>
    %24 = arith.mulf %3, %23 : vector<128x128xf32>
    %c0_10 = arith.constant 0 : index
    %c0_11 = arith.constant 0 : index
    %c0_12 = arith.constant 0 : index
    %25 = vector.load %arg3[%c0_10, %c0_11, %c0_12] : memref<1x1x128xf32, #tpu.memory_space<vmem>>, vector<1x1x128xf32>
    %26 = vector.shape_cast %25 : vector<1x1x128xf32> to vector<1x128xf32>
    %27 = arith.mulf %7, %22 : vector<1x128xf32>
    %28 = arith.subf %26, %27 : vector<1x128xf32>
    %29 = vector.broadcast %28 : vector<1x128xf32> to vector<128x128xf32>
    %30 = arith.addf %24, %29 : vector<128x128xf32>
    %cst_13 = arith.constant 0.000000e+00 : f32
    %31 = vector.broadcast %cst_13 : f32 to vector<128x128xf32>
    %32 = arith.maximumf %30, %31 : vector<128x128xf32>
    %33 = arith.truncf %32 : vector<128x128xf32> to vector<128x128xbf16>
    %c0_14 = arith.constant 0 : index
    %c0_15 = arith.constant 0 : index
    %c0_16 = arith.constant 0 : index
    %34 = vector.load %arg4[%c0_14, %c0_15, %c0_16] : memref<1x128x128xbf16, #tpu.memory_space<vmem>>, vector<1x128x128xbf16>
    %35 = vector.shape_cast %34 : vector<1x128x128xbf16> to vector<128x128xbf16>
    %cst_17 = arith.constant dense<0.000000e+00> : vector<128x128xf32>
    %36 = tpu.matmul %33, %35, %cst_17 {dimension_numbers = #tpu.dot_dimension_numbers<[1], [0], [0], [1], [0, 0, 1, 1], [], []>} : vector<128x128xbf16>, vector<128x128xbf16>, vector<128x128xf32> -> vector<128x128xf32>
    %cst_18 = arith.constant dense<0.000000e+00> : vector<128xf32>
    %37 = vector.multi_reduction <add>, %36, %cst_18 [0] : vector<128x128xf32> to vector<128xf32>
    %38 = vector.shape_cast %37 : vector<128xf32> to vector<1x128xf32>
    %cst_19 = arith.constant 7.812500e-03 : f32
    %39 = vector.broadcast %cst_19 : f32 to vector<1x128xf32>
    %40 = arith.mulf %38, %39 : vector<1x128xf32>
    %41 = arith.mulf %36, %36 : vector<128x128xf32>
    %cst_20 = arith.constant dense<0.000000e+00> : vector<128xf32>
    %42 = vector.multi_reduction <add>, %41, %cst_20 [0] : vector<128x128xf32> to vector<128xf32>
    %43 = vector.shape_cast %42 : vector<128xf32> to vector<1x128xf32>
    %cst_21 = arith.constant 7.812500e-03 : f32
    %44 = vector.broadcast %cst_21 : f32 to vector<1x128xf32>
    %45 = arith.mulf %43, %44 : vector<1x128xf32>
    %46 = arith.mulf %40, %40 : vector<1x128xf32>
    %47 = arith.subf %45, %46 : vector<1x128xf32>
    %cst_22 = arith.constant 0.000000e+00 : f32
    %48 = vector.broadcast %cst_22 : f32 to vector<1x128xf32>
    %49 = arith.maximumf %47, %48 : vector<1x128xf32>
    %c0_23 = arith.constant 0 : index
    %c0_24 = arith.constant 0 : index
    %c0_25 = arith.constant 0 : index
    %50 = vector.load %arg5[%c0_23, %c0_24, %c0_25] : memref<1x1x128xf32, #tpu.memory_space<vmem>>, vector<1x1x128xf32>
    %51 = vector.shape_cast %50 : vector<1x1x128xf32> to vector<1x128xf32>
    %cst_26 = arith.constant 9.99999974E-6 : f32
    %52 = vector.broadcast %cst_26 : f32 to vector<1x128xf32>
    %53 = arith.addf %49, %52 : vector<1x128xf32>
    %54 = math.rsqrt %53 : vector<1x128xf32>
    %55 = arith.mulf %51, %54 : vector<1x128xf32>
    %56 = vector.broadcast %55 : vector<1x128xf32> to vector<128x128xf32>
    %57 = arith.mulf %36, %56 : vector<128x128xf32>
    %c0_27 = arith.constant 0 : index
    %c0_28 = arith.constant 0 : index
    %c0_29 = arith.constant 0 : index
    %58 = vector.load %arg6[%c0_27, %c0_28, %c0_29] : memref<1x1x128xf32, #tpu.memory_space<vmem>>, vector<1x1x128xf32>
    %59 = vector.shape_cast %58 : vector<1x1x128xf32> to vector<1x128xf32>
    %60 = arith.mulf %40, %55 : vector<1x128xf32>
    %61 = arith.subf %59, %60 : vector<1x128xf32>
    %62 = vector.broadcast %61 : vector<1x128xf32> to vector<128x128xf32>
    %63 = arith.addf %57, %62 : vector<128x128xf32>
    %cst_30 = arith.constant 0.000000e+00 : f32
    %64 = vector.broadcast %cst_30 : f32 to vector<128x128xf32>
    %65 = arith.maximumf %63, %64 : vector<128x128xf32>
    %c9 = arith.constant 9 : index
    %c0_31 = arith.constant 0 : index
    %66 = vector.load %arg10[%c9, %c0_31] : memref<146x128xf32, #tpu.memory_space<vmem>>, vector<128x128xf32>
    tpu.vector_store %arg10[%c9, %c0_31], %65 {strides = array<i32>} : memref<146x128xf32, #tpu.memory_space<vmem>>, vector<128x128xf32>,
    %67 = tpu.iota {dimensions = array<i32: 0>} : vector<128x1xi32>
    %c7_i32 = arith.constant 7 : i32
    %68 = vector.broadcast %c7_i32 : i32 to vector<128x1xi32>
    %69 = arith.andi %67, %68 : vector<128x1xi32>
    %c63_i32 = arith.constant 63 : i32
    %70 = vector.broadcast %c63_i32 : i32 to vector<128x1xi32>
    %71 = arith.andi %67, %70 : vector<128x1xi32>
    %c3_i32 = arith.constant 3 : i32
    %72 = vector.broadcast %c3_i32 : i32 to vector<128x1xi32>
    %73 = arith.shrsi %71, %72 : vector<128x1xi32>
    %c1_i32 = arith.constant 1 : i32
    %74 = vector.broadcast %c1_i32 : i32 to vector<128x1xi32>
    %75 = arith.cmpi sge, %73, %74 : vector<128x1xi32>
    %76 = arith.extui %75 : vector<128x1xi1> to vector<128x1xi32>
    %77 = arith.sitofp %76 : vector<128x1xi32> to vector<128x1xf32>
    %c7_i32_32 = arith.constant 7 : i32
    %78 = vector.broadcast %c7_i32_32 : i32 to vector<128x1xi32>
    %79 = arith.cmpi slt, %73, %78 : vector<128x1xi32>
    %80 = arith.extui %79 : vector<128x1xi1> to vector<128x1xi32>
    %81 = arith.sitofp %80 : vector<128x1xi32> to vector<128x1xf32>
    %c1_i32_33 = arith.constant 1 : i32
    %82 = vector.broadcast %c1_i32_33 : i32 to vector<128x1xi32>
    %83 = arith.cmpi sge, %69, %82 : vector<128x1xi32>
    %84 = arith.extui %83 : vector<128x1xi1> to vector<128x1xi32>
    %85 = arith.sitofp %84 : vector<128x1xi32> to vector<128x1xf32>
    %c7_i32_34 = arith.constant 7 : i32
    %86 = vector.broadcast %c7_i32_34 : i32 to vector<128x1xi32>
    %87 = arith.cmpi slt, %69, %86 : vector<128x1xi32>
    %88 = arith.extui %87 : vector<128x1xi1> to vector<128x1xi32>
    %89 = arith.sitofp %88 : vector<128x1xi32> to vector<128x1xf32>
    %90 = tpu.iota {dimensions = array<i32: 1>} : vector<1x128xi32>
    %c0_35 = arith.constant 0 : index
    %c0_36 = arith.constant 0 : index
    %91 = vector.load %arg10[%c0_35, %c0_36] : memref<146x128xf32, #tpu.memory_space<vmem>>, vector<128x128xf32>
    %c0_i32_37 = arith.constant 0 : i32
    %92 = vector.broadcast %c0_i32_37 : i32 to vector<1x128xi32>
    %93 = arith.cmpi sge, %90, %92 : vector<1x128xi32>
    %c32_i32 = arith.constant 32 : i32
    %94 = vector.broadcast %c32_i32 : i32 to vector<1x128xi32>
    %95 = arith.cmpi slt, %90, %94 : vector<1x128xi32>
    %96 = arith.andi %93, %95 : vector<1x128xi1>
    %97 = arith.extui %96 : vector<1x128xi1> to vector<1x128xi32>
    %98 = arith.sitofp %97 : vector<1x128xi32> to vector<1x128xf32>
    %99 = arith.mulf %77, %85 : vector<128x1xf32>
    %100 = vector.broadcast %99 : vector<128x1xf32> to vector<128x128xf32>
    %101 = vector.broadcast %98 : vector<1x128xf32> to vector<128x128xf32>
    %102 = arith.mulf %100, %101 : vector<128x128xf32>
    %103 = arith.mulf %91, %102 : vector<128x128xf32>
    %c1 = arith.constant 1 : index
    %c0_38 = arith.constant 0 : index
    %104 = vector.load %arg10[%c1, %c0_38] : memref<146x128xf32, #tpu.memory_space<vmem>>, vector<128x128xf32>
    %c32_i32_39 = arith.constant 32 : i32
    %105 = vector.broadcast %c32_i32_39 : i32 to vector<1x128xi32>
    %106 = arith.cmpi sge, %90, %105 : vector<1x128xi32>
    %c64_i32 = arith.constant 64 : i32
    %107 = vector.broadcast %c64_i32 : i32 to vector<1x128xi32>
    %108 = arith.cmpi slt, %90, %107 : vector<1x128xi32>
    %109 = arith.andi %106, %108 : vector<1x128xi1>
    %110 = arith.extui %109 : vector<1x128xi1> to vector<1x128xi32>
    %111 = arith.sitofp %110 : vector<1x128xi32> to vector<1x128xf32>
    %112 = vector.broadcast %77 : vector<128x1xf32> to vector<128x128xf32>
    %113 = vector.broadcast %111 : vector<1x128xf32> to vector<128x128xf32>
    %114 = arith.mulf %112, %113 : vector<128x128xf32>
    %115 = arith.mulf %104, %114 : vector<128x128xf32>
    %116 = arith.addf %103, %115 : vector<128x128xf32>
    %c2 = arith.constant 2 : index
    %c0_40 = arith.constant 0 : index
    %117 = vector.load %arg10[%c2, %c0_40] : memref<146x128xf32, #tpu.memory_space<vmem>>, vector<128x128xf32>
    %c64_i32_41 = arith.constant 64 : i32
    %118 = vector.broadcast %c64_i32_41 : i32 to vector<1x128xi32>
    %119 = arith.cmpi sge, %90, %118 : vector<1x128xi32>
    %c96_i32 = arith.constant 96 : i32
    %120 = vector.broadcast %c96_i32 : i32 to vector<1x128xi32>
    %121 = arith.cmpi slt, %90, %120 : vector<1x128xi32>
    %122 = arith.andi %119, %121 : vector<1x128xi1>
    %123 = arith.extui %122 : vector<1x128xi1> to vector<1x128xi32>
    %124 = arith.sitofp %123 : vector<1x128xi32> to vector<1x128xf32>
    %125 = arith.mulf %77, %89 : vector<128x1xf32>
    %126 = vector.broadcast %125 : vector<128x1xf32> to vector<128x128xf32>
    %127 = vector.broadcast %124 : vector<1x128xf32> to vector<128x128xf32>
    %128 = arith.mulf %126, %127 : vector<128x128xf32>
    %129 = arith.mulf %117, %128 : vector<128x128xf32>
    %130 = arith.addf %116, %129 : vector<128x128xf32>
    %c8 = arith.constant 8 : index
    %c0_42 = arith.constant 0 : index
    %131 = vector.load %arg10[%c8, %c0_42] : memref<146x128xf32, #tpu.memory_space<vmem>>, vector<128x128xf32>
    %c96_i32_43 = arith.constant 96 : i32
    %132 = vector.broadcast %c96_i32_43 : i32 to vector<1x128xi32>
    %133 = arith.cmpi sge, %90, %132 : vector<1x128xi32>
    %c128_i32 = arith.constant 128 : i32
    %134 = vector.broadcast %c128_i32 : i32 to vector<1x128xi32>
    %135 = arith.cmpi slt, %90, %134 : vector<1x128xi32>
    %136 = arith.andi %133, %135 : vector<1x128xi1>
    %137 = arith.extui %136 : vector<1x128xi1> to vector<1x128xi32>
    %138 = arith.sitofp %137 : vector<1x128xi32> to vector<1x128xf32>
    %139 = vector.broadcast %85 : vector<128x1xf32> to vector<128x128xf32>
    %140 = vector.broadcast %138 : vector<1x128xf32> to vector<128x128xf32>
    %141 = arith.mulf %139, %140 : vector<128x128xf32>
    %142 = arith.mulf %131, %141 : vector<128x128xf32>
    %143 = arith.addf %130, %142 : vector<128x128xf32>
    %144 = arith.truncf %143 : vector<128x128xf32> to vector<128x128xbf16>
    %c9_44 = arith.constant 9 : index
    %c0_45 = arith.constant 0 : index
    %145 = vector.load %arg10[%c9_44, %c0_45] : memref<146x128xf32, #tpu.memory_space<vmem>>, vector<128x128xf32>
    %c0_i32_46 = arith.constant 0 : i32
    %146 = vector.broadcast %c0_i32_46 : i32 to vector<1x128xi32>
    %147 = arith.cmpi sge, %90, %146 : vector<1x128xi32>
    %c32_i32_47 = arith.constant 32 : i32
    %148 = vector.broadcast %c32_i32_47 : i32 to vector<1x128xi32>
    %149 = arith.cmpi slt, %90, %148 : vector<1x128xi32>
    %150 = arith.andi %147, %149 : vector<1x128xi1>
    %151 = arith.extui %150 : vector<1x128xi1> to vector<1x128xi32>
    %152 = arith.sitofp %151 : vector<1x128xi32> to vector<1x128xf32>
    %153 = vector.broadcast %152 : vector<1x128xf32> to vector<128x128xf32>
    %154 = arith.mulf %145, %153 : vector<128x128xf32>
    %c10 = arith.constant 10 : index
    %c0_48 = arith.constant 0 : index
    %155 = vector.load %arg10[%c10, %c0_48] : memref<146x128xf32, #tpu.memory_space<vmem>>, vector<128x128xf32>
    %c32_i32_49 = arith.constant 32 : i32
    %156 = vector.broadcast %c32_i32_49 : i32 to vector<1x128xi32>
    %157 = arith.cmpi sge, %90, %156 : vector<1x128xi32>
    %c64_i32_50 = arith.constant 64 : i32
    %158 = vector.broadcast %c64_i32_50 : i32 to vector<1x128xi32>
    %159 = arith.cmpi slt, %90, %158 : vector<1x128xi32>
    %160 = arith.andi %157, %159 : vector<1x128xi1>
    %161 = arith.extui %160 : vector<1x128xi1> to vector<1x128xi32>
    %162 = arith.sitofp %161 : vector<1x128xi32> to vector<1x128xf32>
    %163 = vector.broadcast %89 : vector<128x1xf32> to vector<128x128xf32>
    %164 = vector.broadcast %162 : vector<1x128xf32> to vector<128x128xf32>
    %165 = arith.mulf %163, %164 : vector<128x128xf32>
    %166 = arith.mulf %155, %165 : vector<128x128xf32>
    %167 = arith.addf %154, %166 : vector<128x128xf32>
    %c16 = arith.constant 16 : index
    %c0_51 = arith.constant 0 : index
    %168 = vector.load %arg10[%c16, %c0_51] : memref<146x128xf32, #tpu.memory_space<vmem>>, vector<128x128xf32>
    %c64_i32_52 = arith.constant 64 : i32
    %169 = vector.broadcast %c64_i32_52 : i32 to vector<1x128xi32>
    %170 = arith.cmpi sge, %90, %169 : vector<1x128xi32>
    %c96_i32_53 = arith.constant 96 : i32
    %171 = vector.broadcast %c96_i32_53 : i32 to vector<1x128xi32>
    %172 = arith.cmpi slt, %90, %171 : vector<1x128xi32>
    %173 = arith.andi %170, %172 : vector<1x128xi1>
    %174 = arith.extui %173 : vector<1x128xi1> to vector<1x128xi32>
    %175 = arith.sitofp %174 : vector<1x128xi32> to vector<1x128xf32>
    %176 = arith.mulf %81, %85 : vector<128x1xf32>
    %177 = vector.broadcast %176 : vector<128x1xf32> to vector<128x128xf32>
    %178 = vector.broadcast %175 : vector<1x128xf32> to vector<128x128xf32>
    %179 = arith.mulf %177, %178 : vector<128x128xf32>
    %180 = arith.mulf %168, %179 : vector<128x128xf32>
    %181 = arith.addf %167, %180 : vector<128x128xf32>
    %c17 = arith.constant 17 : index
    %c0_54 = arith.constant 0 : index
    %182 = vector.load %arg10[%c17, %c0_54] : memref<146x128xf32, #tpu.memory_space<vmem>>, vector<128x128xf32>
    %c96_i32_55 = arith.constant 96 : i32
    %183 = vector.broadcast %c96_i32_55 : i32 to vector<1x128xi32>
    %184 = arith.cmpi sge, %90, %183 : vector<1x128xi32>
    %c128_i32_56 = arith.constant 128 : i32
    %185 = vector.broadcast %c128_i32_56 : i32 to vector<1x128xi32>
    %186 = arith.cmpi slt, %90, %185 : vector<1x128xi32>
    %187 = arith.andi %184, %186 : vector<1x128xi1>
    %188 = arith.extui %187 : vector<1x128xi1> to vector<1x128xi32>
    %189 = arith.sitofp %188 : vector<1x128xi32> to vector<1x128xf32>
    %190 = vector.broadcast %81 : vector<128x1xf32> to vector<128x128xf32>
    %191 = vector.broadcast %189 : vector<1x128xf32> to vector<128x128xf32>
    %192 = arith.mulf %190, %191 : vector<128x128xf32>
    %193 = arith.mulf %182, %192 : vector<128x128xf32>
    %194 = arith.addf %181, %193 : vector<128x128xf32>
    %195 = arith.truncf %194 : vector<128x128xf32> to vector<128x128xbf16>
    %c18 = arith.constant 18 : index
    %c0_57 = arith.constant 0 : index
    %196 = vector.load %arg10[%c18, %c0_57] : memref<146x128xf32, #tpu.memory_space<vmem>>, vector<128x128xf32>
    %c0_i32_58 = arith.constant 0 : i32
    %197 = vector.broadcast %c0_i32_58 : i32 to vector<1x128xi32>
    %198 = arith.cmpi sge, %90, %197 : vector<1x128xi32>
    %c32_i32_59 = arith.constant 32 : i32
    %199 = vector.broadcast %c32_i32_59 : i32 to vector<1x128xi32>
    %200 = arith.cmpi slt, %90, %199 : vector<1x128xi32>
    %201 = arith.andi %198, %200 : vector<1x128xi1>
    %202 = arith.extui %201 : vector<1x128xi1> to vector<1x128xi32>
    %203 = arith.sitofp %202 : vector<1x128xi32> to vector<1x128xf32>
    %204 = arith.mulf %81, %89 : vector<128x1xf32>
    %205 = vector.broadcast %204 : vector<128x1xf32> to vector<128x128xf32>
    %206 = vector.broadcast %203 : vector<1x128xf32> to vector<128x128xf32>
    %207 = arith.mulf %205, %206 : vector<128x128xf32>
    %208 = arith.mulf %196, %207 : vector<128x128xf32>
    %209 = arith.truncf %208 : vector<128x128xf32> to vector<128x128xbf16>
    %210 = tpu.concatenate %144, %195, %209 in 1 : vector<128x128xbf16>, vector<128x128xbf16>, vector<128x128xbf16> -> vector<128x384xbf16>
    %c0_60 = arith.constant 0 : index
    %c0_61 = arith.constant 0 : index
    %c0_62 = arith.constant 0 : index
    %211 = vector.load %arg7[%c0_60, %c0_61, %c0_62] : memref<1x384x128xbf16, #tpu.memory_space<vmem>>, vector<1x384x128xbf16>
    %212 = vector.shape_cast %211 : vector<1x384x128xbf16> to vector<384x128xbf16>
    %cst_63 = arith.constant dense<0.000000e+00> : vector<128x128xf32>
    %213 = tpu.matmul %210, %212, %cst_63 {dimension_numbers = #tpu.dot_dimension_numbers<[1], [0], [0], [1], [0, 0, 1, 1], [], []>} : vector<128x384xbf16>, vector<384x128xbf16>, vector<128x128xf32> -> vector<128x128xf32>
    %214 = arith.addf %3, %213 : vector<128x128xf32>
    %c0_64 = arith.constant 0 : index
    %c0_65 = arith.constant 0 : index
    %215 = vector.load %arg9[%c0_64, %c0_65] : memref<128x128xf32, #tpu.memory_space<vmem>>, vector<128x128xf32>
    tpu.vector_store %arg9[%c0_64, %c0_65], %214 {strides = array<i32>} : memref<128x128xf32, #tpu.memory_space<vmem>>, vector<128x128xf32>,
    %c1_i32_66 = arith.constant 1 : i32
    %216 = arith.cmpi eq, %arg0, %c1_i32_66 : i32
    %217 = arith.extui %216 : i1 to i32
    %c0_i32_67 = arith.constant 0 : i32
    %218 = arith.cmpi ne, %217, %c0_i32_67 : i32
    scf.if %218 {
      %c0_68 = arith.constant 0 : index
      %c0_69 = arith.constant 0 : index
      %219 = vector.load %arg8[%c0_68, %c0_69] : memref<128x128xf32, #tpu.memory_space<vmem>>, vector<128x128xf32>
      tpu.vector_store %arg8[%c0_68, %c0_69], %214 {strides = array<i32>} : memref<128x128xf32, #tpu.memory_space<vmem>>, vector<128x128xf32>,
    } else {
    }
    return
  }
  func.func @transform_0(%arg0: i32) -> (i32, i32) {
    %c0_i32 = arith.constant 0 : i32
    %c0_i32_0 = arith.constant 0 : i32
    %c0_i32_1 = arith.constant 0 : i32
    return %c0_i32, %c0_i32_0 : i32, i32
  }
  func.func @transform_1(%arg0: i32) -> (i32, i32, i32) {
    %c0_i32 = arith.constant 0 : i32
    %c0_i32_0 = arith.constant 0 : i32
    %c0_i32_1 = arith.constant 0 : i32
    return %arg0, %c0_i32, %c0_i32_0 : i32, i32, i32
  }
  func.func @transform_2(%arg0: i32) -> (i32, i32, i32) {
    %c0_i32 = arith.constant 0 : i32
    %c0_i32_0 = arith.constant 0 : i32
    %c0_i32_1 = arith.constant 0 : i32
    return %arg0, %c0_i32, %c0_i32_0 : i32, i32, i32
  }
  func.func @transform_3(%arg0: i32) -> (i32, i32, i32) {
    %c0_i32 = arith.constant 0 : i32
    %c0_i32_0 = arith.constant 0 : i32
    %c0_i32_1 = arith.constant 0 : i32
    return %arg0, %c0_i32, %c0_i32_0 : i32, i32, i32
  }
  func.func @transform_4(%arg0: i32) -> (i32, i32, i32) {
    %c0_i32 = arith.constant 0 : i32
    %c0_i32_0 = arith.constant 0 : i32
    %c0_i32_1 = arith.constant 0 : i32
    return %arg0, %c0_i32, %c0_i32_0 : i32, i32, i32
  }
  func.func @transform_5(%arg0: i32) -> (i32, i32, i32) {
    %c0_i32 = arith.constant 0 : i32
    %c0_i32_0 = arith.constant 0 : i32
    %c0_i32_1 = arith.constant 0 : i32
    return %arg0, %c0_i32, %c0_i32_0 : i32, i32, i32
  }
  func.func @transform_6(%arg0: i32) -> (i32, i32, i32) {
    %c0_i32 = arith.constant 0 : i32
    %c0_i32_0 = arith.constant 0 : i32
    %c0_i32_1 = arith.constant 0 : i32
    return %arg0, %c0_i32, %c0_i32_0 : i32, i32, i32
  }
  func.func @transform_7(%arg0: i32) -> (i32, i32) {
    %c0_i32 = arith.constant 0 : i32
    %c0_i32_0 = arith.constant 0 : i32
    %c0_i32_1 = arith.constant 0 : i32
    return %c0_i32, %c0_i32_0 : i32, i32
  }
}

module attributes {stable_mosaic.version = 11 : i64} {
  func.func @_bn_relu_pw_kernel(%arg0: i32, %arg1: memref<128x128xf32, #tpu.memory_space<vmem>>, %arg2: memref<1x128xf32, #tpu.memory_space<vmem>>, %arg3: memref<1x128xf32, #tpu.memory_space<vmem>>, %arg4: memref<128x128xbf16, #tpu.memory_space<vmem>>, %arg5: memref<128x128xf32, #tpu.memory_space<vmem>>) attributes {dimension_semantics = [#tpu.dimension_semantics<arbitrary>], iteration_bounds = array<i64: 1>, scalar_prefetch = 0 : i64, scratch_operands = 0 : i64, tpu.core_type = #tpu.core_type<tc>, window_params = [{pipeline_mode = #tpu.pipeline_mode<synchronous>, transform_indices = @transform_0, window_bounds = array<i64: 128, 128>}, {pipeline_mode = #tpu.pipeline_mode<synchronous>, transform_indices = @transform_1, window_bounds = array<i64: 1, 128>}, {pipeline_mode = #tpu.pipeline_mode<synchronous>, transform_indices = @transform_2, window_bounds = array<i64: 1, 128>}, {pipeline_mode = #tpu.pipeline_mode<synchronous>, transform_indices = @transform_3, window_bounds = array<i64: 128, 128>}, {pipeline_mode = #tpu.pipeline_mode<synchronous>, transform_indices = @transform_4, window_bounds = array<i64: 128, 128>}]} {
    %c0 = arith.constant 0 : index
    %c0_0 = arith.constant 0 : index
    %0 = vector.load %arg1[%c0, %c0_0] : memref<128x128xf32, #tpu.memory_space<vmem>>, vector<128x128xf32>
    %cst = arith.constant dense<0.000000e+00> : vector<128xf32>
    %1 = vector.multi_reduction <add>, %0, %cst [0] : vector<128x128xf32> to vector<128xf32>
    %2 = vector.shape_cast %1 : vector<128xf32> to vector<1x128xf32>
    %cst_1 = arith.constant 7.812500e-03 : f32
    %3 = vector.broadcast %cst_1 : f32 to vector<1x128xf32>
    %4 = arith.mulf %2, %3 : vector<1x128xf32>
    %5 = arith.mulf %0, %0 : vector<128x128xf32>
    %cst_2 = arith.constant dense<0.000000e+00> : vector<128xf32>
    %6 = vector.multi_reduction <add>, %5, %cst_2 [0] : vector<128x128xf32> to vector<128xf32>
    %7 = vector.shape_cast %6 : vector<128xf32> to vector<1x128xf32>
    %cst_3 = arith.constant 7.812500e-03 : f32
    %8 = vector.broadcast %cst_3 : f32 to vector<1x128xf32>
    %9 = arith.mulf %7, %8 : vector<1x128xf32>
    %10 = arith.mulf %4, %4 : vector<1x128xf32>
    %11 = arith.subf %9, %10 : vector<1x128xf32>
    %cst_4 = arith.constant 0.000000e+00 : f32
    %12 = vector.broadcast %cst_4 : f32 to vector<1x128xf32>
    %13 = arith.maximumf %11, %12 : vector<1x128xf32>
    %c0_5 = arith.constant 0 : index
    %c0_6 = arith.constant 0 : index
    %14 = vector.load %arg2[%c0_5, %c0_6] : memref<1x128xf32, #tpu.memory_space<vmem>>, vector<1x128xf32>
    %cst_7 = arith.constant 9.99999974E-6 : f32
    %15 = vector.broadcast %cst_7 : f32 to vector<1x128xf32>
    %16 = arith.addf %13, %15 : vector<1x128xf32>
    %17 = math.rsqrt %16 : vector<1x128xf32>
    %18 = arith.mulf %14, %17 : vector<1x128xf32>
    %19 = vector.broadcast %18 : vector<1x128xf32> to vector<128x128xf32>
    %20 = arith.mulf %0, %19 : vector<128x128xf32>
    %c0_8 = arith.constant 0 : index
    %c0_9 = arith.constant 0 : index
    %21 = vector.load %arg3[%c0_8, %c0_9] : memref<1x128xf32, #tpu.memory_space<vmem>>, vector<1x128xf32>
    %22 = arith.mulf %4, %18 : vector<1x128xf32>
    %23 = arith.subf %21, %22 : vector<1x128xf32>
    %24 = vector.broadcast %23 : vector<1x128xf32> to vector<128x128xf32>
    %25 = arith.addf %20, %24 : vector<128x128xf32>
    %cst_10 = arith.constant 0.000000e+00 : f32
    %26 = vector.broadcast %cst_10 : f32 to vector<128x128xf32>
    %27 = arith.maximumf %25, %26 : vector<128x128xf32>
    %28 = arith.truncf %27 : vector<128x128xf32> to vector<128x128xbf16>
    %c0_11 = arith.constant 0 : index
    %c0_12 = arith.constant 0 : index
    %29 = vector.load %arg4[%c0_11, %c0_12] : memref<128x128xbf16, #tpu.memory_space<vmem>>, vector<128x128xbf16>
    %cst_13 = arith.constant dense<0.000000e+00> : vector<128x128xf32>
    %30 = tpu.matmul %28, %29, %cst_13 {dimension_numbers = #tpu.dot_dimension_numbers<[1], [0], [0], [1], [0, 0, 1, 1], [], []>} : vector<128x128xbf16>, vector<128x128xbf16>, vector<128x128xf32> -> vector<128x128xf32>
    %c0_14 = arith.constant 0 : index
    %c0_15 = arith.constant 0 : index
    %31 = vector.load %arg5[%c0_14, %c0_15] : memref<128x128xf32, #tpu.memory_space<vmem>>, vector<128x128xf32>
    tpu.vector_store %arg5[%c0_14, %c0_15], %30 {strides = array<i32>} : memref<128x128xf32, #tpu.memory_space<vmem>>, vector<128x128xf32>,
    return
  }
  func.func @transform_0(%arg0: i32) -> (i32, i32) {
    %c0_i32 = arith.constant 0 : i32
    %c0_i32_0 = arith.constant 0 : i32
    %c0_i32_1 = arith.constant 0 : i32
    return %c0_i32, %c0_i32_0 : i32, i32
  }
  func.func @transform_1(%arg0: i32) -> (i32, i32) {
    %c0_i32 = arith.constant 0 : i32
    %c0_i32_0 = arith.constant 0 : i32
    %c0_i32_1 = arith.constant 0 : i32
    return %c0_i32, %c0_i32_0 : i32, i32
  }
  func.func @transform_2(%arg0: i32) -> (i32, i32) {
    %c0_i32 = arith.constant 0 : i32
    %c0_i32_0 = arith.constant 0 : i32
    %c0_i32_1 = arith.constant 0 : i32
    return %c0_i32, %c0_i32_0 : i32, i32
  }
  func.func @transform_3(%arg0: i32) -> (i32, i32) {
    %c0_i32 = arith.constant 0 : i32
    %c0_i32_0 = arith.constant 0 : i32
    %c0_i32_1 = arith.constant 0 : i32
    return %c0_i32, %c0_i32_0 : i32, i32
  }
  func.func @transform_4(%arg0: i32) -> (i32, i32) {
    %c0_i32 = arith.constant 0 : i32
    %c0_i32_0 = arith.constant 0 : i32
    %c0_i32_1 = arith.constant 0 : i32
    return %c0_i32, %c0_i32_0 : i32, i32
  }
}

module attributes {stable_mosaic.version = 11 : i64} {
  func.func @_dense_block_kernel(%arg0: i32, %arg1: memref<32x128xf32, #tpu.memory_space<vmem>>, %arg2: memref<1x1x128xf32, #tpu.memory_space<vmem>>, %arg3: memref<1x1x128xf32, #tpu.memory_space<vmem>>, %arg4: memref<1x128x128xbf16, #tpu.memory_space<vmem>>, %arg5: memref<1x1x128xf32, #tpu.memory_space<vmem>>, %arg6: memref<1x1x128xf32, #tpu.memory_space<vmem>>, %arg7: memref<1x384x128xbf16, #tpu.memory_space<vmem>>, %arg8: memref<32x128xf32, #tpu.memory_space<vmem>>, %arg9: memref<32x128xf32, #tpu.memory_space<vmem>>, %arg10: memref<42x128xf32, #tpu.memory_space<vmem>>) attributes {dimension_semantics = [#tpu.dimension_semantics<arbitrary>], iteration_bounds = array<i64: 2>, scalar_prefetch = 0 : i64, scratch_operands = 2 : i64, tpu.core_type = #tpu.core_type<tc>, window_params = [{pipeline_mode = #tpu.pipeline_mode<synchronous>, transform_indices = @transform_0, window_bounds = array<i64: 32, 128>}, {transform_indices = @transform_1, window_bounds = array<i64: 1, 1, 128>}, {transform_indices = @transform_2, window_bounds = array<i64: 1, 1, 128>}, {transform_indices = @transform_3, window_bounds = array<i64: 1, 128, 128>}, {transform_indices = @transform_4, window_bounds = array<i64: 1, 1, 128>}, {transform_indices = @transform_5, window_bounds = array<i64: 1, 1, 128>}, {transform_indices = @transform_6, window_bounds = array<i64: 1, 384, 128>}, {pipeline_mode = #tpu.pipeline_mode<synchronous>, transform_indices = @transform_7, window_bounds = array<i64: 32, 128>}]} {
    %c0_i32 = arith.constant 0 : i32
    %0 = arith.cmpi eq, %arg0, %c0_i32 : i32
    %1 = arith.extui %0 : i1 to i32
    %c0_i32_0 = arith.constant 0 : i32
    %2 = arith.cmpi ne, %1, %c0_i32_0 : i32
    scf.if %2 {
      %219 = tpu.iota {dimensions = array<i32: 1>} : vector<1x128xi32>
      %c16_i32 = arith.constant 16 : i32
      %220 = vector.broadcast %c16_i32 : i32 to vector<1x128xi32>
      %221 = arith.cmpi slt, %219, %220 : vector<1x128xi32>
      %c0_68 = arith.constant 0 : index
      %c0_69 = arith.constant 0 : index
      %222 = vector.load %arg1[%c0_68, %c0_69] : memref<32x128xf32, #tpu.memory_space<vmem>>, vector<32x128xf32>
      %cst_70 = arith.constant 0.000000e+00 : f32
      %223 = vector.shape_cast %221 : vector<1x128xi1> to vector<1x128xi1>
      %224 = vector.broadcast %223 : vector<1x128xi1> to vector<32x128xi1>
      %225 = vector.broadcast %cst_70 : f32 to vector<32x128xf32>
      %226 = arith.select %224, %222, %225 : vector<32x128xi1>, vector<32x128xf32>
      %c0_71 = arith.constant 0 : index
      %c0_72 = arith.constant 0 : index
      %227 = vector.load %arg9[%c0_71, %c0_72] : memref<32x128xf32, #tpu.memory_space<vmem>>, vector<32x128xf32>
      tpu.vector_store %arg9[%c0_71, %c0_72], %226 {strides = array<i32>} : memref<32x128xf32, #tpu.memory_space<vmem>>, vector<32x128xf32>,
      %cst_73 = arith.constant 0.000000e+00 : f32
      %228 = vector.broadcast %cst_73 : f32 to vector<42x128xf32>
      %c0_74 = arith.constant 0 : index
      %c0_75 = arith.constant 0 : index
      %229 = vector.load %arg10[%c0_74, %c0_75] : memref<42x128xf32, #tpu.memory_space<vmem>>, vector<42x128xf32>
      tpu.vector_store %arg10[%c0_74, %c0_75], %228 {strides = array<i32>} : memref<42x128xf32, #tpu.memory_space<vmem>>, vector<42x128xf32>,
    } else {
    }
    %c0 = arith.constant 0 : index
    %c0_1 = arith.constant 0 : index
    %3 = vector.load %arg9[%c0, %c0_1] : memref<32x128xf32, #tpu.memory_space<vmem>>, vector<32x128xf32>
    %cst = arith.constant dense<0.000000e+00> : vector<128xf32>
    %4 = vector.multi_reduction <add>, %3, %cst [0] : vector<32x128xf32> to vector<128xf32>
    %5 = vector.shape_cast %4 : vector<128xf32> to vector<1x128xf32>
    %cst_2 = arith.constant 3.125000e-02 : f32
    %6 = vector.broadcast %cst_2 : f32 to vector<1x128xf32>
    %7 = arith.mulf %5, %6 : vector<1x128xf32>
    %8 = arith.mulf %3, %3 : vector<32x128xf32>
    %cst_3 = arith.constant dense<0.000000e+00> : vector<128xf32>
    %9 = vector.multi_reduction <add>, %8, %cst_3 [0] : vector<32x128xf32> to vector<128xf32>
    %10 = vector.shape_cast %9 : vector<128xf32> to vector<1x128xf32>
    %cst_4 = arith.constant 3.125000e-02 : f32
    %11 = vector.broadcast %cst_4 : f32 to vector<1x128xf32>
    %12 = arith.mulf %10, %11 : vector<1x128xf32>
    %13 = arith.mulf %7, %7 : vector<1x128xf32>
    %14 = arith.subf %12, %13 : vector<1x128xf32>
    %cst_5 = arith.constant 0.000000e+00 : f32
    %15 = vector.broadcast %cst_5 : f32 to vector<1x128xf32>
    %16 = arith.maximumf %14, %15 : vector<1x128xf32>
    %c0_6 = arith.constant 0 : index
    %c0_7 = arith.constant 0 : index
    %c0_8 = arith.constant 0 : index
    %17 = vector.load %arg2[%c0_6, %c0_7, %c0_8] : memref<1x1x128xf32, #tpu.memory_space<vmem>>, vector<1x1x128xf32>
    %18 = vector.shape_cast %17 : vector<1x1x128xf32> to vector<1x128xf32>
    %cst_9 = arith.constant 9.99999974E-6 : f32
    %19 = vector.broadcast %cst_9 : f32 to vector<1x128xf32>
    %20 = arith.addf %16, %19 : vector<1x128xf32>
    %21 = math.rsqrt %20 : vector<1x128xf32>
    %22 = arith.mulf %18, %21 : vector<1x128xf32>
    %23 = vector.broadcast %22 : vector<1x128xf32> to vector<32x128xf32>
    %24 = arith.mulf %3, %23 : vector<32x128xf32>
    %c0_10 = arith.constant 0 : index
    %c0_11 = arith.constant 0 : index
    %c0_12 = arith.constant 0 : index
    %25 = vector.load %arg3[%c0_10, %c0_11, %c0_12] : memref<1x1x128xf32, #tpu.memory_space<vmem>>, vector<1x1x128xf32>
    %26 = vector.shape_cast %25 : vector<1x1x128xf32> to vector<1x128xf32>
    %27 = arith.mulf %7, %22 : vector<1x128xf32>
    %28 = arith.subf %26, %27 : vector<1x128xf32>
    %29 = vector.broadcast %28 : vector<1x128xf32> to vector<32x128xf32>
    %30 = arith.addf %24, %29 : vector<32x128xf32>
    %cst_13 = arith.constant 0.000000e+00 : f32
    %31 = vector.broadcast %cst_13 : f32 to vector<32x128xf32>
    %32 = arith.maximumf %30, %31 : vector<32x128xf32>
    %33 = arith.truncf %32 : vector<32x128xf32> to vector<32x128xbf16>
    %c0_14 = arith.constant 0 : index
    %c0_15 = arith.constant 0 : index
    %c0_16 = arith.constant 0 : index
    %34 = vector.load %arg4[%c0_14, %c0_15, %c0_16] : memref<1x128x128xbf16, #tpu.memory_space<vmem>>, vector<1x128x128xbf16>
    %35 = vector.shape_cast %34 : vector<1x128x128xbf16> to vector<128x128xbf16>
    %cst_17 = arith.constant dense<0.000000e+00> : vector<32x128xf32>
    %36 = tpu.matmul %33, %35, %cst_17 {dimension_numbers = #tpu.dot_dimension_numbers<[1], [0], [0], [1], [0, 0, 1, 1], [], []>} : vector<32x128xbf16>, vector<128x128xbf16>, vector<32x128xf32> -> vector<32x128xf32>
    %cst_18 = arith.constant dense<0.000000e+00> : vector<128xf32>
    %37 = vector.multi_reduction <add>, %36, %cst_18 [0] : vector<32x128xf32> to vector<128xf32>
    %38 = vector.shape_cast %37 : vector<128xf32> to vector<1x128xf32>
    %cst_19 = arith.constant 3.125000e-02 : f32
    %39 = vector.broadcast %cst_19 : f32 to vector<1x128xf32>
    %40 = arith.mulf %38, %39 : vector<1x128xf32>
    %41 = arith.mulf %36, %36 : vector<32x128xf32>
    %cst_20 = arith.constant dense<0.000000e+00> : vector<128xf32>
    %42 = vector.multi_reduction <add>, %41, %cst_20 [0] : vector<32x128xf32> to vector<128xf32>
    %43 = vector.shape_cast %42 : vector<128xf32> to vector<1x128xf32>
    %cst_21 = arith.constant 3.125000e-02 : f32
    %44 = vector.broadcast %cst_21 : f32 to vector<1x128xf32>
    %45 = arith.mulf %43, %44 : vector<1x128xf32>
    %46 = arith.mulf %40, %40 : vector<1x128xf32>
    %47 = arith.subf %45, %46 : vector<1x128xf32>
    %cst_22 = arith.constant 0.000000e+00 : f32
    %48 = vector.broadcast %cst_22 : f32 to vector<1x128xf32>
    %49 = arith.maximumf %47, %48 : vector<1x128xf32>
    %c0_23 = arith.constant 0 : index
    %c0_24 = arith.constant 0 : index
    %c0_25 = arith.constant 0 : index
    %50 = vector.load %arg5[%c0_23, %c0_24, %c0_25] : memref<1x1x128xf32, #tpu.memory_space<vmem>>, vector<1x1x128xf32>
    %51 = vector.shape_cast %50 : vector<1x1x128xf32> to vector<1x128xf32>
    %cst_26 = arith.constant 9.99999974E-6 : f32
    %52 = vector.broadcast %cst_26 : f32 to vector<1x128xf32>
    %53 = arith.addf %49, %52 : vector<1x128xf32>
    %54 = math.rsqrt %53 : vector<1x128xf32>
    %55 = arith.mulf %51, %54 : vector<1x128xf32>
    %56 = vector.broadcast %55 : vector<1x128xf32> to vector<32x128xf32>
    %57 = arith.mulf %36, %56 : vector<32x128xf32>
    %c0_27 = arith.constant 0 : index
    %c0_28 = arith.constant 0 : index
    %c0_29 = arith.constant 0 : index
    %58 = vector.load %arg6[%c0_27, %c0_28, %c0_29] : memref<1x1x128xf32, #tpu.memory_space<vmem>>, vector<1x1x128xf32>
    %59 = vector.shape_cast %58 : vector<1x1x128xf32> to vector<1x128xf32>
    %60 = arith.mulf %40, %55 : vector<1x128xf32>
    %61 = arith.subf %59, %60 : vector<1x128xf32>
    %62 = vector.broadcast %61 : vector<1x128xf32> to vector<32x128xf32>
    %63 = arith.addf %57, %62 : vector<32x128xf32>
    %cst_30 = arith.constant 0.000000e+00 : f32
    %64 = vector.broadcast %cst_30 : f32 to vector<32x128xf32>
    %65 = arith.maximumf %63, %64 : vector<32x128xf32>
    %c5 = arith.constant 5 : index
    %c0_31 = arith.constant 0 : index
    %66 = vector.load %arg10[%c5, %c0_31] : memref<42x128xf32, #tpu.memory_space<vmem>>, vector<32x128xf32>
    tpu.vector_store %arg10[%c5, %c0_31], %65 {strides = array<i32>} : memref<42x128xf32, #tpu.memory_space<vmem>>, vector<32x128xf32>,
    %67 = tpu.iota {dimensions = array<i32: 0>} : vector<32x1xi32>
    %c3_i32 = arith.constant 3 : i32
    %68 = vector.broadcast %c3_i32 : i32 to vector<32x1xi32>
    %69 = arith.andi %67, %68 : vector<32x1xi32>
    %c15_i32 = arith.constant 15 : i32
    %70 = vector.broadcast %c15_i32 : i32 to vector<32x1xi32>
    %71 = arith.andi %67, %70 : vector<32x1xi32>
    %c2_i32 = arith.constant 2 : i32
    %72 = vector.broadcast %c2_i32 : i32 to vector<32x1xi32>
    %73 = arith.shrsi %71, %72 : vector<32x1xi32>
    %c1_i32 = arith.constant 1 : i32
    %74 = vector.broadcast %c1_i32 : i32 to vector<32x1xi32>
    %75 = arith.cmpi sge, %73, %74 : vector<32x1xi32>
    %76 = arith.extui %75 : vector<32x1xi1> to vector<32x1xi32>
    %77 = arith.sitofp %76 : vector<32x1xi32> to vector<32x1xf32>
    %c3_i32_32 = arith.constant 3 : i32
    %78 = vector.broadcast %c3_i32_32 : i32 to vector<32x1xi32>
    %79 = arith.cmpi slt, %73, %78 : vector<32x1xi32>
    %80 = arith.extui %79 : vector<32x1xi1> to vector<32x1xi32>
    %81 = arith.sitofp %80 : vector<32x1xi32> to vector<32x1xf32>
    %c1_i32_33 = arith.constant 1 : i32
    %82 = vector.broadcast %c1_i32_33 : i32 to vector<32x1xi32>
    %83 = arith.cmpi sge, %69, %82 : vector<32x1xi32>
    %84 = arith.extui %83 : vector<32x1xi1> to vector<32x1xi32>
    %85 = arith.sitofp %84 : vector<32x1xi32> to vector<32x1xf32>
    %c3_i32_34 = arith.constant 3 : i32
    %86 = vector.broadcast %c3_i32_34 : i32 to vector<32x1xi32>
    %87 = arith.cmpi slt, %69, %86 : vector<32x1xi32>
    %88 = arith.extui %87 : vector<32x1xi1> to vector<32x1xi32>
    %89 = arith.sitofp %88 : vector<32x1xi32> to vector<32x1xf32>
    %90 = tpu.iota {dimensions = array<i32: 1>} : vector<1x128xi32>
    %c0_35 = arith.constant 0 : index
    %c0_36 = arith.constant 0 : index
    %91 = vector.load %arg10[%c0_35, %c0_36] : memref<42x128xf32, #tpu.memory_space<vmem>>, vector<32x128xf32>
    %c0_i32_37 = arith.constant 0 : i32
    %92 = vector.broadcast %c0_i32_37 : i32 to vector<1x128xi32>
    %93 = arith.cmpi sge, %90, %92 : vector<1x128xi32>
    %c32_i32 = arith.constant 32 : i32
    %94 = vector.broadcast %c32_i32 : i32 to vector<1x128xi32>
    %95 = arith.cmpi slt, %90, %94 : vector<1x128xi32>
    %96 = arith.andi %93, %95 : vector<1x128xi1>
    %97 = arith.extui %96 : vector<1x128xi1> to vector<1x128xi32>
    %98 = arith.sitofp %97 : vector<1x128xi32> to vector<1x128xf32>
    %99 = arith.mulf %77, %85 : vector<32x1xf32>
    %100 = vector.broadcast %99 : vector<32x1xf32> to vector<32x128xf32>
    %101 = vector.broadcast %98 : vector<1x128xf32> to vector<32x128xf32>
    %102 = arith.mulf %100, %101 : vector<32x128xf32>
    %103 = arith.mulf %91, %102 : vector<32x128xf32>
    %c1 = arith.constant 1 : index
    %c0_38 = arith.constant 0 : index
    %104 = vector.load %arg10[%c1, %c0_38] : memref<42x128xf32, #tpu.memory_space<vmem>>, vector<32x128xf32>
    %c32_i32_39 = arith.constant 32 : i32
    %105 = vector.broadcast %c32_i32_39 : i32 to vector<1x128xi32>
    %106 = arith.cmpi sge, %90, %105 : vector<1x128xi32>
    %c64_i32 = arith.constant 64 : i32
    %107 = vector.broadcast %c64_i32 : i32 to vector<1x128xi32>
    %108 = arith.cmpi slt, %90, %107 : vector<1x128xi32>
    %109 = arith.andi %106, %108 : vector<1x128xi1>
    %110 = arith.extui %109 : vector<1x128xi1> to vector<1x128xi32>
    %111 = arith.sitofp %110 : vector<1x128xi32> to vector<1x128xf32>
    %112 = vector.broadcast %77 : vector<32x1xf32> to vector<32x128xf32>
    %113 = vector.broadcast %111 : vector<1x128xf32> to vector<32x128xf32>
    %114 = arith.mulf %112, %113 : vector<32x128xf32>
    %115 = arith.mulf %104, %114 : vector<32x128xf32>
    %116 = arith.addf %103, %115 : vector<32x128xf32>
    %c2 = arith.constant 2 : index
    %c0_40 = arith.constant 0 : index
    %117 = vector.load %arg10[%c2, %c0_40] : memref<42x128xf32, #tpu.memory_space<vmem>>, vector<32x128xf32>
    %c64_i32_41 = arith.constant 64 : i32
    %118 = vector.broadcast %c64_i32_41 : i32 to vector<1x128xi32>
    %119 = arith.cmpi sge, %90, %118 : vector<1x128xi32>
    %c96_i32 = arith.constant 96 : i32
    %120 = vector.broadcast %c96_i32 : i32 to vector<1x128xi32>
    %121 = arith.cmpi slt, %90, %120 : vector<1x128xi32>
    %122 = arith.andi %119, %121 : vector<1x128xi1>
    %123 = arith.extui %122 : vector<1x128xi1> to vector<1x128xi32>
    %124 = arith.sitofp %123 : vector<1x128xi32> to vector<1x128xf32>
    %125 = arith.mulf %77, %89 : vector<32x1xf32>
    %126 = vector.broadcast %125 : vector<32x1xf32> to vector<32x128xf32>
    %127 = vector.broadcast %124 : vector<1x128xf32> to vector<32x128xf32>
    %128 = arith.mulf %126, %127 : vector<32x128xf32>
    %129 = arith.mulf %117, %128 : vector<32x128xf32>
    %130 = arith.addf %116, %129 : vector<32x128xf32>
    %c4 = arith.constant 4 : index
    %c0_42 = arith.constant 0 : index
    %131 = vector.load %arg10[%c4, %c0_42] : memref<42x128xf32, #tpu.memory_space<vmem>>, vector<32x128xf32>
    %c96_i32_43 = arith.constant 96 : i32
    %132 = vector.broadcast %c96_i32_43 : i32 to vector<1x128xi32>
    %133 = arith.cmpi sge, %90, %132 : vector<1x128xi32>
    %c128_i32 = arith.constant 128 : i32
    %134 = vector.broadcast %c128_i32 : i32 to vector<1x128xi32>
    %135 = arith.cmpi slt, %90, %134 : vector<1x128xi32>
    %136 = arith.andi %133, %135 : vector<1x128xi1>
    %137 = arith.extui %136 : vector<1x128xi1> to vector<1x128xi32>
    %138 = arith.sitofp %137 : vector<1x128xi32> to vector<1x128xf32>
    %139 = vector.broadcast %85 : vector<32x1xf32> to vector<32x128xf32>
    %140 = vector.broadcast %138 : vector<1x128xf32> to vector<32x128xf32>
    %141 = arith.mulf %139, %140 : vector<32x128xf32>
    %142 = arith.mulf %131, %141 : vector<32x128xf32>
    %143 = arith.addf %130, %142 : vector<32x128xf32>
    %144 = arith.truncf %143 : vector<32x128xf32> to vector<32x128xbf16>
    %c5_44 = arith.constant 5 : index
    %c0_45 = arith.constant 0 : index
    %145 = vector.load %arg10[%c5_44, %c0_45] : memref<42x128xf32, #tpu.memory_space<vmem>>, vector<32x128xf32>
    %c0_i32_46 = arith.constant 0 : i32
    %146 = vector.broadcast %c0_i32_46 : i32 to vector<1x128xi32>
    %147 = arith.cmpi sge, %90, %146 : vector<1x128xi32>
    %c32_i32_47 = arith.constant 32 : i32
    %148 = vector.broadcast %c32_i32_47 : i32 to vector<1x128xi32>
    %149 = arith.cmpi slt, %90, %148 : vector<1x128xi32>
    %150 = arith.andi %147, %149 : vector<1x128xi1>
    %151 = arith.extui %150 : vector<1x128xi1> to vector<1x128xi32>
    %152 = arith.sitofp %151 : vector<1x128xi32> to vector<1x128xf32>
    %153 = vector.broadcast %152 : vector<1x128xf32> to vector<32x128xf32>
    %154 = arith.mulf %145, %153 : vector<32x128xf32>
    %c6 = arith.constant 6 : index
    %c0_48 = arith.constant 0 : index
    %155 = vector.load %arg10[%c6, %c0_48] : memref<42x128xf32, #tpu.memory_space<vmem>>, vector<32x128xf32>
    %c32_i32_49 = arith.constant 32 : i32
    %156 = vector.broadcast %c32_i32_49 : i32 to vector<1x128xi32>
    %157 = arith.cmpi sge, %90, %156 : vector<1x128xi32>
    %c64_i32_50 = arith.constant 64 : i32
    %158 = vector.broadcast %c64_i32_50 : i32 to vector<1x128xi32>
    %159 = arith.cmpi slt, %90, %158 : vector<1x128xi32>
    %160 = arith.andi %157, %159 : vector<1x128xi1>
    %161 = arith.extui %160 : vector<1x128xi1> to vector<1x128xi32>
    %162 = arith.sitofp %161 : vector<1x128xi32> to vector<1x128xf32>
    %163 = vector.broadcast %89 : vector<32x1xf32> to vector<32x128xf32>
    %164 = vector.broadcast %162 : vector<1x128xf32> to vector<32x128xf32>
    %165 = arith.mulf %163, %164 : vector<32x128xf32>
    %166 = arith.mulf %155, %165 : vector<32x128xf32>
    %167 = arith.addf %154, %166 : vector<32x128xf32>
    %c8 = arith.constant 8 : index
    %c0_51 = arith.constant 0 : index
    %168 = vector.load %arg10[%c8, %c0_51] : memref<42x128xf32, #tpu.memory_space<vmem>>, vector<32x128xf32>
    %c64_i32_52 = arith.constant 64 : i32
    %169 = vector.broadcast %c64_i32_52 : i32 to vector<1x128xi32>
    %170 = arith.cmpi sge, %90, %169 : vector<1x128xi32>
    %c96_i32_53 = arith.constant 96 : i32
    %171 = vector.broadcast %c96_i32_53 : i32 to vector<1x128xi32>
    %172 = arith.cmpi slt, %90, %171 : vector<1x128xi32>
    %173 = arith.andi %170, %172 : vector<1x128xi1>
    %174 = arith.extui %173 : vector<1x128xi1> to vector<1x128xi32>
    %175 = arith.sitofp %174 : vector<1x128xi32> to vector<1x128xf32>
    %176 = arith.mulf %81, %85 : vector<32x1xf32>
    %177 = vector.broadcast %176 : vector<32x1xf32> to vector<32x128xf32>
    %178 = vector.broadcast %175 : vector<1x128xf32> to vector<32x128xf32>
    %179 = arith.mulf %177, %178 : vector<32x128xf32>
    %180 = arith.mulf %168, %179 : vector<32x128xf32>
    %181 = arith.addf %167, %180 : vector<32x128xf32>
    %c9 = arith.constant 9 : index
    %c0_54 = arith.constant 0 : index
    %182 = vector.load %arg10[%c9, %c0_54] : memref<42x128xf32, #tpu.memory_space<vmem>>, vector<32x128xf32>
    %c96_i32_55 = arith.constant 96 : i32
    %183 = vector.broadcast %c96_i32_55 : i32 to vector<1x128xi32>
    %184 = arith.cmpi sge, %90, %183 : vector<1x128xi32>
    %c128_i32_56 = arith.constant 128 : i32
    %185 = vector.broadcast %c128_i32_56 : i32 to vector<1x128xi32>
    %186 = arith.cmpi slt, %90, %185 : vector<1x128xi32>
    %187 = arith.andi %184, %186 : vector<1x128xi1>
    %188 = arith.extui %187 : vector<1x128xi1> to vector<1x128xi32>
    %189 = arith.sitofp %188 : vector<1x128xi32> to vector<1x128xf32>
    %190 = vector.broadcast %81 : vector<32x1xf32> to vector<32x128xf32>
    %191 = vector.broadcast %189 : vector<1x128xf32> to vector<32x128xf32>
    %192 = arith.mulf %190, %191 : vector<32x128xf32>
    %193 = arith.mulf %182, %192 : vector<32x128xf32>
    %194 = arith.addf %181, %193 : vector<32x128xf32>
    %195 = arith.truncf %194 : vector<32x128xf32> to vector<32x128xbf16>
    %c10 = arith.constant 10 : index
    %c0_57 = arith.constant 0 : index
    %196 = vector.load %arg10[%c10, %c0_57] : memref<42x128xf32, #tpu.memory_space<vmem>>, vector<32x128xf32>
    %c0_i32_58 = arith.constant 0 : i32
    %197 = vector.broadcast %c0_i32_58 : i32 to vector<1x128xi32>
    %198 = arith.cmpi sge, %90, %197 : vector<1x128xi32>
    %c32_i32_59 = arith.constant 32 : i32
    %199 = vector.broadcast %c32_i32_59 : i32 to vector<1x128xi32>
    %200 = arith.cmpi slt, %90, %199 : vector<1x128xi32>
    %201 = arith.andi %198, %200 : vector<1x128xi1>
    %202 = arith.extui %201 : vector<1x128xi1> to vector<1x128xi32>
    %203 = arith.sitofp %202 : vector<1x128xi32> to vector<1x128xf32>
    %204 = arith.mulf %81, %89 : vector<32x1xf32>
    %205 = vector.broadcast %204 : vector<32x1xf32> to vector<32x128xf32>
    %206 = vector.broadcast %203 : vector<1x128xf32> to vector<32x128xf32>
    %207 = arith.mulf %205, %206 : vector<32x128xf32>
    %208 = arith.mulf %196, %207 : vector<32x128xf32>
    %209 = arith.truncf %208 : vector<32x128xf32> to vector<32x128xbf16>
    %210 = tpu.concatenate %144, %195, %209 in 1 : vector<32x128xbf16>, vector<32x128xbf16>, vector<32x128xbf16> -> vector<32x384xbf16>
    %c0_60 = arith.constant 0 : index
    %c0_61 = arith.constant 0 : index
    %c0_62 = arith.constant 0 : index
    %211 = vector.load %arg7[%c0_60, %c0_61, %c0_62] : memref<1x384x128xbf16, #tpu.memory_space<vmem>>, vector<1x384x128xbf16>
    %212 = vector.shape_cast %211 : vector<1x384x128xbf16> to vector<384x128xbf16>
    %cst_63 = arith.constant dense<0.000000e+00> : vector<32x128xf32>
    %213 = tpu.matmul %210, %212, %cst_63 {dimension_numbers = #tpu.dot_dimension_numbers<[1], [0], [0], [1], [0, 0, 1, 1], [], []>} : vector<32x384xbf16>, vector<384x128xbf16>, vector<32x128xf32> -> vector<32x128xf32>
    %214 = arith.addf %3, %213 : vector<32x128xf32>
    %c0_64 = arith.constant 0 : index
    %c0_65 = arith.constant 0 : index
    %215 = vector.load %arg9[%c0_64, %c0_65] : memref<32x128xf32, #tpu.memory_space<vmem>>, vector<32x128xf32>
    tpu.vector_store %arg9[%c0_64, %c0_65], %214 {strides = array<i32>} : memref<32x128xf32, #tpu.memory_space<vmem>>, vector<32x128xf32>,
    %c1_i32_66 = arith.constant 1 : i32
    %216 = arith.cmpi eq, %arg0, %c1_i32_66 : i32
    %217 = arith.extui %216 : i1 to i32
    %c0_i32_67 = arith.constant 0 : i32
    %218 = arith.cmpi ne, %217, %c0_i32_67 : i32
    scf.if %218 {
      %c0_68 = arith.constant 0 : index
      %c0_69 = arith.constant 0 : index
      %219 = vector.load %arg8[%c0_68, %c0_69] : memref<32x128xf32, #tpu.memory_space<vmem>>, vector<32x128xf32>
      tpu.vector_store %arg8[%c0_68, %c0_69], %214 {strides = array<i32>} : memref<32x128xf32, #tpu.memory_space<vmem>>, vector<32x128xf32>,
    } else {
    }
    return
  }
  func.func @transform_0(%arg0: i32) -> (i32, i32) {
    %c0_i32 = arith.constant 0 : i32
    %c0_i32_0 = arith.constant 0 : i32
    %c0_i32_1 = arith.constant 0 : i32
    return %c0_i32, %c0_i32_0 : i32, i32
  }
  func.func @transform_1(%arg0: i32) -> (i32, i32, i32) {
    %c0_i32 = arith.constant 0 : i32
    %c0_i32_0 = arith.constant 0 : i32
    %c0_i32_1 = arith.constant 0 : i32
    return %arg0, %c0_i32, %c0_i32_0 : i32, i32, i32
  }
  func.func @transform_2(%arg0: i32) -> (i32, i32, i32) {
    %c0_i32 = arith.constant 0 : i32
    %c0_i32_0 = arith.constant 0 : i32
    %c0_i32_1 = arith.constant 0 : i32
    return %arg0, %c0_i32, %c0_i32_0 : i32, i32, i32
  }
  func.func @transform_3(%arg0: i32) -> (i32, i32, i32) {
    %c0_i32 = arith.constant 0 : i32
    %c0_i32_0 = arith.constant 0 : i32
    %c0_i32_1 = arith.constant 0 : i32
    return %arg0, %c0_i32, %c0_i32_0 : i32, i32, i32
  }
  func.func @transform_4(%arg0: i32) -> (i32, i32, i32) {
    %c0_i32 = arith.constant 0 : i32
    %c0_i32_0 = arith.constant 0 : i32
    %c0_i32_1 = arith.constant 0 : i32
    return %arg0, %c0_i32, %c0_i32_0 : i32, i32, i32
  }
  func.func @transform_5(%arg0: i32) -> (i32, i32, i32) {
    %c0_i32 = arith.constant 0 : i32
    %c0_i32_0 = arith.constant 0 : i32
    %c0_i32_1 = arith.constant 0 : i32
    return %arg0, %c0_i32, %c0_i32_0 : i32, i32, i32
  }
  func.func @transform_6(%arg0: i32) -> (i32, i32, i32) {
    %c0_i32 = arith.constant 0 : i32
    %c0_i32_0 = arith.constant 0 : i32
    %c0_i32_1 = arith.constant 0 : i32
    return %arg0, %c0_i32, %c0_i32_0 : i32, i32, i32
  }
  func.func @transform_7(%arg0: i32) -> (i32, i32) {
    %c0_i32 = arith.constant 0 : i32
    %c0_i32_0 = arith.constant 0 : i32
    %c0_i32_1 = arith.constant 0 : i32
    return %c0_i32, %c0_i32_0 : i32, i32
  }
}

module attributes {stable_mosaic.version = 11 : i64} {
  func.func @_head_kernel(%arg0: i32, %arg1: memref<2x128xf32, #tpu.memory_space<vmem>>, %arg2: memref<1x128x128xbf16, #tpu.memory_space<vmem>>, %arg3: memref<1x1x128xf32, #tpu.memory_space<vmem>>, %arg4: memref<128x128xbf16, #tpu.memory_space<vmem>>, %arg5: memref<1x128xf32, #tpu.memory_space<vmem>>, %arg6: memref<2x128xf32, #tpu.memory_space<vmem>>) attributes {dimension_semantics = [#tpu.dimension_semantics<arbitrary>], iteration_bounds = array<i64: 1>, scalar_prefetch = 0 : i64, scratch_operands = 0 : i64, tpu.core_type = #tpu.core_type<tc>, window_params = [{pipeline_mode = #tpu.pipeline_mode<synchronous>, transform_indices = @transform_0, window_bounds = array<i64: 2, 128>}, {pipeline_mode = #tpu.pipeline_mode<synchronous>, transform_indices = @transform_1, window_bounds = array<i64: 1, 128, 128>}, {pipeline_mode = #tpu.pipeline_mode<synchronous>, transform_indices = @transform_2, window_bounds = array<i64: 1, 1, 128>}, {pipeline_mode = #tpu.pipeline_mode<synchronous>, transform_indices = @transform_3, window_bounds = array<i64: 128, 128>}, {pipeline_mode = #tpu.pipeline_mode<synchronous>, transform_indices = @transform_4, window_bounds = array<i64: 1, 128>}, {pipeline_mode = #tpu.pipeline_mode<synchronous>, transform_indices = @transform_5, window_bounds = array<i64: 2, 128>}]} {
    %c0 = arith.constant 0 : index
    %c0_0 = arith.constant 0 : index
    %0 = vector.load %arg1[%c0, %c0_0] : memref<2x128xf32, #tpu.memory_space<vmem>>, vector<2x128xf32>
    %1 = arith.truncf %0 : vector<2x128xf32> to vector<2x128xbf16>
    %c0_1 = arith.constant 0 : index
    %c0_2 = arith.constant 0 : index
    %c0_3 = arith.constant 0 : index
    %2 = vector.load %arg2[%c0_1, %c0_2, %c0_3] : memref<1x128x128xbf16, #tpu.memory_space<vmem>>, vector<1x128x128xbf16>
    %3 = vector.shape_cast %2 : vector<1x128x128xbf16> to vector<128x128xbf16>
    %cst = arith.constant dense<0.000000e+00> : vector<2x128xf32>
    %4 = tpu.matmul %1, %3, %cst {dimension_numbers = #tpu.dot_dimension_numbers<[1], [0], [0], [1], [0, 0, 1, 1], [], []>} : vector<2x128xbf16>, vector<128x128xbf16>, vector<2x128xf32> -> vector<2x128xf32>
    %c0_4 = arith.constant 0 : index
    %c0_5 = arith.constant 0 : index
    %c0_6 = arith.constant 0 : index
    %5 = vector.load %arg3[%c0_4, %c0_5, %c0_6] : memref<1x1x128xf32, #tpu.memory_space<vmem>>, vector<1x1x128xf32>
    %6 = vector.shape_cast %5 : vector<1x1x128xf32> to vector<1x128xf32>
    %7 = vector.broadcast %6 : vector<1x128xf32> to vector<2x128xf32>
    %8 = arith.addf %4, %7 : vector<2x128xf32>
    %cst_7 = arith.constant 0.000000e+00 : f32
    %9 = vector.broadcast %cst_7 : f32 to vector<2x128xf32>
    %10 = arith.maximumf %8, %9 : vector<2x128xf32>
    %11 = arith.truncf %10 : vector<2x128xf32> to vector<2x128xbf16>
    %c0_8 = arith.constant 0 : index
    %c0_9 = arith.constant 0 : index
    %12 = vector.load %arg4[%c0_8, %c0_9] : memref<128x128xbf16, #tpu.memory_space<vmem>>, vector<128x128xbf16>
    %cst_10 = arith.constant dense<0.000000e+00> : vector<2x128xf32>
    %13 = tpu.matmul %11, %12, %cst_10 {dimension_numbers = #tpu.dot_dimension_numbers<[1], [0], [0], [1], [0, 0, 1, 1], [], []>} : vector<2x128xbf16>, vector<128x128xbf16>, vector<2x128xf32> -> vector<2x128xf32>
    %c0_11 = arith.constant 0 : index
    %c0_12 = arith.constant 0 : index
    %14 = vector.load %arg5[%c0_11, %c0_12] : memref<1x128xf32, #tpu.memory_space<vmem>>, vector<1x128xf32>
    %15 = vector.broadcast %14 : vector<1x128xf32> to vector<2x128xf32>
    %16 = arith.addf %13, %15 : vector<2x128xf32>
    %c0_13 = arith.constant 0 : index
    %c0_14 = arith.constant 0 : index
    %17 = vector.load %arg6[%c0_13, %c0_14] : memref<2x128xf32, #tpu.memory_space<vmem>>, vector<2x128xf32>
    tpu.vector_store %arg6[%c0_13, %c0_14], %16 {strides = array<i32>} : memref<2x128xf32, #tpu.memory_space<vmem>>, vector<2x128xf32>,
    return
  }
  func.func @transform_0(%arg0: i32) -> (i32, i32) {
    %c0_i32 = arith.constant 0 : i32
    %c0_i32_0 = arith.constant 0 : i32
    %c0_i32_1 = arith.constant 0 : i32
    return %c0_i32, %c0_i32_0 : i32, i32
  }
  func.func @transform_1(%arg0: i32) -> (i32, i32, i32) {
    %c0_i32 = arith.constant 0 : i32
    %c0_i32_0 = arith.constant 0 : i32
    %c0_i32_1 = arith.constant 0 : i32
    %c0_i32_2 = arith.constant 0 : i32
    return %c0_i32, %c0_i32_0, %c0_i32_1 : i32, i32, i32
  }
  func.func @transform_2(%arg0: i32) -> (i32, i32, i32) {
    %c0_i32 = arith.constant 0 : i32
    %c0_i32_0 = arith.constant 0 : i32
    %c0_i32_1 = arith.constant 0 : i32
    %c0_i32_2 = arith.constant 0 : i32
    return %c0_i32, %c0_i32_0, %c0_i32_1 : i32, i32, i32
  }
  func.func @transform_3(%arg0: i32) -> (i32, i32) {
    %c0_i32 = arith.constant 0 : i32
    %c0_i32_0 = arith.constant 0 : i32
    %c0_i32_1 = arith.constant 0 : i32
    return %c0_i32, %c0_i32_0 : i32, i32
  }
  func.func @transform_4(%arg0: i32) -> (i32, i32) {
    %c0_i32 = arith.constant 0 : i32
    %c0_i32_0 = arith.constant 0 : i32
    %c0_i32_1 = arith.constant 0 : i32
    return %c0_i32, %c0_i32_0 : i32, i32
  }
  func.func @transform_5(%arg0: i32) -> (i32, i32) {
    %c0_i32 = arith.constant 0 : i32
    %c0_i32_0 = arith.constant 0 : i32
    %c0_i32_1 = arith.constant 0 : i32
    return %c0_i32, %c0_i32_0 : i32, i32
  }
}

module attributes {stable_mosaic.version = 11 : i64} {
  func.func @_bn_kernel(%arg0: i32, %arg1: memref<32x128xf32, #tpu.memory_space<vmem>>, %arg2: memref<1x128xf32, #tpu.memory_space<vmem>>, %arg3: memref<1x128xf32, #tpu.memory_space<vmem>>, %arg4: memref<32x128xf32, #tpu.memory_space<vmem>>) attributes {dimension_semantics = [#tpu.dimension_semantics<arbitrary>], iteration_bounds = array<i64: 1>, scalar_prefetch = 0 : i64, scratch_operands = 0 : i64, tpu.core_type = #tpu.core_type<tc>, window_params = [{pipeline_mode = #tpu.pipeline_mode<synchronous>, transform_indices = @transform_0, window_bounds = array<i64: 32, 128>}, {pipeline_mode = #tpu.pipeline_mode<synchronous>, transform_indices = @transform_1, window_bounds = array<i64: 1, 128>}, {pipeline_mode = #tpu.pipeline_mode<synchronous>, transform_indices = @transform_2, window_bounds = array<i64: 1, 128>}, {pipeline_mode = #tpu.pipeline_mode<synchronous>, transform_indices = @transform_3, window_bounds = array<i64: 32, 128>}]} {
    %c0 = arith.constant 0 : index
    %c0_0 = arith.constant 0 : index
    %0 = vector.load %arg1[%c0, %c0_0] : memref<32x128xf32, #tpu.memory_space<vmem>>, vector<32x128xf32>
    %cst = arith.constant dense<0.000000e+00> : vector<128xf32>
    %1 = vector.multi_reduction <add>, %0, %cst [0] : vector<32x128xf32> to vector<128xf32>
    %2 = vector.shape_cast %1 : vector<128xf32> to vector<1x128xf32>
    %cst_1 = arith.constant 3.125000e-02 : f32
    %3 = vector.broadcast %cst_1 : f32 to vector<1x128xf32>
    %4 = arith.mulf %2, %3 : vector<1x128xf32>
    %5 = arith.mulf %0, %0 : vector<32x128xf32>
    %cst_2 = arith.constant dense<0.000000e+00> : vector<128xf32>
    %6 = vector.multi_reduction <add>, %5, %cst_2 [0] : vector<32x128xf32> to vector<128xf32>
    %7 = vector.shape_cast %6 : vector<128xf32> to vector<1x128xf32>
    %cst_3 = arith.constant 3.125000e-02 : f32
    %8 = vector.broadcast %cst_3 : f32 to vector<1x128xf32>
    %9 = arith.mulf %7, %8 : vector<1x128xf32>
    %10 = arith.mulf %4, %4 : vector<1x128xf32>
    %11 = arith.subf %9, %10 : vector<1x128xf32>
    %cst_4 = arith.constant 0.000000e+00 : f32
    %12 = vector.broadcast %cst_4 : f32 to vector<1x128xf32>
    %13 = arith.maximumf %11, %12 : vector<1x128xf32>
    %c0_5 = arith.constant 0 : index
    %c0_6 = arith.constant 0 : index
    %14 = vector.load %arg2[%c0_5, %c0_6] : memref<1x128xf32, #tpu.memory_space<vmem>>, vector<1x128xf32>
    %cst_7 = arith.constant 9.99999974E-6 : f32
    %15 = vector.broadcast %cst_7 : f32 to vector<1x128xf32>
    %16 = arith.addf %13, %15 : vector<1x128xf32>
    %17 = math.rsqrt %16 : vector<1x128xf32>
    %18 = arith.mulf %14, %17 : vector<1x128xf32>
    %19 = vector.broadcast %18 : vector<1x128xf32> to vector<32x128xf32>
    %20 = arith.mulf %0, %19 : vector<32x128xf32>
    %c0_8 = arith.constant 0 : index
    %c0_9 = arith.constant 0 : index
    %21 = vector.load %arg3[%c0_8, %c0_9] : memref<1x128xf32, #tpu.memory_space<vmem>>, vector<1x128xf32>
    %22 = arith.mulf %4, %18 : vector<1x128xf32>
    %23 = arith.subf %21, %22 : vector<1x128xf32>
    %24 = vector.broadcast %23 : vector<1x128xf32> to vector<32x128xf32>
    %25 = arith.addf %20, %24 : vector<32x128xf32>
    %c0_10 = arith.constant 0 : index
    %c0_11 = arith.constant 0 : index
    %26 = vector.load %arg4[%c0_10, %c0_11] : memref<32x128xf32, #tpu.memory_space<vmem>>, vector<32x128xf32>
    tpu.vector_store %arg4[%c0_10, %c0_11], %25 {strides = array<i32>} : memref<32x128xf32, #tpu.memory_space<vmem>>, vector<32x128xf32>,
    return
  }
  func.func @transform_0(%arg0: i32) -> (i32, i32) {
    %c0_i32 = arith.constant 0 : i32
    %c0_i32_0 = arith.constant 0 : i32
    %c0_i32_1 = arith.constant 0 : i32
    return %c0_i32, %c0_i32_0 : i32, i32
  }
  func.func @transform_1(%arg0: i32) -> (i32, i32) {
    %c0_i32 = arith.constant 0 : i32
    %c0_i32_0 = arith.constant 0 : i32
    %c0_i32_1 = arith.constant 0 : i32
    return %c0_i32, %c0_i32_0 : i32, i32
  }
  func.func @transform_2(%arg0: i32) -> (i32, i32) {
    %c0_i32 = arith.constant 0 : i32
    %c0_i32_0 = arith.constant 0 : i32
    %c0_i32_1 = arith.constant 0 : i32
    return %c0_i32, %c0_i32_0 : i32, i32
  }
  func.func @transform_3(%arg0: i32) -> (i32, i32) {
    %c0_i32 = arith.constant 0 : i32
    %c0_i32_0 = arith.constant 0 : i32
    %c0_i32_1 = arith.constant 0 : i32
    return %c0_i32, %c0_i32_0 : i32, i32
  }
}

</mosaic_0001>

<llo_original>
// kernel: fconv_densenet_forward.6
$region0: #{fconv_densenet_forward.6}
  #allocation0 [shape = 'u32[]', space=smem, size = 0x4, offset = 0x4, fixed_abs, tag = 'smem constant byte address 0x4 - core index']
  #allocation1 [shape = 'u32[144,128]{1,0:T(1,128)}', space=vmem, size = 0x12000, scoped, tag = 'internal scratch']
  %s0 = inlined_call_operand.vmem [shape: bf16[648,128], index: 0, kind: input, shape index: {}]
  %s1 = inlined_call_operand.vmem [shape: bf16[128,128], index: 1, kind: input, shape index: {}]
  %s2 = inlined_call_operand.vmem [shape: f32[648,128], index: 2, kind: output, shape index: {}]
  %s3 = sld [smem:[#allocation0]]
  $region18: #{fconv_densenet_forward.6} parent=0
    _
  %s5 = ssub.s32 1, %s3
  %s6 = scalar_select 0, %s5, %s3
  // Predicated region
  $region2: #{fconv_densenet_forward.6} parent=0 // pred_check
    _
  $region3: #{fconv_densenet_forward.6} parent=0 // pred_check_branch
    %8 = sbr.rel (0) target = $region5
  $region4: #{fconv_densenet_forward.6} parent=0 // pred_region
    _
  $region5: #{fconv_densenet_forward.6} parent=0 // pred_fallthru
    _
  // Predicated region
  $region6: #{fconv_densenet_forward.6} parent=0 // pred_check
    _
  $region7: #{fconv_densenet_forward.6} parent=0 // pred_check_branch
    %10 = sbr.rel (0) target = $region9
  $region8: #{fconv_densenet_forward.6} parent=0 // pred_region
    _
  $region9: #{fconv_densenet_forward.6} parent=0 // pred_fallthru
    _
  %v12 = vld [vmem:[%s0] sm:$0xf]
  %v13 = vld [vmem:[%s0 + $0x4] sm:$0xf]
  %v14 = vld [vmem:[%s0 + $0x8] sm:$0xf]
  %v15 = vld [vmem:[%s0 + $0xc] sm:$0xf]
  %v16 = vld [vmem:[%s0 + $0x10] sm:$0xf]
  %v17 = vld [vmem:[%s0 + $0x14] sm:$0xf]
  %v18 = vld [vmem:[%s0 + $0x18] sm:$0xf]
  %v19 = vld [vmem:[%s0 + $0x1c] sm:$0xf]
  %v20 = vld [vmem:[%s0 + $0x20] sm:$0xf]
  %v21 = vld [vmem:[%s0 + $0x24] sm:$0xf]
  %v22 = vld [vmem:[%s0 + $0x28] sm:$0xf]
  %v23 = vld [vmem:[%s0 + $0x2c] sm:$0xf]
  %v24 = vld [vmem:[%s0 + $0x30] sm:$0xf]
  %v25 = vld [vmem:[%s0 + $0x34] sm:$0xf]
  %v26 = vld [vmem:[%s0 + $0x38] sm:$0xf]
  %v27 = vld [vmem:[%s0 + $0x3c] sm:$0xf]
  %v28 = vld [vmem:[%s0 + $0x40] sm:$0xf]
  %v29 = vld [vmem:[%s0 + $0x44] sm:$0xf]
  %v30 = vld [vmem:[%s0 + $0x48] sm:$0xf]
  %v31 = vld [vmem:[%s0 + $0x4c] sm:$0xf]
  %v32 = vld [vmem:[%s0 + $0x50] sm:$0xf]
  %v33 = vld [vmem:[%s0 + $0x54] sm:$0xf]
  %v34 = vld [vmem:[%s0 + $0x58] sm:$0xf]
  %v35 = vld [vmem:[%s0 + $0x5c] sm:$0xf]
  %v36 = vld [vmem:[%s0 + $0x60] sm:$0xf]
  %v37 = vld [vmem:[%s0 + $0x64] sm:$0xf]
  %v38 = vld [vmem:[%s0 + $0x68] sm:$0xf]
  %v39 = vld [vmem:[%s0 + $0x6c] sm:$0xf]
  %v40 = vld [vmem:[%s0 + $0x70] sm:$0xf]
  %v41 = vld [vmem:[%s0 + $0x74] sm:$0xf]
  %v42 = vld [vmem:[%s0 + $0x78] sm:$0xf]
  %v43 = vld [vmem:[%s0 + $0x7c] sm:$0xf]
  %v44 = vld [vmem:[%s0 + $0x80] sm:$0xf]
  %v45 = vld [vmem:[%s0 + $0x84] sm:$0xf]
  %v46 = vld [vmem:[%s0 + $0x88] sm:$0xf]
  %v47 = vld [vmem:[%s0 + $0x8c] sm:$0xf]
  %v48 = vld [vmem:[%s0 + $0x90] sm:$0xf]
  %v49 = vld [vmem:[%s0 + $0x94] sm:$0xf]
  %v50 = vld [vmem:[%s0 + $0x98] sm:$0xf]
  %v51 = vld [vmem:[%s0 + $0x9c] sm:$0xf]
  %v52 = vld [vmem:[%s0 + $0xa0] sm:$0xf]
  %v53 = vld [vmem:[%s0 + $0xa4] sm:$0xf]
  %v54 = vld [vmem:[%s0 + $0xa8] sm:$0xf]
  %v55 = vld [vmem:[%s0 + $0xac] sm:$0xf]
  %v56 = vld [vmem:[%s0 + $0xb0] sm:$0xf]
  %v57 = vld [vmem:[%s0 + $0xb4] sm:$0xf]
  %v58 = vld [vmem:[%s0 + $0xb8] sm:$0xf]
  %v59 = vld [vmem:[%s0 + $0xbc] sm:$0xf]
  %v60 = vld [vmem:[%s0 + $0xc0] sm:$0xf]
  %v61 = vld [vmem:[%s0 + $0xc4] sm:$0xf]
  %v62 = vld [vmem:[%s0 + $0xc8] sm:$0xf]
  %v63 = vld [vmem:[%s0 + $0xcc] sm:$0xf]
  %v64 = vld [vmem:[%s0 + $0xd0] sm:$0xf]
  %v65 = vld [vmem:[%s0 + $0xd4] sm:$0xf]
  %v66 = vld [vmem:[%s0 + $0xd8] sm:$0xf]
  %v67 = vld [vmem:[%s0 + $0xdc] sm:$0xf]
  %v68 = vld [vmem:[%s0 + $0xe0] sm:$0xf]
  %v69 = vld [vmem:[%s0 + $0xe4] sm:$0xf]
  %v70 = vld [vmem:[%s0 + $0xe8] sm:$0xf]
  %v71 = vld [vmem:[%s0 + $0xec] sm:$0xf]
  %v72 = vld [vmem:[%s0 + $0xf0] sm:$0xf]
  %v73 = vld [vmem:[%s0 + $0xf4] sm:$0xf]
  %v74 = vld [vmem:[%s0 + $0xf8] sm:$0xf]
  %v75 = vld [vmem:[%s0 + $0xfc] sm:$0xf]
  %v76 = vld [vmem:[%s0 + $0x100] sm:$0xf]
  %v77 = vld [vmem:[%s0 + $0x104] sm:$0xf]
  %v78 = vld [vmem:[%s0 + $0x108] sm:$0xf]
  %v79 = vld [vmem:[%s0 + $0x10c] sm:$0xf]
  %v80 = vld [vmem:[%s0 + $0x110] sm:$0xf]
  %v81 = vld [vmem:[%s0 + $0x114] sm:$0xf]
  %v82 = vld [vmem:[%s0 + $0x118] sm:$0xf]
  %v83 = vld [vmem:[%s0 + $0x11c] sm:$0xf]
  %v84 = vld [vmem:[%s0 + $0x120] sm:$0xf]
  %v85 = vld [vmem:[%s0 + $0x124] sm:$0xf]
  %v86 = vld [vmem:[%s0 + $0x128] sm:$0xf]
  %v87 = vld [vmem:[%s0 + $0x12c] sm:$0xf]
  %v88 = vld [vmem:[%s0 + $0x130] sm:$0xf]
  %v89 = vld [vmem:[%s0 + $0x134] sm:$0xf]
  %v90 = vld [vmem:[%s0 + $0x138] sm:$0xf]
  %v91 = vld [vmem:[%s0 + $0x13c] sm:$0xf]
  %v92 = vld [vmem:[%s0 + $0x140] sm:$0xf]
  %v93 = vld [vmem:[%s1] sm:$0xf]
  %v94 = vld [vmem:[%s1 + $0x4] sm:$0xf]
  %v95 = vld [vmem:[%s1 + $0x8] sm:$0xf]
  %v96 = vld [vmem:[%s1 + $0xc] sm:$0xf]
  %v97 = vld [vmem:[%s1 + $0x10] sm:$0xf]
  %v98 = vld [vmem:[%s1 + $0x14] sm:$0xf]
  %v99 = vld [vmem:[%s1 + $0x18] sm:$0xf]
  %v100 = vld [vmem:[%s1 + $0x1c] sm:$0xf]
  %v101 = vld [vmem:[%s1 + $0x20] sm:$0xf]
  %v102 = vld [vmem:[%s1 + $0x24] sm:$0xf]
  %v103 = vld [vmem:[%s1 + $0x28] sm:$0xf]
  %v104 = vld [vmem:[%s1 + $0x2c] sm:$0xf]
  %v105 = vld [vmem:[%s1 + $0x30] sm:$0xf]
  %v106 = vld [vmem:[%s1 + $0x34] sm:$0xf]
  %v107 = vld [vmem:[%s1 + $0x38] sm:$0xf]
  %v108 = vld [vmem:[%s1 + $0x3c] sm:$0xf]
  %v190 = vunpack.c.l.b16 %v12
  %v191 = vunpack.c.l.b16 %v13
  %v192 = vunpack.c.l.b16 %v14
  %v193 = vunpack.c.l.b16 %v15
  %v194 = vunpack.c.l.b16 %v16
  %v195 = vunpack.c.l.b16 %v17
  %v196 = vunpack.c.l.b16 %v18
  %v197 = vunpack.c.l.b16 %v19
  %v198 = vunpack.c.l.b16 %v20
  %v199 = vunpack.c.l.b16 %v21
  %v200 = vunpack.c.l.b16 %v22
  %v201 = vunpack.c.l.b16 %v23
  %v202 = vunpack.c.l.b16 %v24
  %v203 = vunpack.c.l.b16 %v25
  %v204 = vunpack.c.l.b16 %v26
  %v205 = vunpack.c.l.b16 %v27
  %v206 = vunpack.c.l.b16 %v28
  %v207 = vunpack.c.l.b16 %v29
  %v208 = vunpack.c.l.b16 %v30
  %v209 = vunpack.c.l.b16 %v31
  %v210 = vunpack.c.l.b16 %v32
  %v211 = vunpack.c.l.b16 %v33
  %v212 = vunpack.c.l.b16 %v34
  %v213 = vunpack.c.l.b16 %v35
  %v214 = vunpack.c.l.b16 %v36
  %v215 = vunpack.c.l.b16 %v37
  %v216 = vunpack.c.l.b16 %v38
  %v217 = vunpack.c.l.b16 %v39
  %v218 = vunpack.c.l.b16 %v40
  %v219 = vunpack.c.l.b16 %v41
  %v220 = vunpack.c.l.b16 %v42
  %v221 = vunpack.c.l.b16 %v43
  %v222 = vunpack.c.l.b16 %v44
  %v223 = vunpack.c.l.b16 %v45
  %v224 = vunpack.c.l.b16 %v46
  %v225 = vunpack.c.l.b16 %v47
  %v226 = vunpack.c.l.b16 %v48
  %v227 = vunpack.c.l.b16 %v49
  %v228 = vunpack.c.l.b16 %v50
  %v229 = vunpack.c.l.b16 %v51
  %v230 = vunpack.c.l.b16 %v52
  %v231 = vunpack.c.l.b16 %v53
  %v232 = vunpack.c.l.b16 %v54
  %v233 = vunpack.c.l.b16 %v55
  %v234 = vunpack.c.l.b16 %v56
  %v235 = vunpack.c.l.b16 %v57
  %v236 = vunpack.c.l.b16 %v58
  %v237 = vunpack.c.l.b16 %v59
  %v238 = vunpack.c.l.b16 %v60
  %v239 = vunpack.c.l.b16 %v61
  %v240 = vunpack.c.l.b16 %v62
  %v241 = vunpack.c.l.b16 %v63
  %v242 = vunpack.c.l.b16 %v64
  %v243 = vunpack.c.l.b16 %v65
  %v244 = vunpack.c.l.b16 %v66
  %v245 = vunpack.c.l.b16 %v67
  %v246 = vunpack.c.l.b16 %v68
  %v247 = vunpack.c.l.b16 %v69
  %v248 = vunpack.c.l.b16 %v70
  %v249 = vunpack.c.l.b16 %v71
  %v250 = vunpack.c.l.b16 %v72
  %v251 = vunpack.c.l.b16 %v73
  %v252 = vunpack.c.l.b16 %v74
  %v253 = vunpack.c.l.b16 %v75
  %v254 = vunpack.c.l.b16 %v76
  %v255 = vunpack.c.l.b16 %v77
  %v256 = vunpack.c.l.b16 %v78
  %v257 = vunpack.c.l.b16 %v79
  %v258 = vunpack.c.l.b16 %v80
  %v259 = vunpack.c.l.b16 %v81
  %v260 = vunpack.c.l.b16 %v82
  %v261 = vunpack.c.l.b16 %v83
  %v262 = vunpack.c.l.b16 %v84
  %v263 = vunpack.c.l.b16 %v85
  %v264 = vunpack.c.l.b16 %v86
  %v265 = vunpack.c.l.b16 %v87
  %v266 = vunpack.c.l.b16 %v88
  %v267 = vunpack.c.l.b16 %v89
  %v268 = vunpack.c.l.b16 %v90
  %v269 = vunpack.c.l.b16 %v91
  %v270 = vunpack.c.l.b16 %v92
  %v271 = vpack.c.b16 %v191, %v190
  %v272 = vpack.c.b16 %v193, %v192
  %v273 = vpack.c.b16 %v195, %v194
  %v274 = vpack.c.b16 %v197, %v196
  %v275 = vpack.c.b16 %v199, %v198
  %v276 = vpack.c.b16 %v201, %v200
  %v277 = vpack.c.b16 %v203, %v202
  %v278 = vpack.c.b16 %v205, %v204
  %v279 = vpack.c.b16 %v207, %v206
  %v280 = vpack.c.b16 %v209, %v208
  %v281 = vpack.c.b16 %v211, %v210
  %v282 = vpack.c.b16 %v213, %v212
  %v283 = vpack.c.b16 %v215, %v214
  %v284 = vpack.c.b16 %v217, %v216
  %v285 = vpack.c.b16 %v219, %v218
  %v286 = vpack.c.b16 %v221, %v220
  %v287 = vpack.c.b16 %v223, %v222
  %v288 = vpack.c.b16 %v225, %v224
  %v289 = vpack.c.b16 %v227, %v226
  %v290 = vpack.c.b16 %v229, %v228
  %v291 = vpack.c.b16 %v231, %v230
  %v292 = vpack.c.b16 %v233, %v232
  %v293 = vpack.c.b16 %v235, %v234
  %v294 = vpack.c.b16 %v237, %v236
  %v295 = vpack.c.b16 %v239, %v238
  %v296 = vpack.c.b16 %v241, %v240
  %v297 = vpack.c.b16 %v243, %v242
  %v298 = vpack.c.b16 %v245, %v244
  %v299 = vpack.c.b16 %v247, %v246
  %v300 = vpack.c.b16 %v249, %v248
  %v301 = vpack.c.b16 %v251, %v250
  %v302 = vpack.c.b16 %v253, %v252
  %v303 = vpack.c.b16 %v255, %v254
  %v304 = vpack.c.b16 %v257, %v256
  %v305 = vpack.c.b16 %v259, %v258
  %v306 = vpack.c.b16 %v261, %v260
  %v307 = vpack.c.b16 %v263, %v262
  %v308 = vpack.c.b16 %v265, %v264
  %v309 = vpack.c.b16 %v267, %v266
  %v310 = vpack.c.b16 %v269, %v268
  %v311 = vpack.c.b16 %v270, %v270
  %v369 = vunpack.c.l.b16 %v93
  %v370 = vunpack.c.l.b16 %v94
  %v371 = vunpack.c.l.b16 %v95
  %v372 = vunpack.c.l.b16 %v96
  %v373 = vunpack.c.l.b16 %v97
  %v374 = vunpack.c.l.b16 %v98
  %v375 = vunpack.c.l.b16 %v99
  %v376 = vunpack.c.l.b16 %v100
  %v377 = vunpack.c.l.b16 %v101
  %v378 = vunpack.c.l.b16 %v102
  %v379 = vunpack.c.l.b16 %v103
  %v380 = vunpack.c.l.b16 %v104
  %v381 = vunpack.c.l.b16 %v105
  %v382 = vunpack.c.l.b16 %v106
  %v383 = vunpack.c.l.b16 %v107
  %v384 = vunpack.c.l.b16 %v108
  %v385 = vpack.c.b16 %v370, %v369
  %v386 = vpack.c.b16 %v372, %v371
  %v387 = vpack.c.b16 %v374, %v373
  %v388 = vpack.c.b16 %v376, %v375
  %v389 = vpack.c.b16 %v378, %v377
  %v390 = vpack.c.b16 %v380, %v379
  %v391 = vpack.c.b16 %v382, %v381
  %v392 = vpack.c.b16 %v384, %v383
  %401 = vmatprep.subr.bf16.mxu0 0
  %402 = vmatpush1.bf16.msra.mxu0 %v385
  %403 = vmatprep.subr.bf16.mxu0 0
  %404 = vmatpush1.bf16.msra.mxu0 %v386
  %405 = vmatprep.subr.bf16.mxu0 0
  %406 = vmatpush1.bf16.msra.mxu0 %v387
  %407 = vmatprep.subr.bf16.mxu0 0
  %408 = vmatpush1.bf16.msra.mxu0 %v388
  %409 = vmatprep.subr.bf16.mxu0 0
  %410 = vmatpush1.bf16.msra.mxu0 %v389
  %411 = vmatprep.subr.bf16.mxu0 0
  %412 = vmatpush1.bf16.msra.mxu0 %v390
  %413 = vmatprep.subr.bf16.mxu0 0
  %414 = vmatpush1.bf16.msra.mxu0 %v391
  %415 = vmatprep.subr.bf16.mxu0 0
  %416 = vmatpush1.bf16.msra.mxu0 %v392
  %417 = vmatprep.subr.bf16.mxu0 0
  %418 = vmatpush1.bf16.msra.mxu0 0
  %419 = vmatprep.subr.bf16.mxu0 0
  %420 = vmatpush1.bf16.msra.mxu0 0
  %421 = vmatprep.subr.bf16.mxu0 0
  %422 = vmatpush1.bf16.msra.mxu0 0
  %423 = vmatprep.subr.bf16.mxu0 0
  %424 = vmatpush1.bf16.msra.mxu0 0
  %425 = vmatprep.subr.bf16.mxu0 0
  %426 = vmatpush1.bf16.msra.mxu0 0
  %427 = vmatprep.subr.bf16.mxu0 0
  %428 = vmatpush1.bf16.msra.mxu0 0
  %429 = vmatprep.subr.bf16.mxu0 0
  %430 = vmatpush1.bf16.msra.mxu0 0
  %431 = vmatprep.subr.bf16.mxu0 0
  %432 = vmatpush1.bf16.msra.mxu0 0
  %433 = vmatprep.mubr.bf16.mxu0 0
  %434 = vmatmul.mubr.bf16.gmra.mrb[0].mxu0 %v271
  %v435 = vpop.f32.mrb[0].mxu0
  %v436 = vadd.f32 0.0, %v435
  %v437 = vpop.f32.mrb[0].mxu0
  %v438 = vpop.f32.mrb[0].mxu0
  %v439 = vadd.f32 0.0, %v438
  %v440 = vpop.f32.mrb[0].mxu0
  %441 = vmatprep.mubr.bf16.mxu0 0
  %442 = vmatmul.mubr.bf16.gmra.mrb[0].mxu0 %v272
  %v443 = vpop.f32.mrb[0].mxu0
  %v444 = vadd.f32 0.0, %v443
  %v445 = vpop.f32.mrb[0].mxu0
  %v446 = vpop.f32.mrb[0].mxu0
  %v447 = vadd.f32 0.0, %v446
  %v448 = vpop.f32.mrb[0].mxu0
  %449 = vmatprep.mubr.bf16.mxu0 0
  %450 = vmatmul.mubr.bf16.gmra.mrb[0].mxu0 %v273
  %v451 = vpop.f32.mrb[0].mxu0
  %v452 = vadd.f32 0.0, %v451
  %v453 = vpop.f32.mrb[0].mxu0
  %v454 = vpop.f32.mrb[0].mxu0
  %v455 = vadd.f32 0.0, %v454
  %v456 = vpop.f32.mrb[0].mxu0
  %457 = vmatprep.mubr.bf16.mxu0 0
  %458 = vmatmul.mubr.bf16.gmra.mrb[0].mxu0 %v274
  %v459 = vpop.f32.mrb[0].mxu0
  %v460 = vadd.f32 0.0, %v459
  %v461 = vpop.f32.mrb[0].mxu0
  %v462 = vpop.f32.mrb[0].mxu0
  %v463 = vadd.f32 0.0, %v462
  %v464 = vpop.f32.mrb[0].mxu0
  %465 = vmatprep.mubr.bf16.mxu0 0
  %466 = vmatmul.mubr.bf16.gmra.mrb[0].mxu0 %v275
  %v467 = vpop.f32.mrb[0].mxu0
  %v468 = vadd.f32 0.0, %v467
  %v469 = vpop.f32.mrb[0].mxu0
  %v470 = vpop.f32.mrb[0].mxu0
  %v471 = vadd.f32 0.0, %v470
  %v472 = vpop.f32.mrb[0].mxu0
  %473 = vmatprep.mubr.bf16.mxu0 0
  %474 = vmatmul.mubr.bf16.gmra.mrb[0].mxu0 %v276
  %v475 = vpop.f32.mrb[0].mxu0
  %v476 = vadd.f32 0.0, %v475
  %v477 = vpop.f32.mrb[0].mxu0
  %v478 = vpop.f32.mrb[0].mxu0
  %v479 = vadd.f32 0.0, %v478
  %v480 = vpop.f32.mrb[0].mxu0
  %481 = vmatprep.mubr.bf16.mxu0 0
  %482 = vmatmul.mubr.bf16.gmra.mrb[0].mxu0 %v277
  %v483 = vpop.f32.mrb[0].mxu0
  %v484 = vadd.f32 0.0, %v483
  %v485 = vpop.f32.mrb[0].mxu0
  %v486 = vpop.f32.mrb[0].mxu0
  %v487 = vadd.f32 0.0, %v486
  %v488 = vpop.f32.mrb[0].mxu0
  %489 = vmatprep.mubr.bf16.mxu0 0
  %490 = vmatmul.mubr.bf16.gmra.mrb[0].mxu0 %v278
  %v491 = vpop.f32.mrb[0].mxu0
  %v492 = vadd.f32 0.0, %v491
  %v493 = vpop.f32.mrb[0].mxu0
  %v494 = vpop.f32.mrb[0].mxu0
  %v495 = vadd.f32 0.0, %v494
  %v496 = vpop.f32.mrb[0].mxu0
  %497 = vmatprep.mubr.bf16.mxu0 0
  %498 = vmatmul.mubr.bf16.gmra.mrb[0].mxu0 %v279
  %v499 = vpop.f32.mrb[0].mxu0
  %v500 = vadd.f32 0.0, %v499
  %v501 = vpop.f32.mrb[0].mxu0
  %v502 = vpop.f32.mrb[0].mxu0
  %v503 = vadd.f32 0.0, %v502
  %v504 = vpop.f32.mrb[0].mxu0
  %505 = vmatprep.mubr.bf16.mxu0 0
  %506 = vmatmul.mubr.bf16.gmra.mrb[0].mxu0 %v280
  %v507 = vpop.f32.mrb[0].mxu0
  %v508 = vadd.f32 0.0, %v507
  %v509 = vpop.f32.mrb[0].mxu0
  %v510 = vpop.f32.mrb[0].mxu0
  %v511 = vadd.f32 0.0, %v510
  %v512 = vpop.f32.mrb[0].mxu0
  %513 = vmatprep.mubr.bf16.mxu0 0
  %514 = vmatmul.mubr.bf16.gmra.mrb[0].mxu0 %v281
  %v515 = vpop.f32.mrb[0].mxu0
  %v516 = vadd.f32 0.0, %v515
  %v517 = vpop.f32.mrb[0].mxu0
  %v518 = vpop.f32.mrb[0].mxu0
  %v519 = vadd.f32 0.0, %v518
  %v520 = vpop.f32.mrb[0].mxu0
  %521 = vmatprep.mubr.bf16.mxu0 0
  %522 = vmatmul.mubr.bf16.gmra.mrb[0].mxu0 %v282
  %v523 = vpop.f32.mrb[0].mxu0
  %v524 = vadd.f32 0.0, %v523
  %v525 = vpop.f32.mrb[0].mxu0
  %v526 = vpop.f32.mrb[0].mxu0
  %v527 = vadd.f32 0.0, %v526
  %v528 = vpop.f32.mrb[0].mxu0
  %529 = vmatprep.mubr.bf16.mxu0 0
  %530 = vmatmul.mubr.bf16.gmra.mrb[0].mxu0 %v283
  %v531 = vpop.f32.mrb[0].mxu0
  %v532 = vadd.f32 0.0, %v531
  %v533 = vpop.f32.mrb[0].mxu0
  %v534 = vpop.f32.mrb[0].mxu0
  %v535 = vadd.f32 0.0, %v534
  %v536 = vpop.f32.mrb[0].mxu0
  %537 = vmatprep.mubr.bf16.mxu0 0
  %538 = vmatmul.mubr.bf16.gmra.mrb[0].mxu0 %v284
  %v539 = vpop.f32.mrb[0].mxu0
  %v540 = vadd.f32 0.0, %v539
  %v541 = vpop.f32.mrb[0].mxu0
  %v542 = vpop.f32.mrb[0].mxu0
  %v543 = vadd.f32 0.0, %v542
  %v544 = vpop.f32.mrb[0].mxu0
  %545 = vmatprep.mubr.bf16.mxu0 0
  %546 = vmatmul.mubr.bf16.gmra.mrb[0].mxu0 %v285
  %v547 = vpop.f32.mrb[0].mxu0
  %v548 = vadd.f32 0.0, %v547
  %v549 = vpop.f32.mrb[0].mxu0
  %v550 = vpop.f32.mrb[0].mxu0
  %v551 = vadd.f32 0.0, %v550
  %v552 = vpop.f32.mrb[0].mxu0
  %553 = vmatprep.mubr.bf16.mxu0 0
  %554 = vmatmul.mubr.bf16.gmra.mrb[0].mxu0 %v286
  %v555 = vpop.f32.mrb[0].mxu0
  %v556 = vadd.f32 0.0, %v555
  %v557 = vpop.f32.mrb[0].mxu0
  %v558 = vpop.f32.mrb[0].mxu0
  %v559 = vadd.f32 0.0, %v558
  %v560 = vpop.f32.mrb[0].mxu0
  %561 = vmatprep.mubr.bf16.mxu0 0
  %562 = vmatmul.mubr.bf16.gmra.mrb[0].mxu0 %v287
  %v563 = vpop.f32.mrb[0].mxu0
  %v564 = vadd.f32 0.0, %v563
  %v565 = vpop.f32.mrb[0].mxu0
  %v566 = vpop.f32.mrb[0].mxu0
  %v567 = vadd.f32 0.0, %v566
  %v568 = vpop.f32.mrb[0].mxu0
  %569 = vmatprep.mubr.bf16.mxu0 0
  %570 = vmatmul.mubr.bf16.gmra.mrb[0].mxu0 %v288
  %v571 = vpop.f32.mrb[0].mxu0
  %v572 = vadd.f32 0.0, %v571
  %v573 = vpop.f32.mrb[0].mxu0
  %v574 = vpop.f32.mrb[0].mxu0
  %v575 = vadd.f32 0.0, %v574
  %v576 = vpop.f32.mrb[0].mxu0
  %577 = vmatprep.mubr.bf16.mxu0 0
  %578 = vmatmul.mubr.bf16.gmra.mrb[0].mxu0 %v289
  %v579 = vpop.f32.mrb[0].mxu0
  %v580 = vadd.f32 0.0, %v579
  %v581 = vpop.f32.mrb[0].mxu0
  %v582 = vpop.f32.mrb[0].mxu0
  %v583 = vadd.f32 0.0, %v582
  %v584 = vpop.f32.mrb[0].mxu0
  %585 = vmatprep.mubr.bf16.mxu0 0
  %586 = vmatmul.mubr.bf16.gmra.mrb[0].mxu0 %v290
  %v587 = vpop.f32.mrb[0].mxu0
  %v588 = vadd.f32 0.0, %v587
  %v589 = vpop.f32.mrb[0].mxu0
  %v590 = vpop.f32.mrb[0].mxu0
  %v591 = vadd.f32 0.0, %v590
  %v592 = vpop.f32.mrb[0].mxu0
  %593 = vmatprep.mubr.bf16.mxu0 0
  %594 = vmatmul.mubr.bf16.gmra.mrb[0].mxu0 %v291
  %v595 = vpop.f32.mrb[0].mxu0
  %v596 = vadd.f32 0.0, %v595
  %v597 = vpop.f32.mrb[0].mxu0
  %v598 = vpop.f32.mrb[0].mxu0
  %v599 = vadd.f32 0.0, %v598
  %v600 = vpop.f32.mrb[0].mxu0
  %601 = vmatprep.mubr.bf16.mxu0 0
  %602 = vmatmul.mubr.bf16.gmra.mrb[0].mxu0 %v292
  %v603 = vpop.f32.mrb[0].mxu0
  %v604 = vadd.f32 0.0, %v603
  %v605 = vpop.f32.mrb[0].mxu0
  %v606 = vpop.f32.mrb[0].mxu0
  %v607 = vadd.f32 0.0, %v606
  %v608 = vpop.f32.mrb[0].mxu0
  %609 = vmatprep.mubr.bf16.mxu0 0
  %610 = vmatmul.mubr.bf16.gmra.mrb[0].mxu0 %v293
  %v611 = vpop.f32.mrb[0].mxu0
  %v612 = vadd.f32 0.0, %v611
  %v613 = vpop.f32.mrb[0].mxu0
  %v614 = vpop.f32.mrb[0].mxu0
  %v615 = vadd.f32 0.0, %v614
  %v616 = vpop.f32.mrb[0].mxu0
  %617 = vmatprep.mubr.bf16.mxu0 0
  %618 = vmatmul.mubr.bf16.gmra.mrb[0].mxu0 %v294
  %v619 = vpop.f32.mrb[0].mxu0
  %v620 = vadd.f32 0.0, %v619
  %v621 = vpop.f32.mrb[0].mxu0
  %v622 = vpop.f32.mrb[0].mxu0
  %v623 = vadd.f32 0.0, %v622
  %v624 = vpop.f32.mrb[0].mxu0
  %625 = vmatprep.mubr.bf16.mxu0 0
  %626 = vmatmul.mubr.bf16.gmra.mrb[0].mxu0 %v295
  %v627 = vpop.f32.mrb[0].mxu0
  %v628 = vadd.f32 0.0, %v627
  %v629 = vpop.f32.mrb[0].mxu0
  %v630 = vpop.f32.mrb[0].mxu0
  %v631 = vadd.f32 0.0, %v630
  %v632 = vpop.f32.mrb[0].mxu0
  %633 = vmatprep.mubr.bf16.mxu0 0
  %634 = vmatmul.mubr.bf16.gmra.mrb[0].mxu0 %v296
  %v635 = vpop.f32.mrb[0].mxu0
  %v636 = vadd.f32 0.0, %v635
  %v637 = vpop.f32.mrb[0].mxu0
  %v638 = vpop.f32.mrb[0].mxu0
  %v639 = vadd.f32 0.0, %v638
  %v640 = vpop.f32.mrb[0].mxu0
  %641 = vmatprep.mubr.bf16.mxu0 0
  %642 = vmatmul.mubr.bf16.gmra.mrb[0].mxu0 %v297
  %v643 = vpop.f32.mrb[0].mxu0
  %v644 = vadd.f32 0.0, %v643
  %v645 = vpop.f32.mrb[0].mxu0
  %v646 = vpop.f32.mrb[0].mxu0
  %v647 = vadd.f32 0.0, %v646
  %v648 = vpop.f32.mrb[0].mxu0
  %649 = vmatprep.mubr.bf16.mxu0 0
  %650 = vmatmul.mubr.bf16.gmra.mrb[0].mxu0 %v298
  %v651 = vpop.f32.mrb[0].mxu0
  %v652 = vadd.f32 0.0, %v651
  %v653 = vpop.f32.mrb[0].mxu0
  %v654 = vpop.f32.mrb[0].mxu0
  %v655 = vadd.f32 0.0, %v654
  %v656 = vpop.f32.mrb[0].mxu0
  %657 = vmatprep.mubr.bf16.mxu0 0
  %658 = vmatmul.mubr.bf16.gmra.mrb[0].mxu0 %v299
  %v659 = vpop.f32.mrb[0].mxu0
  %v660 = vadd.f32 0.0, %v659
  %v661 = vpop.f32.mrb[0].mxu0
  %v662 = vpop.f32.mrb[0].mxu0
  %v663 = vadd.f32 0.0, %v662
  %v664 = vpop.f32.mrb[0].mxu0
  %665 = vmatprep.mubr.bf16.mxu0 0
  %666 = vmatmul.mubr.bf16.gmra.mrb[0].mxu0 %v300
  %v667 = vpop.f32.mrb[0].mxu0
  %v668 = vadd.f32 0.0, %v667
  %v669 = vpop.f32.mrb[0].mxu0
  %v670 = vpop.f32.mrb[0].mxu0
  %v671 = vadd.f32 0.0, %v670
  %v672 = vpop.f32.mrb[0].mxu0
  %673 = vmatprep.mubr.bf16.mxu0 0
  %674 = vmatmul.mubr.bf16.gmra.mrb[0].mxu0 %v301
  %v675 = vpop.f32.mrb[0].mxu0
  %v676 = vadd.f32 0.0, %v675
  %v677 = vpop.f32.mrb[0].mxu0
  %v678 = vpop.f32.mrb[0].mxu0
  %v679 = vadd.f32 0.0, %v678
  %v680 = vpop.f32.mrb[0].mxu0
  %681 = vmatprep.mubr.bf16.mxu0 0
  %682 = vmatmul.mubr.bf16.gmra.mrb[0].mxu0 %v302
  %v683 = vpop.f32.mrb[0].mxu0
  %v684 = vadd.f32 0.0, %v683
  %v685 = vpop.f32.mrb[0].mxu0
  %v686 = vpop.f32.mrb[0].mxu0
  %v687 = vadd.f32 0.0, %v686
  %v688 = vpop.f32.mrb[0].mxu0
  %689 = vmatprep.mubr.bf16.mxu0 0
  %690 = vmatmul.mubr.bf16.gmra.mrb[0].mxu0 %v303
  %v691 = vpop.f32.mrb[0].mxu0
  %v692 = vadd.f32 0.0, %v691
  %v693 = vpop.f32.mrb[0].mxu0
  %v694 = vpop.f32.mrb[0].mxu0
  %v695 = vadd.f32 0.0, %v694
  %v696 = vpop.f32.mrb[0].mxu0
  %697 = vmatprep.mubr.bf16.mxu0 0
  %698 = vmatmul.mubr.bf16.gmra.mrb[0].mxu0 %v304
  %v699 = vpop.f32.mrb[0].mxu0
  %v700 = vadd.f32 0.0, %v699
  %v701 = vpop.f32.mrb[0].mxu0
  %v702 = vpop.f32.mrb[0].mxu0
  %v703 = vadd.f32 0.0, %v702
  %v704 = vpop.f32.mrb[0].mxu0
  %705 = vmatprep.mubr.bf16.mxu0 0
  %706 = vmatmul.mubr.bf16.gmra.mrb[0].mxu0 %v305
  %v707 = vpop.f32.mrb[0].mxu0
  %v708 = vadd.f32 0.0, %v707
  %v709 = vpop.f32.mrb[0].mxu0
  %v710 = vpop.f32.mrb[0].mxu0
  %v711 = vadd.f32 0.0, %v710
  %v712 = vpop.f32.mrb[0].mxu0
  %713 = vmatprep.mubr.bf16.mxu0 0
  %714 = vmatmul.mubr.bf16.gmra.mrb[0].mxu0 %v306
  %v715 = vpop.f32.mrb[0].mxu0
  %v716 = vadd.f32 0.0, %v715
  %v717 = vpop.f32.mrb[0].mxu0
  %v718 = vpop.f32.mrb[0].mxu0
  %v719 = vadd.f32 0.0, %v718
  %v720 = vpop.f32.mrb[0].mxu0
  %721 = vmatprep.mubr.bf16.mxu0 0
  %722 = vmatmul.mubr.bf16.gmra.mrb[0].mxu0 %v307
  %v723 = vpop.f32.mrb[0].mxu0
  %v724 = vadd.f32 0.0, %v723
  %v725 = vpop.f32.mrb[0].mxu0
  %v726 = vpop.f32.mrb[0].mxu0
  %v727 = vadd.f32 0.0, %v726
  %v728 = vpop.f32.mrb[0].mxu0
  %729 = vmatprep.mubr.bf16.mxu0 0
  %730 = vmatmul.mubr.bf16.gmra.mrb[0].mxu0 %v308
  %v731 = vpop.f32.mrb[0].mxu0
  %v732 = vadd.f32 0.0, %v731
  %v733 = vpop.f32.mrb[0].mxu0
  %v734 = vpop.f32.mrb[0].mxu0
  %v735 = vadd.f32 0.0, %v734
  %v736 = vpop.f32.mrb[0].mxu0
  %737 = vmatprep.mubr.bf16.mxu0 0
  %738 = vmatmul.mubr.bf16.gmra.mrb[0].mxu0 %v309
  %v739 = vpop.f32.mrb[0].mxu0
  %v740 = vadd.f32 0.0, %v739
  %v741 = vpop.f32.mrb[0].mxu0
  %v742 = vpop.f32.mrb[0].mxu0
  %v743 = vadd.f32 0.0, %v742
  %v744 = vpop.f32.mrb[0].mxu0
  %745 = vmatprep.mubr.bf16.mxu0 0
  %746 = vmatmul.mubr.bf16.gmra.mrb[0].mxu0 %v310
  %v747 = vpop.f32.mrb[0].mxu0
  %v748 = vadd.f32 0.0, %v747
  %v749 = vpop.f32.mrb[0].mxu0
  %v750 = vpop.f32.mrb[0].mxu0
  %v751 = vadd.f32 0.0, %v750
  %v752 = vpop.f32.mrb[0].mxu0
  %753 = vmatprep.mubr.bf16.mxu0 0
  %754 = vmatmul.mubr.bf16.gmra.mrb[0].mxu0 %v311
  %v755 = vpop.f32.mrb[0].mxu0
  %v756 = vadd.f32 0.0, %v755
  %v757 = vpop.f32.mrb[0].mxu0
  %v758 = vpop.f32.mrb[0].mxu0
  %v759 = vpop.f32.mrb[0].mxu0
  %760 = vdwg.mxu0
  %761 = vst [vmem:[%s2] sm:$0xff] %v436
  %762 = vst [vmem:[%s2 + $0x8] sm:$0xff] %v439
  %763 = vst [vmem:[%s2 + $0x10] sm:$0xff] %v444
  %764 = vst [vmem:[%s2 + $0x18] sm:$0xff] %v447
  %765 = vst [vmem:[%s2 + $0x20] sm:$0xff] %v452
  %766 = vst [vmem:[%s2 + $0x28] sm:$0xff] %v455
  %767 = vst [vmem:[%s2 + $0x30] sm:$0xff] %v460
  %768 = vst [vmem:[%s2 + $0x38] sm:$0xff] %v463
  %769 = vst [vmem:[%s2 + $0x40] sm:$0xff] %v468
  %770 = vst [vmem:[%s2 + $0x48] sm:$0xff] %v471
  %771 = vst [vmem:[%s2 + $0x50] sm:$0xff] %v476
  %772 = vst [vmem:[%s2 + $0x58] sm:$0xff] %v479
  %773 = vst [vmem:[%s2 + $0x60] sm:$0xff] %v484
  %774 = vst [vmem:[%s2 + $0x68] sm:$0xff] %v487
  %775 = vst [vmem:[%s2 + $0x70] sm:$0xff] %v492
  %776 = vst [vmem:[%s2 + $0x78] sm:$0xff] %v495
  %777 = vst [vmem:[%s2 + $0x80] sm:$0xff] %v500
  %778 = vst [vmem:[%s2 + $0x88] sm:$0xff] %v503
  %779 = vst [vmem:[%s2 + $0x90] sm:$0xff] %v508
  %780 = vst [vmem:[%s2 + $0x98] sm:$0xff] %v511
  %781 = vst [vmem:[%s2 + $0xa0] sm:$0xff] %v516
  %782 = vst [vmem:[%s2 + $0xa8] sm:$0xff] %v519
  %783 = vst [vmem:[%s2 + $0xb0] sm:$0xff] %v524
  %784 = vst [vmem:[%s2 + $0xb8] sm:$0xff] %v527
  %785 = vst [vmem:[%s2 + $0xc0] sm:$0xff] %v532
  %786 = vst [vmem:[%s2 + $0xc8] sm:$0xff] %v535
  %787 = vst [vmem:[%s2 + $0xd0] sm:$0xff] %v540
  %788 = vst [vmem:[%s2 + $0xd8] sm:$0xff] %v543
  %789 = vst [vmem:[%s2 + $0xe0] sm:$0xff] %v548
  %790 = vst [vmem:[%s2 + $0xe8] sm:$0xff] %v551
  %791 = vst [vmem:[%s2 + $0xf0] sm:$0xff] %v556
  %792 = vst [vmem:[%s2 + $0xf8] sm:$0xff] %v559
  %793 = vst [vmem:[%s2 + $0x100] sm:$0xff] %v564
  %794 = vst [vmem:[%s2 + $0x108] sm:$0xff] %v567
  %795 = vst [vmem:[%s2 + $0x110] sm:$0xff] %v572
  %796 = vst [vmem:[%s2 + $0x118] sm:$0xff] %v575
  %797 = vst [vmem:[%s2 + $0x120] sm:$0xff] %v580
  %798 = vst [vmem:[%s2 + $0x128] sm:$0xff] %v583
  %799 = vst [vmem:[%s2 + $0x130] sm:$0xff] %v588
  %800 = vst [vmem:[%s2 + $0x138] sm:$0xff] %v591
  %801 = vst [vmem:[%s2 + $0x140] sm:$0xff] %v596
  %802 = vst [vmem:[%s2 + $0x148] sm:$0xff] %v599
  %803 = vst [vmem:[%s2 + $0x150] sm:$0xff] %v604
  %804 = vst [vmem:[%s2 + $0x158] sm:$0xff] %v607
  %805 = vst [vmem:[%s2 + $0x160] sm:$0xff] %v612
  %806 = vst [vmem:[%s2 + $0x168] sm:$0xff] %v615
  %807 = vst [vmem:[%s2 + $0x170] sm:$0xff] %v620
  %808 = vst [vmem:[%s2 + $0x178] sm:$0xff] %v623
  %809 = vst [vmem:[%s2 + $0x180] sm:$0xff] %v628
  %810 = vst [vmem:[%s2 + $0x188] sm:$0xff] %v631
  %811 = vst [vmem:[%s2 + $0x190] sm:$0xff] %v636
  %812 = vst [vmem:[%s2 + $0x198] sm:$0xff] %v639
  %813 = vst [vmem:[%s2 + $0x1a0] sm:$0xff] %v644
  %814 = vst [vmem:[%s2 + $0x1a8] sm:$0xff] %v647
  %815 = vst [vmem:[%s2 + $0x1b0] sm:$0xff] %v652
  %816 = vst [vmem:[%s2 + $0x1b8] sm:$0xff] %v655
  %817 = vst [vmem:[%s2 + $0x1c0] sm:$0xff] %v660
  %818 = vst [vmem:[%s2 + $0x1c8] sm:$0xff] %v663
  %819 = vst [vmem:[%s2 + $0x1d0] sm:$0xff] %v668
  %820 = vst [vmem:[%s2 + $0x1d8] sm:$0xff] %v671
  %821 = vst [vmem:[%s2 + $0x1e0] sm:$0xff] %v676
  %822 = vst [vmem:[%s2 + $0x1e8] sm:$0xff] %v679
  %823 = vst [vmem:[%s2 + $0x1f0] sm:$0xff] %v684
  %824 = vst [vmem:[%s2 + $0x1f8] sm:$0xff] %v687
  %825 = vst [vmem:[%s2 + $0x200] sm:$0xff] %v692
  %826 = vst [vmem:[%s2 + $0x208] sm:$0xff] %v695
  %827 = vst [vmem:[%s2 + $0x210] sm:$0xff] %v700
  %828 = vst [vmem:[%s2 + $0x218] sm:$0xff] %v703
  %829 = vst [vmem:[%s2 + $0x220] sm:$0xff] %v708
  %830 = vst [vmem:[%s2 + $0x228] sm:$0xff] %v711
  %831 = vst [vmem:[%s2 + $0x230] sm:$0xff] %v716
  %832 = vst [vmem:[%s2 + $0x238] sm:$0xff] %v719
  %833 = vst [vmem:[%s2 + $0x240] sm:$0xff] %v724
  %834 = vst [vmem:[%s2 + $0x248] sm:$0xff] %v727
  %835 = vst [vmem:[%s2 + $0x250] sm:$0xff] %v732
  %836 = vst [vmem:[%s2 + $0x258] sm:$0xff] %v735
  %837 = vst [vmem:[%s2 + $0x260] sm:$0xff] %v740
  %838 = vst [vmem:[%s2 + $0x268] sm:$0xff] %v743
  %839 = vst [vmem:[%s2 + $0x270] sm:$0xff] %v748
  %840 = vst [vmem:[%s2 + $0x278] sm:$0xff] %v751
  %841 = vst [vmem:[%s2 + $0x280] sm:$0xff] %v756
  // Predicated region
  $region10: #{fconv_densenet_forward.6} parent=0 // pred_check
    _
  $region11: #{fconv_densenet_forward.6} parent=0 // pred_check_branch
    %843 = sbr.rel (0) target = $region13
  $region12: #{fconv_densenet_forward.6} parent=0 // pred_region
    _
  $region13: #{fconv_densenet_forward.6} parent=0 // pred_fallthru
    _
  // Predicated region
  $region14: #{fconv_densenet_forward.6} parent=0 // pred_check
    _
  $region15: #{fconv_densenet_forward.6} parent=0 // pred_check_branch
    %845 = sbr.rel (0) target = $region17
  $region16: #{fconv_densenet_forward.6} parent=0 // pred_region
    _
  $region17: #{fconv_densenet_forward.6} parent=0 // pred_fallthru
    _

// kernel: fconv_densenet_forward.8
$region0: #{fconv_densenet_forward.8}
  #allocation0 [shape = 'u32[]', space=smem, size = 0x4, offset = 0x4, fixed_abs, tag = 'smem constant byte address 0x4 - core index']
  #allocation1 [shape = 'u32[144,128]{1,0:T(1,128)}', space=vmem, size = 0x12000, scoped, tag = 'internal scratch']
  %s0 = inlined_call_operand.vmem [shape: f32[128,128], index: 0, kind: input, shape index: {}]
  %s1 = inlined_call_operand.vmem [shape: f32[1,128], index: 1, kind: input, shape index: {}]
  %s2 = inlined_call_operand.vmem [shape: f32[1,128], index: 2, kind: input, shape index: {}]
  %s3 = inlined_call_operand.vmem [shape: bf16[128,128], index: 3, kind: input, shape index: {}]
  %s4 = inlined_call_operand.vmem [shape: f32[128,128], index: 4, kind: output, shape index: {}]
  %s5 = sld [smem:[#allocation0]]
  $region26: #{fconv_densenet_forward.8} parent=0
    _
  %s7 = ssub.s32 1, %s5
  %s8 = scalar_select 0, %s7, %s5
  // Predicated region
  $region2: #{fconv_densenet_forward.8} parent=0 // pred_check
    _
  $region3: #{fconv_densenet_forward.8} parent=0 // pred_check_branch
    %10 = sbr.rel (0) target = $region5
  $region4: #{fconv_densenet_forward.8} parent=0 // pred_region
    _
  $region5: #{fconv_densenet_forward.8} parent=0 // pred_fallthru
    _
  // Predicated region
  $region6: #{fconv_densenet_forward.8} parent=0 // pred_check
    _
  $region7: #{fconv_densenet_forward.8} parent=0 // pred_check_branch
    %12 = sbr.rel (0) target = $region9
  $region8: #{fconv_densenet_forward.8} parent=0 // pred_region
    _
  $region9: #{fconv_densenet_forward.8} parent=0 // pred_fallthru
    _
  // Predicated region
  $region10: #{fconv_densenet_forward.8} parent=0 // pred_check
    _
  $region11: #{fconv_densenet_forward.8} parent=0 // pred_check_branch
    %14 = sbr.rel (0) target = $region13
  $region12: #{fconv_densenet_forward.8} parent=0 // pred_region
    _
  $region13: #{fconv_densenet_forward.8} parent=0 // pred_fallthru
    _
  // Predicated region
  $region14: #{fconv_densenet_forward.8} parent=0 // pred_check
    _
  $region15: #{fconv_densenet_forward.8} parent=0 // pred_check_branch
    %16 = sbr.rel (0) target = $region17
  $region16: #{fconv_densenet_forward.8} parent=0 // pred_region
    _
  $region17: #{fconv_densenet_forward.8} parent=0 // pred_fallthru
    _
  %v18 = vld [vmem:[%s0] sm:$0xff]
  %v19 = vld [vmem:[%s0 + $0x8] sm:$0xff]
  %v20 = vld [vmem:[%s0 + $0x10] sm:$0xff]
  %v21 = vld [vmem:[%s0 + $0x18] sm:$0xff]
  %v22 = vld [vmem:[%s0 + $0x20] sm:$0xff]
  %v23 = vld [vmem:[%s0 + $0x28] sm:$0xff]
  %v24 = vld [vmem:[%s0 + $0x30] sm:$0xff]
  %v25 = vld [vmem:[%s0 + $0x38] sm:$0xff]
  %v26 = vld [vmem:[%s0 + $0x40] sm:$0xff]
  %v27 = vld [vmem:[%s0 + $0x48] sm:$0xff]
  %v28 = vld [vmem:[%s0 + $0x50] sm:$0xff]
  %v29 = vld [vmem:[%s0 + $0x58] sm:$0xff]
  %v30 = vld [vmem:[%s0 + $0x60] sm:$0xff]
  %v31 = vld [vmem:[%s0 + $0x68] sm:$0xff]
  %v32 = vld [vmem:[%s0 + $0x70] sm:$0xff]
  %v33 = vld [vmem:[%s0 + $0x78] sm:$0xff]
  %v34 = vadd.f32 %v18, %v19
  %v35 = vadd.f32 %v34, %v20
  %v36 = vadd.f32 %v35, %v21
  %v37 = vadd.f32 %v36, %v22
  %v38 = vadd.f32 %v37, %v23
  %v39 = vadd.f32 %v38, %v24
  %v40 = vadd.f32 %v39, %v25
  %v41 = vadd.f32 %v40, %v26
  %v42 = vadd.f32 %v41, %v27
  %v43 = vadd.f32 %v42, %v28
  %v44 = vadd.f32 %v43, %v29
  %v45 = vadd.f32 %v44, %v30
  %v46 = vadd.f32 %v45, %v31
  %v47 = vadd.f32 %v46, %v32
  %v48 = vadd.f32 %v47, %v33
  %v49 = vrot.slane %v48, 4
  %v50 = vadd.f32 %v48, %v49
  %v51 = vrot.slane %v50, 2
  %v52 = vadd.f32 %v50, %v51
  %v53 = vrot.slane %v52, 1
  %v54 = vadd.f32 %v52, %v53
  %v55 = vmul.f32 %v54, 0.0078125
  %v56 = vmul.f32 %v18, %v18
  %v57 = vmul.f32 %v19, %v19
  %v58 = vmul.f32 %v20, %v20
  %v59 = vmul.f32 %v21, %v21
  %v60 = vmul.f32 %v22, %v22
  %v61 = vmul.f32 %v23, %v23
  %v62 = vmul.f32 %v24, %v24
  %v63 = vmul.f32 %v25, %v25
  %v64 = vmul.f32 %v26, %v26
  %v65 = vmul.f32 %v27, %v27
  %v66 = vmul.f32 %v28, %v28
  %v67 = vmul.f32 %v29, %v29
  %v68 = vmul.f32 %v30, %v30
  %v69 = vmul.f32 %v31, %v31
  %v70 = vmul.f32 %v32, %v32
  %v71 = vmul.f32 %v33, %v33
  %v72 = vadd.f32 %v56, %v57
  %v73 = vadd.f32 %v72, %v58
  %v74 = vadd.f32 %v73, %v59
  %v75 = vadd.f32 %v74, %v60
  %v76 = vadd.f32 %v75, %v61
  %v77 = vadd.f32 %v76, %v62
  %v78 = vadd.f32 %v77, %v63
  %v79 = vadd.f32 %v78, %v64
  %v80 = vadd.f32 %v79, %v65
  %v81 = vadd.f32 %v80, %v66
  %v82 = vadd.f32 %v81, %v67
  %v83 = vadd.f32 %v82, %v68
  %v84 = vadd.f32 %v83, %v69
  %v85 = vadd.f32 %v84, %v70
  %v86 = vadd.f32 %v85, %v71
  %v87 = vrot.slane %v86, 4
  %v88 = vadd.f32 %v86, %v87
  %v89 = vrot.slane %v88, 2
  %v90 = vadd.f32 %v88, %v89
  %v91 = vrot.slane %v90, 1
  %v92 = vadd.f32 %v90, %v91
  %v93 = vmul.f32 %v92, 0.0078125
  %v94 = vmul.f32 %v55, %v55
  %v95 = vsub.f32 %v93, %v94
  %v96 = vmax.f32 %v95, 0.0
  %v97 = vld [vmem:[%s1] sm:$0x1]
  %v98 = vadd.f32 %v96, 1e-05
  %v99 = vrsqrt.pop %v98
  %v100 = vmul.f32 %v97, %v99
  %v102 = vlaneseq
  %v103 = vshrl.u32 %v102, 7
  %v104 = vsub.s32 0, %v103
  %v105 = vrot.slane %v100, %v104
  %v107 = vmul.f32 %v18, %v105
  %v108 = vmul.f32 %v19, %v105
  %v109 = vmul.f32 %v20, %v105
  %v110 = vmul.f32 %v21, %v105
  %v111 = vmul.f32 %v22, %v105
  %v112 = vmul.f32 %v23, %v105
  %v113 = vmul.f32 %v24, %v105
  %v114 = vmul.f32 %v25, %v105
  %v115 = vmul.f32 %v26, %v105
  %v116 = vmul.f32 %v27, %v105
  %v117 = vmul.f32 %v28, %v105
  %v118 = vmul.f32 %v29, %v105
  %v119 = vmul.f32 %v30, %v105
  %v120 = vmul.f32 %v31, %v105
  %v121 = vmul.f32 %v32, %v105
  %v122 = vmul.f32 %v33, %v105
  %v123 = vld [vmem:[%s2] sm:$0x1]
  %v124 = vmul.f32 %v55, %v100
  %v125 = vsub.f32 %v123, %v124
  %v127 = vlaneseq
  %v128 = vshrl.u32 %v127, 7
  %v129 = vsub.s32 0, %v128
  %v130 = vrot.slane %v125, %v129
  %v132 = vadd.f32 %v107, %v130
  %v133 = vadd.f32 %v108, %v130
  %v134 = vadd.f32 %v109, %v130
  %v135 = vadd.f32 %v110, %v130
  %v136 = vadd.f32 %v111, %v130
  %v137 = vadd.f32 %v112, %v130
  %v138 = vadd.f32 %v113, %v130
  %v139 = vadd.f32 %v114, %v130
  %v140 = vadd.f32 %v115, %v130
  %v141 = vadd.f32 %v116, %v130
  %v142 = vadd.f32 %v117, %v130
  %v143 = vadd.f32 %v118, %v130
  %v144 = vadd.f32 %v119, %v130
  %v145 = vadd.f32 %v120, %v130
  %v146 = vadd.f32 %v121, %v130
  %v147 = vadd.f32 %v122, %v130
  %v148 = vmax.f32 %v132, 0.0
  %v149 = vmax.f32 %v133, 0.0
  %v150 = vmax.f32 %v134, 0.0
  %v151 = vmax.f32 %v135, 0.0
  %v152 = vmax.f32 %v136, 0.0
  %v153 = vmax.f32 %v137, 0.0
  %v154 = vmax.f32 %v138, 0.0
  %v155 = vmax.f32 %v139, 0.0
  %v156 = vmax.f32 %v140, 0.0
  %v157 = vmax.f32 %v141, 0.0
  %v158 = vmax.f32 %v142, 0.0
  %v159 = vmax.f32 %v143, 0.0
  %v160 = vmax.f32 %v144, 0.0
  %v161 = vmax.f32 %v145, 0.0
  %v162 = vmax.f32 %v146, 0.0
  %v163 = vmax.f32 %v147, 0.0
  %v164 = vpack.c.bf16 %v149, %v148
  %v165 = vpack.c.bf16 %v151, %v150
  %v166 = vpack.c.bf16 %v153, %v152
  %v167 = vpack.c.bf16 %v155, %v154
  %v168 = vpack.c.bf16 %v157, %v156
  %v169 = vpack.c.bf16 %v159, %v158
  %v170 = vpack.c.bf16 %v161, %v160
  %v171 = vpack.c.bf16 %v163, %v162
  %v172 = vld [vmem:[%s3] sm:$0xf]
  %v173 = vld [vmem:[%s3 + $0x4] sm:$0xf]
  %v174 = vld [vmem:[%s3 + $0x8] sm:$0xf]
  %v175 = vld [vmem:[%s3 + $0xc] sm:$0xf]
  %v176 = vld [vmem:[%s3 + $0x10] sm:$0xf]
  %v177 = vld [vmem:[%s3 + $0x14] sm:$0xf]
  %v178 = vld [vmem:[%s3 + $0x18] sm:$0xf]
  %v179 = vld [vmem:[%s3 + $0x1c] sm:$0xf]
  %v180 = vld [vmem:[%s3 + $0x20] sm:$0xf]
  %v181 = vld [vmem:[%s3 + $0x24] sm:$0xf]
  %v182 = vld [vmem:[%s3 + $0x28] sm:$0xf]
  %v183 = vld [vmem:[%s3 + $0x2c] sm:$0xf]
  %v184 = vld [vmem:[%s3 + $0x30] sm:$0xf]
  %v185 = vld [vmem:[%s3 + $0x34] sm:$0xf]
  %v186 = vld [vmem:[%s3 + $0x38] sm:$0xf]
  %v187 = vld [vmem:[%s3 + $0x3c] sm:$0xf]
  %v204 = vunpack.c.l.b16 %v172
  %v205 = vunpack.c.l.b16 %v173
  %v206 = vunpack.c.l.b16 %v174
  %v207 = vunpack.c.l.b16 %v175
  %v208 = vunpack.c.l.b16 %v176
  %v209 = vunpack.c.l.b16 %v177
  %v210 = vunpack.c.l.b16 %v178
  %v211 = vunpack.c.l.b16 %v179
  %v212 = vunpack.c.l.b16 %v180
  %v213 = vunpack.c.l.b16 %v181
  %v214 = vunpack.c.l.b16 %v182
  %v215 = vunpack.c.l.b16 %v183
  %v216 = vunpack.c.l.b16 %v184
  %v217 = vunpack.c.l.b16 %v185
  %v218 = vunpack.c.l.b16 %v186
  %v219 = vunpack.c.l.b16 %v187
  %v220 = vpack.c.b16 %v205, %v204
  %v221 = vpack.c.b16 %v207, %v206
  %v222 = vpack.c.b16 %v209, %v208
  %v223 = vpack.c.b16 %v211, %v210
  %v224 = vpack.c.b16 %v213, %v212
  %v225 = vpack.c.b16 %v215, %v214
  %v226 = vpack.c.b16 %v217, %v216
  %v227 = vpack.c.b16 %v219, %v218
  %236 = vmatprep.subr.bf16.mxu0 0
  %237 = vmatpush1.bf16.msra.mxu0 %v220
  %238 = vmatprep.subr.bf16.mxu0 0
  %239 = vmatpush1.bf16.msra.mxu0 %v221
  %240 = vmatprep.subr.bf16.mxu0 0
  %241 = vmatpush1.bf16.msra.mxu0 %v222
  %242 = vmatprep.subr.bf16.mxu0 0
  %243 = vmatpush1.bf16.msra.mxu0 %v223
  %244 = vmatprep.subr.bf16.mxu0 0
  %245 = vmatpush1.bf16.msra.mxu0 %v224
  %246 = vmatprep.subr.bf16.mxu0 0
  %247 = vmatpush1.bf16.msra.mxu0 %v225
  %248 = vmatprep.subr.bf16.mxu0 0
  %249 = vmatpush1.bf16.msra.mxu0 %v226
  %250 = vmatprep.subr.bf16.mxu0 0
  %251 = vmatpush1.bf16.msra.mxu0 %v227
  %252 = vmatprep.subr.bf16.mxu0 0
  %253 = vmatpush1.bf16.msra.mxu0 0
  %254 = vmatprep.subr.bf16.mxu0 0
  %255 = vmatpush1.bf16.msra.mxu0 0
  %256 = vmatprep.subr.bf16.mxu0 0
  %257 = vmatpush1.bf16.msra.mxu0 0
  %258 = vmatprep.subr.bf16.mxu0 0
  %259 = vmatpush1.bf16.msra.mxu0 0
  %260 = vmatprep.subr.bf16.mxu0 0
  %261 = vmatpush1.bf16.msra.mxu0 0
  %262 = vmatprep.subr.bf16.mxu0 0
  %263 = vmatpush1.bf16.msra.mxu0 0
  %264 = vmatprep.subr.bf16.mxu0 0
  %265 = vmatpush1.bf16.msra.mxu0 0
  %266 = vmatprep.subr.bf16.mxu0 0
  %267 = vmatpush1.bf16.msra.mxu0 0
  %268 = vmatprep.mubr.bf16.mxu0 0
  %269 = vmatmul.mubr.bf16.gmra.mrb[0].mxu0 %v164
  %v270 = vpop.f32.mrb[0].mxu0
  %v271 = vadd.f32 0.0, %v270
  %v272 = vpop.f32.mrb[0].mxu0
  %v273 = vpop.f32.mrb[0].mxu0
  %v274 = vadd.f32 0.0, %v273
  %v275 = vpop.f32.mrb[0].mxu0
  %276 = vmatprep.mubr.bf16.mxu0 0
  %277 = vmatmul.mubr.bf16.gmra.mrb[0].mxu0 %v165
  %v278 = vpop.f32.mrb[0].mxu0
  %v279 = vadd.f32 0.0, %v278
  %v280 = vpop.f32.mrb[0].mxu0
  %v281 = vpop.f32.mrb[0].mxu0
  %v282 = vadd.f32 0.0, %v281
  %v283 = vpop.f32.mrb[0].mxu0
  %284 = vmatprep.mubr.bf16.mxu0 0
  %285 = vmatmul.mubr.bf16.gmra.mrb[0].mxu0 %v166
  %v286 = vpop.f32.mrb[0].mxu0
  %v287 = vadd.f32 0.0, %v286
  %v288 = vpop.f32.mrb[0].mxu0
  %v289 = vpop.f32.mrb[0].mxu0
  %v290 = vadd.f32 0.0, %v289
  %v291 = vpop.f32.mrb[0].mxu0
  %292 = vmatprep.mubr.bf16.mxu0 0
  %293 = vmatmul.mubr.bf16.gmra.mrb[0].mxu0 %v167
  %v294 = vpop.f32.mrb[0].mxu0
  %v295 = vadd.f32 0.0, %v294
  %v296 = vpop.f32.mrb[0].mxu0
  %v297 = vpop.f32.mrb[0].mxu0
  %v298 = vadd.f32 0.0, %v297
  %v299 = vpop.f32.mrb[0].mxu0
  %300 = vmatprep.mubr.bf16.mxu0 0
  %301 = vmatmul.mubr.bf16.gmra.mrb[0].mxu0 %v168
  %v302 = vpop.f32.mrb[0].mxu0
  %v303 = vadd.f32 0.0, %v302
  %v304 = vpop.f32.mrb[0].mxu0
  %v305 = vpop.f32.mrb[0].mxu0
  %v306 = vadd.f32 0.0, %v305
  %v307 = vpop.f32.mrb[0].mxu0
  %308 = vmatprep.mubr.bf16.mxu0 0
  %309 = vmatmul.mubr.bf16.gmra.mrb[0].mxu0 %v169
  %v310 = vpop.f32.mrb[0].mxu0
  %v311 = vadd.f32 0.0, %v310
  %v312 = vpop.f32.mrb[0].mxu0
  %v313 = vpop.f32.mrb[0].mxu0
  %v314 = vadd.f32 0.0, %v313
  %v315 = vpop.f32.mrb[0].mxu0
  %316 = vmatprep.mubr.bf16.mxu0 0
  %317 = vmatmul.mubr.bf16.gmra.mrb[0].mxu0 %v170
  %v318 = vpop.f32.mrb[0].mxu0
  %v319 = vadd.f32 0.0, %v318
  %v320 = vpop.f32.mrb[0].mxu0
  %v321 = vpop.f32.mrb[0].mxu0
  %v322 = vadd.f32 0.0, %v321
  %v323 = vpop.f32.mrb[0].mxu0
  %324 = vmatprep.mubr.bf16.mxu0 0
  %325 = vmatmul.mubr.bf16.gmra.mrb[0].mxu0 %v171
  %v326 = vpop.f32.mrb[0].mxu0
  %v327 = vadd.f32 0.0, %v326
  %v328 = vpop.f32.mrb[0].mxu0
  %v329 = vpop.f32.mrb[0].mxu0
  %v330 = vadd.f32 0.0, %v329
  %v331 = vpop.f32.mrb[0].mxu0
  %332 = vdwg.mxu0
  %333 = vst [vmem:[%s4] sm:$0xff] %v271
  %334 = vst [vmem:[%s4 + $0x8] sm:$0xff] %v274
  %335 = vst [vmem:[%s4 + $0x10] sm:$0xff] %v279
  %336 = vst [vmem:[%s4 + $0x18] sm:$0xff] %v282
  %337 = vst [vmem:[%s4 + $0x20] sm:$0xff] %v287
  %338 = vst [vmem:[%s4 + $0x28] sm:$0xff] %v290
  %339 = vst [vmem:[%s4 + $0x30] sm:$0xff] %v295
  %340 = vst [vmem:[%s4 + $0x38] sm:$0xff] %v298
  %341 = vst [vmem:[%s4 + $0x40] sm:$0xff] %v303
  %342 = vst [vmem:[%s4 + $0x48] sm:$0xff] %v306
  %343 = vst [vmem:[%s4 + $0x50] sm:$0xff] %v311
  %344 = vst [vmem:[%s4 + $0x58] sm:$0xff] %v314
  %345 = vst [vmem:[%s4 + $0x60] sm:$0xff] %v319
  %346 = vst [vmem:[%s4 + $0x68] sm:$0xff] %v322
  %347 = vst [vmem:[%s4 + $0x70] sm:$0xff] %v327
  %348 = vst [vmem:[%s4 + $0x78] sm:$0xff] %v330
  // Predicated region
  $region18: #{fconv_densenet_forward.8} parent=0 // pred_check
    _
  $region19: #{fconv_densenet_forward.8} parent=0 // pred_check_branch
    %350 = sbr.rel (0) target = $region21
  $region20: #{fconv_densenet_forward.8} parent=0 // pred_region
    _
  $region21: #{fconv_densenet_forward.8} parent=0 // pred_fallthru
    _
  // Predicated region
  $region22: #{fconv_densenet_forward.8} parent=0 // pred_check
    _
  $region23: #{fconv_densenet_forward.8} parent=0 // pred_check_branch
    %352 = sbr.rel (0) target = $region25
  $region24: #{fconv_densenet_forward.8} parent=0 // pred_region
    _
  $region25: #{fconv_densenet_forward.8} parent=0 // pred_fallthru
    _

// kernel: fconv_densenet_forward.7
$region0: #{fconv_densenet_forward.7}
  #allocation0 [shape = 'u32[]', space=smem, size = 0x4, offset = 0x4, fixed_abs, tag = 'smem constant byte address 0x4 - core index']
  #allocation1 [shape = 'u32[144,128]{1,0:T(1,128)}', space=vmem, size = 0x12000, scoped, tag = 'internal scratch']
  #allocation2 [shape = 'f32[128,128]{1,0:T(8,128)}', space=vmem, size = 0x10000, scoped, tag = 'scratch operand']
  #allocation3 [shape = 'f32[146,128]{1,0:T(8,128)}', space=vmem, size = 0x13000, scoped, tag = 'scratch operand']
  %s0 = inlined_call_operand.vmem [shape: f32[128,128], index: 0, kind: input, shape index: {}]
  %s1 = inlined_call_operand.vmem [shape: f32[2,1,128], index: 1, kind: input, shape index: {}]
  %s2 = inlined_call_operand.vmem [shape: f32[2,1,128], index: 2, kind: input, shape index: {}]
  %s3 = inlined_call_operand.vmem [shape: bf16[2,128,128], index: 3, kind: input, shape index: {}]
  %s4 = inlined_call_operand.vmem [shape: f32[2,1,128], index: 4, kind: input, shape index: {}]
  %s5 = inlined_call_operand.vmem [shape: f32[2,1,128], index: 5, kind: input, shape index: {}]
  %s6 = inlined_call_operand.vmem [shape: bf16[2,384,128], index: 6, kind: input, shape index: {}]
  %s7 = inlined_call_operand.vmem [shape: f32[128,128], index: 7, kind: output, shape index: {}]
  %s8 = sld [smem:[#allocation0]]
  $region69: #{fconv_densenet_forward.7} parent=0
    _
  %s10 = ssub.s32 1, %s8
  %s11 = scalar_select 0, %s10, %s8
  loop: start=0, step=1, limit=4
  $region2: #{fconv_densenet_forward.7} parent=0 // loop_pre_header
    _
  $region3: #{fconv_densenet_forward.7} parent=0 // loop_header
    %s13 = sphi 0, %s17
    %p14 = scmp.ge.s32.totalorder %s13, 4
    %s21 = sphi 0, %s21
    %s23 = sphi 0, %s21
    %s24 = sphi 0, %s23
    %s38 = sphi 0, %s24
    %s44 = sphi 0, %s46
    %s47 = sphi 0, %s44
    %s48 = sphi 0, %s47
    %s64 = sphi 0, %s48
    %s70 = sphi 0, %s72
    %s73 = sphi 0, %s70
    %s74 = sphi 0, %s73
    %s90 = sphi 0, %s74
    %s96 = sphi 0, %s98
    %s99 = sphi 0, %s96
    %s100 = sphi 0, %s99
    %s116 = sphi 0, %s100
    %s122 = sphi 0, %s124
    %s125 = sphi 0, %s122
    %s126 = sphi 0, %s125
    %s142 = sphi 0, %s126
    %s148 = sphi 0, %s150
    %s151 = sphi 0, %s148
    %s152 = sphi 0, %s151
    %s168 = sphi 0, %s152
    %s174 = sphi 0, %s176
    %s177 = sphi 0, %s174
    %s178 = sphi 0, %s177
    %s194 = sphi 0, %s178
    %s198 = sphi 0, %s198
    %s200 = sphi 0, %s198
    %s201 = sphi 0, %s200
    %s215 = sphi 0, %s201
  $region4: #{fconv_densenet_forward.7} parent=0 // loop_header_branch
    %16 = sbr.rel (%p14) target = $region8
  $region5: #{fconv_densenet_forward.7} parent=0 // loop_body
    %s18 = ssub.s32 %s13, 1
    %s19 = ssub.s32 %s13, 2
    %s20 = sadd.s32 %s13, 1
    %s22 = sadd.s32 %s21, 1
    %p25 = scmp.eq.s32.totalorder %s13, 1
    %p26 = scmp.ne.s32.totalorder %s21, %s23
    %p27 = scmp.eq.s32.totalorder %s13, 0
    %p28 = por %p26, %p27
    %p29 = scmp.ne.s32.totalorder %s21, %s23
    %p30 = scmp.eq.s32.totalorder %s18, 1
    %p31 = por %p29, %p30
    %p32 = scmp.ne.s32.totalorder %s23, %s24
    %p33 = scmp.eq.s32.totalorder %s18, 0
    %p34 = por %p32, %p33
    %p35 = scmp.ne.s32.totalorder %s23, %s24
    %p36 = scmp.eq.s32.totalorder %s19, 1
    %p37 = por %p35, %p36
    %p39 = scmp.ne.s32.totalorder %s24, %s38
    %p40 = scmp.eq.s32.totalorder %s19, 0
    %p41 = por %p39, %p40
    %s42 = ssub.s32 %s13, %s20
    %p43 = scmp.eq.s32.totalorder %s42, 0
    %s45 = sadd.s32 %s44, 1
    %s46 = scalar_select %p43, %s44, %s45
    %p49 = pneg %p43
    %p50 = scmp.eq.s32.totalorder %s13, 1
    %p51 = por %p49, %p50
    %p52 = scmp.ne.s32.totalorder %s44, %s47
    %p53 = scmp.eq.s32.totalorder %s13, 0
    %p54 = por %p52, %p53
    %p55 = scmp.ne.s32.totalorder %s44, %s47
    %p56 = scmp.eq.s32.totalorder %s18, 1
    %p57 = por %p55, %p56
    %p58 = scmp.ne.s32.totalorder %s47, %s48
    %p59 = scmp.eq.s32.totalorder %s18, 0
    %p60 = por %p58, %p59
    %p61 = scmp.ne.s32.totalorder %s47, %s48
    %p62 = scmp.eq.s32.totalorder %s19, 1
    %p63 = por %p61, %p62
    %p65 = scmp.ne.s32.totalorder %s48, %s64
    %p66 = scmp.eq.s32.totalorder %s19, 0
    %p67 = por %p65, %p66
    %s68 = ssub.s32 %s13, %s20
    %p69 = scmp.eq.s32.totalorder %s68, 0
    %s71 = sadd.s32 %s70, 1
    %s72 = scalar_select %p69, %s70, %s71
    %p75 = pneg %p69
    %p76 = scmp.eq.s32.totalorder %s13, 1
    %p77 = por %p75, %p76
    %p78 = scmp.ne.s32.totalorder %s70, %s73
    %p79 = scmp.eq.s32.totalorder %s13, 0
    %p80 = por %p78, %p79
    %p81 = scmp.ne.s32.totalorder %s70, %s73
    %p82 = scmp.eq.s32.totalorder %s18, 1
    %p83 = por %p81, %p82
    %p84 = scmp.ne.s32.totalorder %s73, %s74
    %p85 = scmp.eq.s32.totalorder %s18, 0
    %p86 = por %p84, %p85
    %p87 = scmp.ne.s32.totalorder %s73, %s74
    %p88 = scmp.eq.s32.totalorder %s19, 1
    %p89 = por %p87, %p88
    %p91 = scmp.ne.s32.totalorder %s74, %s90
    %p92 = scmp.eq.s32.totalorder %s19, 0
    %p93 = por %p91, %p92
    %s94 = ssub.s32 %s13, %s20
    %p95 = scmp.eq.s32.totalorder %s94, 0
    %s97 = sadd.s32 %s96, 1
    %s98 = scalar_select %p95, %s96, %s97
    %p101 = pneg %p95
    %p102 = scmp.eq.s32.totalorder %s13, 1
    %p103 = por %p101, %p102
    %p104 = scmp.ne.s32.totalorder %s96, %s99
    %p105 = scmp.eq.s32.totalorder %s13, 0
    %p106 = por %p104, %p105
    %p107 = scmp.ne.s32.totalorder %s96, %s99
    %p108 = scmp.eq.s32.totalorder %s18, 1
    %p109 = por %p107, %p108
    %p110 = scmp.ne.s32.totalorder %s99, %s100
    %p111 = scmp.eq.s32.totalorder %s18, 0
    %p112 = por %p110, %p111
    %p113 = scmp.ne.s32.totalorder %s99, %s100
    %p114 = scmp.eq.s32.totalorder %s19, 1
    %p115 = por %p113, %p114
    %p117 = scmp.ne.s32.totalorder %s100, %s116
    %p118 = scmp.eq.s32.totalorder %s19, 0
    %p119 = por %p117, %p118
    %s120 = ssub.s32 %s13, %s20
    %p121 = scmp.eq.s32.totalorder %s120, 0
    %s123 = sadd.s32 %s122, 1
    %s124 = scalar_select %p121, %s122, %s123
    %p127 = pneg %p121
    %p128 = scmp.eq.s32.totalorder %s13, 1
    %p129 = por %p127, %p128
    %p130 = scmp.ne.s32.totalorder %s122, %s125
    %p131 = scmp.eq.s32.totalorder %s13, 0
    %p132 = por %p130, %p131
    %p133 = scmp.ne.s32.totalorder %s122, %s125
    %p134 = scmp.eq.s32.totalorder %s18, 1
    %p135 = por %p133, %p134
    %p136 = scmp.ne.s32.totalorder %s125, %s126
    %p137 = scmp.eq.s32.totalorder %s18, 0
    %p138 = por %p136, %p137
    %p139 = scmp.ne.s32.totalorder %s125, %s126
    %p140 = scmp.eq.s32.totalorder %s19, 1
    %p141 = por %p139, %p140
    %p143 = scmp.ne.s32.totalorder %s126, %s142
    %p144 = scmp.eq.s32.totalorder %s19, 0
    %p145 = por %p143, %p144
    %s146 = ssub.s32 %s13, %s20
    %p147 = scmp.eq.s32.totalorder %s146, 0
    %s149 = sadd.s32 %s148, 1
    %s150 = scalar_select %p147, %s148, %s149
    %p153 = pneg %p147
    %p154 = scmp.eq.s32.totalorder %s13, 1
    %p155 = por %p153, %p154
    %p156 = scmp.ne.s32.totalorder %s148, %s151
    %p157 = scmp.eq.s32.totalorder %s13, 0
    %p158 = por %p156, %p157
    %p159 = scmp.ne.s32.totalorder %s148, %s151
    %p160 = scmp.eq.s32.totalorder %s18, 1
    %p161 = por %p159, %p160
    %p162 = scmp.ne.s32.totalorder %s151, %s152
    %p163 = scmp.eq.s32.totalorder %s18, 0
    %p164 = por %p162, %p163
    %p165 = scmp.ne.s32.totalorder %s151, %s152
    %p166 = scmp.eq.s32.totalorder %s19, 1
    %p167 = por %p165, %p166
    %p169 = scmp.ne.s32.totalorder %s152, %s168
    %p170 = scmp.eq.s32.totalorder %s19, 0
    %p171 = por %p169, %p170
    %s172 = ssub.s32 %s13, %s20
    %p173 = scmp.eq.s32.totalorder %s172, 0
    %s175 = sadd.s32 %s174, 1
    %s176 = scalar_select %p173, %s174, %s175
    %p179 = pneg %p173
    %p180 = scmp.eq.s32.totalorder %s13, 1
    %p181 = por %p179, %p180
    %p182 = scmp.ne.s32.totalorder %s174, %s177
    %p183 = scmp.eq.s32.totalorder %s13, 0
    %p184 = por %p182, %p183
    %p185 = scmp.ne.s32.totalorder %s174, %s177
    %p186 = scmp.eq.s32.totalorder %s18, 1
    %p187 = por %p185, %p186
    %p188 = scmp.ne.s32.totalorder %s177, %s178
    %p189 = scmp.eq.s32.totalorder %s18, 0
    %p190 = por %p188, %p189
    %p191 = scmp.ne.s32.totalorder %s177, %s178
    %p192 = scmp.eq.s32.totalorder %s19, 1
    %p193 = por %p191, %p192
    %p195 = scmp.ne.s32.totalorder %s178, %s194
    %p196 = scmp.eq.s32.totalorder %s19, 0
    %p197 = por %p195, %p196
    %s199 = sadd.s32 %s198, 1
    %p202 = scmp.eq.s32.totalorder %s13, 1
    %p203 = scmp.ne.s32.totalorder %s198, %s200
    %p204 = scmp.eq.s32.totalorder %s13, 0
    %p205 = por %p203, %p204
    %p206 = scmp.ne.s32.totalorder %s198, %s200
    %p207 = scmp.eq.s32.totalorder %s18, 1
    %p208 = por %p206, %p207
    %p209 = scmp.ne.s32.totalorder %s200, %s201
    %p210 = scmp.eq.s32.totalorder %s18, 0
    %p211 = por %p209, %p210
    %p212 = scmp.ne.s32.totalorder %s200, %s201
    %p213 = scmp.eq.s32.totalorder %s19, 1
    %p214 = por %p212, %p213
    %p216 = scmp.ne.s32.totalorder %s201, %s215
    %p217 = scmp.eq.s32.totalorder %s19, 0
    %p218 = por %p216, %p217
    %p219 = scmp.le.s32.totalorder 1, %s13
    %p220 = scmp.lt.s32.totalorder %s13, 3
    %p221 = pnand %p219, %p220
    %p222 = pneg %p221
    // Predicated region
    $region9: #{fconv_densenet_forward.7} parent=5 // pred_check
      _
    $region10: #{fconv_densenet_forward.7} parent=5 // pred_check_branch
      %224 = sbr.rel (%p221) target = $region12
    $region11: #{fconv_densenet_forward.7} parent=5 // pred_region
      %s225 = ssub.s32 %s13, 1
      // Predicated region
      $region13: #{fconv_densenet_forward.7} parent=11 // pred_check
        %p226 = pneg %p34
      $region14: #{fconv_densenet_forward.7} parent=11 // pred_check_branch
        %228 = sbr.rel (%p226) target = $region16
      $region15: #{fconv_densenet_forward.7} parent=11 // pred_region
        _
      $region16: #{fconv_densenet_forward.7} parent=11 // pred_fallthru
        _
    $region12: #{fconv_densenet_forward.7} parent=5 // pred_fallthru
      _
    %p229 = scmp.lt.s32.totalorder %s13, 2
    // Predicated region
    $region17: #{fconv_densenet_forward.7} parent=5 // pred_check
      %p230 = pneg %p229
    $region18: #{fconv_densenet_forward.7} parent=5 // pred_check_branch
      %232 = sbr.rel (%p230) target = $region20
    $region19: #{fconv_densenet_forward.7} parent=5 // pred_region
      // Predicated region
      $region21: #{fconv_densenet_forward.7} parent=19 // pred_check
        %p233 = pneg %p54
      $region22: #{fconv_densenet_forward.7} parent=19 // pred_check_branch
        %235 = sbr.rel (%p233) target = $region24
      $region23: #{fconv_densenet_forward.7} parent=19 // pred_region
        %p236 = scmp.lt.s32.totalorder %s13, 1
        %s237 = scalar_select %p236, %s13, 1
        %s238 = scalar_lea.vmem %s1, %s237
      $region24: #{fconv_densenet_forward.7} parent=19 // pred_fallthru
        _
      // Predicated region
      $region25: #{fconv_densenet_forward.7} parent=19 // pred_check
        %p239 = pneg %p80
      $region26: #{fconv_densenet_forward.7} parent=19 // pred_check_branch
        %241 = sbr.rel (%p239) target = $region28
      $region27: #{fconv_densenet_forward.7} parent=19 // pred_region
        %p242 = scmp.lt.s32.totalorder %s13, 1
        %s243 = scalar_select %p242, %s13, 1
        %s244 = scalar_lea.vmem %s2, %s243
      $region28: #{fconv_densenet_forward.7} parent=19 // pred_fallthru
        _
      // Predicated region
      $region29: #{fconv_densenet_forward.7} parent=19 // pred_check
        %p245 = pneg %p106
      $region30: #{fconv_densenet_forward.7} parent=19 // pred_check_branch
        %247 = sbr.rel (%p245) target = $region32
      $region31: #{fconv_densenet_forward.7} parent=19 // pred_region
        %p248 = scmp.lt.s32.totalorder %s13, 1
        %s249 = scalar_select %p248, %s13, 1
        %s250 = smul.addr %s249, 16
        %s251 = smul.addr %s250, 4
        %s252 = scalar_lea.vmem %s3, %s251
      $region32: #{fconv_densenet_forward.7} parent=19 // pred_fallthru
        _
      // Predicated region
      $region33: #{fconv_densenet_forward.7} parent=19 // pred_check
        %p253 = pneg %p132
      $region34: #{fconv_densenet_forward.7} parent=19 // pred_check_branch
        %255 = sbr.rel (%p253) target = $region36
      $region35: #{fconv_densenet_forward.7} parent=19 // pred_region
        %p256 = scmp.lt.s32.totalorder %s13, 1
        %s257 = scalar_select %p256, %s13, 1
        %s258 = scalar_lea.vmem %s4, %s257
      $region36: #{fconv_densenet_forward.7} parent=19 // pred_fallthru
        _
      // Predicated region
      $region37: #{fconv_densenet_forward.7} parent=19 // pred_check
        %p259 = pneg %p158
      $region38: #{fconv_densenet_forward.7} parent=19 // pred_check_branch
        %261 = sbr.rel (%p259) target = $region40
      $region39: #{fconv_densenet_forward.7} parent=19 // pred_region
        %p262 = scmp.lt.s32.totalorder %s13, 1
        %s263 = scalar_select %p262, %s13, 1
        %s264 = scalar_lea.vmem %s5, %s263
      $region40: #{fconv_densenet_forward.7} parent=19 // pred_fallthru
        _
      // Predicated region
      $region41: #{fconv_densenet_forward.7} parent=19 // pred_check
        %p265 = pneg %p184
      $region42: #{fconv_densenet_forward.7} parent=19 // pred_check_branch
        %267 = sbr.rel (%p265) target = $region44
      $region43: #{fconv_densenet_forward.7} parent=19 // pred_region
        %p268 = scmp.lt.s32.totalorder %s13, 1
        %s269 = scalar_select %p268, %s13, 1
        %s270 = smul.addr %s269, 48
        %s271 = smul.addr %s270, 4
        %s272 = scalar_lea.vmem %s6, %s271
      $region44: #{fconv_densenet_forward.7} parent=19 // pred_fallthru
        _
    $region20: #{fconv_densenet_forward.7} parent=5 // pred_fallthru
      _
    %p273 = scmp.le.s32.totalorder 1, %s13
    %p274 = scmp.lt.s32.totalorder %s13, 3
    %p275 = pnand %p273, %p274
    %p276 = pneg %p275
    // Predicated region
    $region45: #{fconv_densenet_forward.7} parent=5 // pred_check
      _
    $region46: #{fconv_densenet_forward.7} parent=5 // pred_check_branch
      %278 = sbr.rel (%p275) target = $region48
    $region47: #{fconv_densenet_forward.7} parent=5 // pred_region
      %s279 = ssub.s32 %s13, 1
      %p280 = pneg %p34
      %p281 = pneg %p31
      %p282 = scmp.lt.s32.totalorder %s18, 1
      %s283 = scalar_select %p282, %s18, 1
      %s284 = scalar_lea.vmem %s1, %s283
      %p285 = pneg %p60
      %p286 = pneg %p57
      %p287 = scmp.lt.s32.totalorder %s18, 1
      %s288 = scalar_select %p287, %s18, 1
      %s289 = scalar_lea.vmem %s2, %s288
      %p290 = pneg %p86
      %p291 = pneg %p83
      %p292 = scmp.lt.s32.totalorder %s18, 1
      %s293 = scalar_select %p292, %s18, 1
      %s294 = smul.addr %s293, 16
      %s295 = smul.addr %s294, 4
      %s296 = scalar_lea.vmem %s3, %s295
      %p297 = pneg %p112
      %p298 = pneg %p109
      %p299 = scmp.lt.s32.totalorder %s18, 1
      %s300 = scalar_select %p299, %s18, 1
      %s301 = scalar_lea.vmem %s4, %s300
      %p302 = pneg %p138
      %p303 = pneg %p135
      %p304 = scmp.lt.s32.totalorder %s18, 1
      %s305 = scalar_select %p304, %s18, 1
      %s306 = scalar_lea.vmem %s5, %s305
      %p307 = pneg %p164
      %p308 = pneg %p161
      %p309 = scmp.lt.s32.totalorder %s18, 1
      %s310 = scalar_select %p309, %s18, 1
      %s311 = smul.addr %s310, 48
      %s312 = smul.addr %s311, 4
      %s313 = scalar_lea.vmem %s6, %s312
      %p314 = pneg %p190
      %p315 = pneg %p187
      %p316 = pneg %p211
      %p317 = pneg %p208
      %p318 = scmp.lt.s32.totalorder %s18, 1
      %s319 = scalar_select %p318, %s18, 1
      %s320 = scalar_lea.vmem %s1, %s319
      %p321 = scmp.lt.s32.totalorder %s18, 1
      %s322 = scalar_select %p321, %s18, 1
      %s323 = scalar_lea.vmem %s2, %s322
      %p324 = scmp.lt.s32.totalorder %s18, 1
      %s325 = scalar_select %p324, %s18, 1
      %s326 = smul.addr %s325, 16
      %s327 = smul.addr %s326, 4
      %s328 = scalar_lea.vmem %s3, %s327
      %p329 = scmp.lt.s32.totalorder %s18, 1
      %s330 = scalar_select %p329, %s18, 1
      %s331 = scalar_lea.vmem %s4, %s330
      %p332 = scmp.lt.s32.totalorder %s18, 1
      %s333 = scalar_select %p332, %s18, 1
      %s334 = scalar_lea.vmem %s5, %s333
      %p335 = scmp.lt.s32.totalorder %s18, 1
      %s336 = scalar_select %p335, %s18, 1
      %s337 = smul.addr %s336, 48
      %s338 = smul.addr %s337, 4
      %s339 = scalar_lea.vmem %s6, %s338
      %p341 = scmp.eq.s32.totalorder %s18, 0
      // Predicated region
      $region49: #{fconv_densenet_forward.7} parent=47 // pred_check
        %p342 = pneg %p341
      $region50: #{fconv_densenet_forward.7} parent=47 // pred_check_branch
        %344 = sbr.rel (%p342) target = $region52
      $region51: #{fconv_densenet_forward.7} parent=47 // pred_region
        %v345 = vlaneseq
        %v346 = vand.u32 %v345, 127
        %vm347 = vcmp.lt.s32.totalorder %v346, 16
        %v348 = vld [vmem:[%s0] sm:$0xff]
        %v349 = vld [vmem:[%s0 + $0x8] sm:$0xff]
        %v350 = vld [vmem:[%s0 + $0x10] sm:$0xff]
        %v351 = vld [vmem:[%s0 + $0x18] sm:$0xff]
        %v352 = vld [vmem:[%s0 + $0x20] sm:$0xff]
        %v353 = vld [vmem:[%s0 + $0x28] sm:$0xff]
        %v354 = vld [vmem:[%s0 + $0x30] sm:$0xff]
        %v355 = vld [vmem:[%s0 + $0x38] sm:$0xff]
        %v356 = vld [vmem:[%s0 + $0x40] sm:$0xff]
        %v357 = vld [vmem:[%s0 + $0x48] sm:$0xff]
        %v358 = vld [vmem:[%s0 + $0x50] sm:$0xff]
        %v359 = vld [vmem:[%s0 + $0x58] sm:$0xff]
        %v360 = vld [vmem:[%s0 + $0x60] sm:$0xff]
        %v361 = vld [vmem:[%s0 + $0x68] sm:$0xff]
        %v362 = vld [vmem:[%s0 + $0x70] sm:$0xff]
        %v363 = vld [vmem:[%s0 + $0x78] sm:$0xff]
        %v364 = vsel %vm347, 1, 0
        %vm365 = vcmp.eq.s32.totalorder %v364, 1
        %v366 = vsel %vm365, %v348, 0.0
        %v367 = vsel %vm365, %v349, 0.0
        %v368 = vsel %vm365, %v350, 0.0
        %v369 = vsel %vm365, %v351, 0.0
        %v370 = vsel %vm365, %v352, 0.0
        %v371 = vsel %vm365, %v353, 0.0
        %v372 = vsel %vm365, %v354, 0.0
        %v373 = vsel %vm365, %v355, 0.0
        %v374 = vsel %vm365, %v356, 0.0
        %v375 = vsel %vm365, %v357, 0.0
        %v376 = vsel %vm365, %v358, 0.0
        %v377 = vsel %vm365, %v359, 0.0
        %v378 = vsel %vm365, %v360, 0.0
        %v379 = vsel %vm365, %v361, 0.0
        %v380 = vsel %vm365, %v362, 0.0
        %v381 = vsel %vm365, %v363, 0.0
        %382 = vst [vmem:[#allocation2] sm:$0xff] %v366
        %383 = vst [vmem:[#allocation2 + $0x8] sm:$0xff] %v367
        %384 = vst [vmem:[#allocation2 + $0x10] sm:$0xff] %v368
        %385 = vst [vmem:[#allocation2 + $0x18] sm:$0xff] %v369
        %386 = vst [vmem:[#allocation2 + $0x20] sm:$0xff] %v370
        %387 = vst [vmem:[#allocation2 + $0x28] sm:$0xff] %v371
        %388 = vst [vmem:[#allocation2 + $0x30] sm:$0xff] %v372
        %389 = vst [vmem:[#allocation2 + $0x38] sm:$0xff] %v373
        %390 = vst [vmem:[#allocation2 + $0x40] sm:$0xff] %v374
        %391 = vst [vmem:[#allocation2 + $0x48] sm:$0xff] %v375
        %392 = vst [vmem:[#allocation2 + $0x50] sm:$0xff] %v376
        %393 = vst [vmem:[#allocation2 + $0x58] sm:$0xff] %v377
        %394 = vst [vmem:[#allocation2 + $0x60] sm:$0xff] %v378
        %395 = vst [vmem:[#allocation2 + $0x68] sm:$0xff] %v379
        %396 = vst [vmem:[#allocation2 + $0x70] sm:$0xff] %v380
        %397 = vst [vmem:[#allocation2 + $0x78] sm:$0xff] %v381
        %398 = vst [vmem:[#allocation3] sm:$0xff] 0.0
        %399 = vst [vmem:[#allocation3 + $0x8] sm:$0xff] 0.0
        %400 = vst [vmem:[#allocation3 + $0x10] sm:$0xff] 0.0
        %401 = vst [vmem:[#allocation3 + $0x18] sm:$0xff] 0.0
        %402 = vst [vmem:[#allocation3 + $0x20] sm:$0xff] 0.0
        %403 = vst [vmem:[#allocation3 + $0x28] sm:$0xff] 0.0
        %404 = vst [vmem:[#allocation3 + $0x30] sm:$0xff] 0.0
        %405 = vst [vmem:[#allocation3 + $0x38] sm:$0xff] 0.0
        %406 = vst [vmem:[#allocation3 + $0x40] sm:$0xff] 0.0
        %407 = vst [vmem:[#allocation3 + $0x48] sm:$0xff] 0.0
        %408 = vst [vmem:[#allocation3 + $0x50] sm:$0xff] 0.0
        %409 = vst [vmem:[#allocation3 + $0x58] sm:$0xff] 0.0
        %410 = vst [vmem:[#allocation3 + $0x60] sm:$0xff] 0.0
        %411 = vst [vmem:[#allocation3 + $0x68] sm:$0xff] 0.0
        %412 = vst [vmem:[#allocation3 + $0x70] sm:$0xff] 0.0
        %413 = vst [vmem:[#allocation3 + $0x78] sm:$0xff] 0.0
        %414 = vst [vmem:[#allocation3 + $0x80] sm:$0xff] 0.0
        %415 = vst [vmem:[#allocation3 + $0x88] sm:$0xff] 0.0
        %416 = vst [vmem:[#allocation3 + $0x90] sm:$0x3] 0.0
      $region52: #{fconv_densenet_forward.7} parent=47 // pred_fallthru
        _
      %v417 = vld [vmem:[#allocation2] sm:$0xff]
      %v418 = vld [vmem:[#allocation2 + $0x8] sm:$0xff]
      %v419 = vld [vmem:[#allocation2 + $0x10] sm:$0xff]
      %v420 = vld [vmem:[#allocation2 + $0x18] sm:$0xff]
      %v421 = vld [vmem:[#allocation2 + $0x20] sm:$0xff]
      %v422 = vld [vmem:[#allocation2 + $0x28] sm:$0xff]
      %v423 = vld [vmem:[#allocation2 + $0x30] sm:$0xff]
      %v424 = vld [vmem:[#allocation2 + $0x38] sm:$0xff]
      %v425 = vld [vmem:[#allocation2 + $0x40] sm:$0xff]
      %v426 = vld [vmem:[#allocation2 + $0x48] sm:$0xff]
      %v427 = vld [vmem:[#allocation2 + $0x50] sm:$0xff]
      %v428 = vld [vmem:[#allocation2 + $0x58] sm:$0xff]
      %v429 = vld [vmem:[#allocation2 + $0x60] sm:$0xff]
      %v430 = vld [vmem:[#allocation2 + $0x68] sm:$0xff]
      %v431 = vld [vmem:[#allocation2 + $0x70] sm:$0xff]
      %v432 = vld [vmem:[#allocation2 + $0x78] sm:$0xff]
      %v433 = vadd.f32 %v417, %v418
      %v434 = vadd.f32 %v433, %v419
      %v435 = vadd.f32 %v434, %v420
      %v436 = vadd.f32 %v435, %v421
      %v437 = vadd.f32 %v436, %v422
      %v438 = vadd.f32 %v437, %v423
      %v439 = vadd.f32 %v438, %v424
      %v440 = vadd.f32 %v439, %v425
      %v441 = vadd.f32 %v440, %v426
      %v442 = vadd.f32 %v441, %v427
      %v443 = vadd.f32 %v442, %v428
      %v444 = vadd.f32 %v443, %v429
      %v445 = vadd.f32 %v444, %v430
      %v446 = vadd.f32 %v445, %v431
      %v447 = vadd.f32 %v446, %v432
      %v448 = vrot.slane %v447, 4
      %v449 = vadd.f32 %v447, %v448
      %v450 = vrot.slane %v449, 2
      %v451 = vadd.f32 %v449, %v450
      %v452 = vrot.slane %v451, 1
      %v453 = vadd.f32 %v451, %v452
      %v454 = vmul.f32 %v453, 0.0078125
      %v455 = vmul.f32 %v417, %v417
      %v456 = vmul.f32 %v418, %v418
      %v457 = vmul.f32 %v419, %v419
      %v458 = vmul.f32 %v420, %v420
      %v459 = vmul.f32 %v421, %v421
      %v460 = vmul.f32 %v422, %v422
      %v461 = vmul.f32 %v423, %v423
      %v462 = vmul.f32 %v424, %v424
      %v463 = vmul.f32 %v425, %v425
      %v464 = vmul.f32 %v426, %v426
      %v465 = vmul.f32 %v427, %v427
      %v466 = vmul.f32 %v428, %v428
      %v467 = vmul.f32 %v429, %v429
      %v468 = vmul.f32 %v430, %v430
      %v469 = vmul.f32 %v431, %v431
      %v470 = vmul.f32 %v432, %v432
      %v471 = vadd.f32 %v455, %v456
      %v472 = vadd.f32 %v471, %v457
      %v473 = vadd.f32 %v472, %v458
      %v474 = vadd.f32 %v473, %v459
      %v475 = vadd.f32 %v474, %v460
      %v476 = vadd.f32 %v475, %v461
      %v477 = vadd.f32 %v476, %v462
      %v478 = vadd.f32 %v477, %v463
      %v479 = vadd.f32 %v478, %v464
      %v480 = vadd.f32 %v479, %v465
      %v481 = vadd.f32 %v480, %v466
      %v482 = vadd.f32 %v481, %v467
      %v483 = vadd.f32 %v482, %v468
      %v484 = vadd.f32 %v483, %v469
      %v485 = vadd.f32 %v484, %v470
      %v486 = vrot.slane %v485, 4
      %v487 = vadd.f32 %v485, %v486
      %v488 = vrot.slane %v487, 2
      %v489 = vadd.f32 %v487, %v488
      %v490 = vrot.slane %v489, 1
      %v491 = vadd.f32 %v489, %v490
      %v492 = vmul.f32 %v491, 0.0078125
      %v493 = vmul.f32 %v454, %v454
      %v494 = vsub.f32 %v492, %v493
      %v495 = vmax.f32 %v494, 0.0
      %v496 = vld [vmem:[%s320] sm:$0x1]
      %v497 = vadd.f32 %v495, 1e-05
      %v498 = vrsqrt.pop %v497
      %v499 = vmul.f32 %v496, %v498
      %v501 = vlaneseq
      %v502 = vshrl.u32 %v501, 7
      %v503 = vsub.s32 0, %v502
      %v504 = vrot.slane %v499, %v503
      %v506 = vmul.f32 %v417, %v504
      %v507 = vmul.f32 %v418, %v504
      %v508 = vmul.f32 %v419, %v504
      %v509 = vmul.f32 %v420, %v504
      %v510 = vmul.f32 %v421, %v504
      %v511 = vmul.f32 %v422, %v504
      %v512 = vmul.f32 %v423, %v504
      %v513 = vmul.f32 %v424, %v504
      %v514 = vmul.f32 %v425, %v504
      %v515 = vmul.f32 %v426, %v504
      %v516 = vmul.f32 %v427, %v504
      %v517 = vmul.f32 %v428, %v504
      %v518 = vmul.f32 %v429, %v504
      %v519 = vmul.f32 %v430, %v504
      %v520 = vmul.f32 %v431, %v504
      %v521 = vmul.f32 %v432, %v504
      %v522 = vld [vmem:[%s323] sm:$0x1]
      %v523 = vmul.f32 %v454, %v499
      %v524 = vsub.f32 %v522, %v523
      %v526 = vlaneseq
      %v527 = vshrl.u32 %v526, 7
      %v528 = vsub.s32 0, %v527
      %v529 = vrot.slane %v524, %v528
      %v531 = vadd.f32 %v506, %v529
      %v532 = vadd.f32 %v507, %v529
      %v533 = vadd.f32 %v508, %v529
      %v534 = vadd.f32 %v509, %v529
      %v535 = vadd.f32 %v510, %v529
      %v536 = vadd.f32 %v511, %v529
      %v537 = vadd.f32 %v512, %v529
      %v538 = vadd.f32 %v513, %v529
      %v539 = vadd.f32 %v514, %v529
      %v540 = vadd.f32 %v515, %v529
      %v541 = vadd.f32 %v516, %v529
      %v542 = vadd.f32 %v517, %v529
      %v543 = vadd.f32 %v518, %v529
      %v544 = vadd.f32 %v519, %v529
      %v545 = vadd.f32 %v520, %v529
      %v546 = vadd.f32 %v521, %v529
      %v547 = vmax.f32 %v531, 0.0
      %v548 = vmax.f32 %v532, 0.0
      %v549 = vmax.f32 %v533, 0.0
      %v550 = vmax.f32 %v534, 0.0
      %v551 = vmax.f32 %v535, 0.0
      %v552 = vmax.f32 %v536, 0.0
      %v553 = vmax.f32 %v537, 0.0
      %v554 = vmax.f32 %v538, 0.0
      %v555 = vmax.f32 %v539, 0.0
      %v556 = vmax.f32 %v540, 0.0
      %v557 = vmax.f32 %v541, 0.0
      %v558 = vmax.f32 %v542, 0.0
      %v559 = vmax.f32 %v543, 0.0
      %v560 = vmax.f32 %v544, 0.0
      %v561 = vmax.f32 %v545, 0.0
      %v562 = vmax.f32 %v546, 0.0
      %v563 = vpack.c.bf16 %v548, %v547
      %v564 = vpack.c.bf16 %v550, %v549
      %v565 = vpack.c.bf16 %v552, %v551
      %v566 = vpack.c.bf16 %v554, %v553
      %v567 = vpack.c.bf16 %v556, %v555
      %v568 = vpack.c.bf16 %v558, %v557
      %v569 = vpack.c.bf16 %v560, %v559
      %v570 = vpack.c.bf16 %v562, %v561
      %v571 = vld [vmem:[%s328] sm:$0xf]
      %v572 = vld [vmem:[%s328 + $0x4] sm:$0xf]
      %v573 = vld [vmem:[%s328 + $0x8] sm:$0xf]
      %v574 = vld [vmem:[%s328 + $0xc] sm:$0xf]
      %v575 = vld [vmem:[%s328 + $0x10] sm:$0xf]
      %v576 = vld [vmem:[%s328 + $0x14] sm:$0xf]
      %v577 = vld [vmem:[%s328 + $0x18] sm:$0xf]
      %v578 = vld [vmem:[%s328 + $0x1c] sm:$0xf]
      %v579 = vld [vmem:[%s328 + $0x20] sm:$0xf]
      %v580 = vld [vmem:[%s328 + $0x24] sm:$0xf]
      %v581 = vld [vmem:[%s328 + $0x28] sm:$0xf]
      %v582 = vld [vmem:[%s328 + $0x2c] sm:$0xf]
      %v583 = vld [vmem:[%s328 + $0x30] sm:$0xf]
      %v584 = vld [vmem:[%s328 + $0x34] sm:$0xf]
      %v585 = vld [vmem:[%s328 + $0x38] sm:$0xf]
      %v586 = vld [vmem:[%s328 + $0x3c] sm:$0xf]
      %v603 = vunpack.c.l.b16 %v571
      %v604 = vunpack.c.l.b16 %v572
      %v605 = vunpack.c.l.b16 %v573
      %v606 = vunpack.c.l.b16 %v574
      %v607 = vunpack.c.l.b16 %v575
      %v608 = vunpack.c.l.b16 %v576
      %v609 = vunpack.c.l.b16 %v577
      %v610 = vunpack.c.l.b16 %v578
      %v611 = vunpack.c.l.b16 %v579
      %v612 = vunpack.c.l.b16 %v580
      %v613 = vunpack.c.l.b16 %v581
      %v614 = vunpack.c.l.b16 %v582
      %v615 = vunpack.c.l.b16 %v583
      %v616 = vunpack.c.l.b16 %v584
      %v617 = vunpack.c.l.b16 %v585
      %v618 = vunpack.c.l.b16 %v586
      %v619 = vpack.c.b16 %v604, %v603
      %v620 = vpack.c.b16 %v606, %v605
      %v621 = vpack.c.b16 %v608, %v607
      %v622 = vpack.c.b16 %v610, %v609
      %v623 = vpack.c.b16 %v612, %v611
      %v624 = vpack.c.b16 %v614, %v613
      %v625 = vpack.c.b16 %v616, %v615
      %v626 = vpack.c.b16 %v618, %v617
      %635 = vmatprep.subr.bf16.mxu0 0
      %636 = vmatpush1.bf16.msra.mxu0 %v619
      %637 = vmatprep.subr.bf16.mxu0 0
      %638 = vmatpush1.bf16.msra.mxu0 %v620
      %639 = vmatprep.subr.bf16.mxu0 0
      %640 = vmatpush1.bf16.msra.mxu0 %v621
      %641 = vmatprep.subr.bf16.mxu0 0
      %642 = vmatpush1.bf16.msra.mxu0 %v622
      %643 = vmatprep.subr.bf16.mxu0 0
      %644 = vmatpush1.bf16.msra.mxu0 %v623
      %645 = vmatprep.subr.bf16.mxu0 0
      %646 = vmatpush1.bf16.msra.mxu0 %v624
      %647 = vmatprep.subr.bf16.mxu0 0
      %648 = vmatpush1.bf16.msra.mxu0 %v625
      %649 = vmatprep.subr.bf16.mxu0 0
      %650 = vmatpush1.bf16.msra.mxu0 %v626
      %651 = vmatprep.subr.bf16.mxu0 0
      %652 = vmatpush1.bf16.msra.mxu0 0
      %653 = vmatprep.subr.bf16.mxu0 0
      %654 = vmatpush1.bf16.msra.mxu0 0
      %655 = vmatprep.subr.bf16.mxu0 0
      %656 = vmatpush1.bf16.msra.mxu0 0
      %657 = vmatprep.subr.bf16.mxu0 0
      %658 = vmatpush1.bf16.msra.mxu0 0
      %659 = vmatprep.subr.bf16.mxu0 0
      %660 = vmatpush1.bf16.msra.mxu0 0
      %661 = vmatprep.subr.bf16.mxu0 0
      %662 = vmatpush1.bf16.msra.mxu0 0
      %663 = vmatprep.subr.bf16.mxu0 0
      %664 = vmatpush1.bf16.msra.mxu0 0
      %665 = vmatprep.subr.bf16.mxu0 0
      %666 = vmatpush1.bf16.msra.mxu0 0
      %667 = vmatprep.mubr.bf16.mxu0 0
      %668 = vmatmul.mubr.bf16.gmra.mrb[0].mxu0 %v563
      %v669 = vpop.f32.mrb[0].mxu0
      %v670 = vadd.f32 0.0, %v669
      %v671 = vpop.f32.mrb[0].mxu0
      %v672 = vpop.f32.mrb[0].mxu0
      %v673 = vadd.f32 0.0, %v672
      %v674 = vpop.f32.mrb[0].mxu0
      %675 = vmatprep.mubr.bf16.mxu0 0
      %676 = vmatmul.mubr.bf16.gmra.mrb[0].mxu0 %v564
      %v677 = vpop.f32.mrb[0].mxu0
      %v678 = vadd.f32 0.0, %v677
      %v679 = vpop.f32.mrb[0].mxu0
      %v680 = vpop.f32.mrb[0].mxu0
      %v681 = vadd.f32 0.0, %v680
      %v682 = vpop.f32.mrb[0].mxu0
      %683 = vmatprep.mubr.bf16.mxu0 0
      %684 = vmatmul.mubr.bf16.gmra.mrb[0].mxu0 %v565
      %v685 = vpop.f32.mrb[0].mxu0
      %v686 = vadd.f32 0.0, %v685
      %v687 = vpop.f32.mrb[0].mxu0
      %v688 = vpop.f32.mrb[0].mxu0
      %v689 = vadd.f32 0.0, %v688
      %v690 = vpop.f32.mrb[0].mxu0
      %691 = vmatprep.mubr.bf16.mxu0 0
      %692 = vmatmul.mubr.bf16.gmra.mrb[0].mxu0 %v566
      %v693 = vpop.f32.mrb[0].mxu0
      %v694 = vadd.f32 0.0, %v693
      %v695 = vpop.f32.mrb[0].mxu0
      %v696 = vpop.f32.mrb[0].mxu0
      %v697 = vadd.f32 0.0, %v696
      %v698 = vpop.f32.mrb[0].mxu0
      %699 = vmatprep.mubr.bf16.mxu0 0
      %700 = vmatmul.mubr.bf16.gmra.mrb[0].mxu0 %v567
      %v701 = vpop.f32.mrb[0].mxu0
      %v702 = vadd.f32 0.0, %v701
      %v703 = vpop.f32.mrb[0].mxu0
      %v704 = vpop.f32.mrb[0].mxu0
      %v705 = vadd.f32 0.0, %v704
      %v706 = vpop.f32.mrb[0].mxu0
      %707 = vmatprep.mubr.bf16.mxu0 0
      %708 = vmatmul.mubr.bf16.gmra.mrb[0].mxu0 %v568
      %v709 = vpop.f32.mrb[0].mxu0
      %v710 = vadd.f32 0.0, %v709
      %v711 = vpop.f32.mrb[0].mxu0
      %v712 = vpop.f32.mrb[0].mxu0
      %v713 = vadd.f32 0.0, %v712
      %v714 = vpop.f32.mrb[0].mxu0
      %715 = vmatprep.mubr.bf16.mxu0 0
      %716 = vmatmul.mubr.bf16.gmra.mrb[0].mxu0 %v569
      %v717 = vpop.f32.mrb[0].mxu0
      %v718 = vadd.f32 0.0, %v717
      %v719 = vpop.f32.mrb[0].mxu0
      %v720 = vpop.f32.mrb[0].mxu0
      %v721 = vadd.f32 0.0, %v720
      %v722 = vpop.f32.mrb[0].mxu0
      %723 = vmatprep.mubr.bf16.mxu0 0
      %724 = vmatmul.mubr.bf16.gmra.mrb[0].mxu0 %v570
      %v725 = vpop.f32.mrb[0].mxu0
      %v726 = vadd.f32 0.0, %v725
      %v727 = vpop.f32.mrb[0].mxu0
      %v728 = vpop.f32.mrb[0].mxu0
      %v729 = vadd.f32 0.0, %v728
      %v730 = vpop.f32.mrb[0].mxu0
      %731 = vdwg.mxu0
      %v732 = vadd.f32 %v670, %v673
      %v733 = vadd.f32 %v732, %v678
      %v734 = vadd.f32 %v733, %v681
      %v735 = vadd.f32 %v734, %v686
      %v736 = vadd.f32 %v735, %v689
      %v737 = vadd.f32 %v736, %v694
      %v738 = vadd.f32 %v737, %v697
      %v739 = vadd.f32 %v738, %v702
      %v740 = vadd.f32 %v739, %v705
      %v741 = vadd.f32 %v740, %v710
      %v742 = vadd.f32 %v741, %v713
      %v743 = vadd.f32 %v742, %v718
      %v744 = vadd.f32 %v743, %v721
      %v745 = vadd.f32 %v744, %v726
      %v746 = vadd.f32 %v745, %v729
      %v747 = vrot.slane %v746, 4
      %v748 = vadd.f32 %v746, %v747
      %v749 = vrot.slane %v748, 2
      %v750 = vadd.f32 %v748, %v749
      %v751 = vrot.slane %v750, 1
      %v752 = vadd.f32 %v750, %v751
      %v753 = vmul.f32 %v752, 0.0078125
      %v754 = vmul.f32 %v670, %v670
      %v755 = vmul.f32 %v673, %v673
      %v756 = vmul.f32 %v678, %v678
      %v757 = vmul.f32 %v681, %v681
      %v758 = vmul.f32 %v686, %v686
      %v759 = vmul.f32 %v689, %v689
      %v760 = vmul.f32 %v694, %v694
      %v761 = vmul.f32 %v697, %v697
      %v762 = vmul.f32 %v702, %v702
      %v763 = vmul.f32 %v705, %v705
      %v764 = vmul.f32 %v710, %v710
      %v765 = vmul.f32 %v713, %v713
      %v766 = vmul.f32 %v718, %v718
      %v767 = vmul.f32 %v721, %v721
      %v768 = vmul.f32 %v726, %v726
      %v769 = vmul.f32 %v729, %v729
      %v770 = vadd.f32 %v754, %v755
      %v771 = vadd.f32 %v770, %v756
      %v772 = vadd.f32 %v771, %v757
      %v773 = vadd.f32 %v772, %v758
      %v774 = vadd.f32 %v773, %v759
      %v775 = vadd.f32 %v774, %v760
      %v776 = vadd.f32 %v775, %v761
      %v777 = vadd.f32 %v776, %v762
      %v778 = vadd.f32 %v777, %v763
      %v779 = vadd.f32 %v778, %v764
      %v780 = vadd.f32 %v779, %v765
      %v781 = vadd.f32 %v780, %v766
      %v782 = vadd.f32 %v781, %v767
      %v783 = vadd.f32 %v782, %v768
      %v784 = vadd.f32 %v783, %v769
      %v785 = vrot.slane %v784, 4
      %v786 = vadd.f32 %v784, %v785
      %v787 = vrot.slane %v786, 2
      %v788 = vadd.f32 %v786, %v787
      %v789 = vrot.slane %v788, 1
      %v790 = vadd.f32 %v788, %v789
      %v791 = vmul.f32 %v790, 0.0078125
      %v792 = vmul.f32 %v753, %v753
      %v793 = vsub.f32 %v791, %v792
      %v794 = vmax.f32 %v793, 0.0
      %v795 = vld [vmem:[%s331] sm:$0x1]
      %v796 = vadd.f32 %v794, 1e-05
      %v797 = vrsqrt.pop %v796
      %v798 = vmul.f32 %v795, %v797
      %v800 = vlaneseq
      %v801 = vshrl.u32 %v800, 7
      %v802 = vsub.s32 0, %v801
      %v803 = vrot.slane %v798, %v802
      %v805 = vmul.f32 %v670, %v803
      %v806 = vmul.f32 %v673, %v803
      %v807 = vmul.f32 %v678, %v803
      %v808 = vmul.f32 %v681, %v803
      %v809 = vmul.f32 %v686, %v803
      %v810 = vmul.f32 %v689, %v803
      %v811 = vmul.f32 %v694, %v803
      %v812 = vmul.f32 %v697, %v803
      %v813 = vmul.f32 %v702, %v803
      %v814 = vmul.f32 %v705, %v803
      %v815 = vmul.f32 %v710, %v803
      %v816 = vmul.f32 %v713, %v803
      %v817 = vmul.f32 %v718, %v803
      %v818 = vmul.f32 %v721, %v803
      %v819 = vmul.f32 %v726, %v803
      %v820 = vmul.f32 %v729, %v803
      %v821 = vld [vmem:[%s334] sm:$0x1]
      %v822 = vmul.f32 %v753, %v798
      %v823 = vsub.f32 %v821, %v822
      %v825 = vlaneseq
      %v826 = vshrl.u32 %v825, 7
      %v827 = vsub.s32 0, %v826
      %v828 = vrot.slane %v823, %v827
      %v830 = vadd.f32 %v805, %v828
      %v831 = vadd.f32 %v806, %v828
      %v832 = vadd.f32 %v807, %v828
      %v833 = vadd.f32 %v808, %v828
      %v834 = vadd.f32 %v809, %v828
      %v835 = vadd.f32 %v810, %v828
      %v836 = vadd.f32 %v811, %v828
      %v837 = vadd.f32 %v812, %v828
      %v838 = vadd.f32 %v813, %v828
      %v839 = vadd.f32 %v814, %v828
      %v840 = vadd.f32 %v815, %v828
      %v841 = vadd.f32 %v816, %v828
      %v842 = vadd.f32 %v817, %v828
      %v843 = vadd.f32 %v818, %v828
      %v844 = vadd.f32 %v819, %v828
      %v845 = vadd.f32 %v820, %v828
      %v846 = vmax.f32 %v830, 0.0
      %v847 = vmax.f32 %v831, 0.0
      %v848 = vmax.f32 %v832, 0.0
      %v849 = vmax.f32 %v833, 0.0
      %v850 = vmax.f32 %v834, 0.0
      %v851 = vmax.f32 %v835, 0.0
      %v852 = vmax.f32 %v836, 0.0
      %v853 = vmax.f32 %v837, 0.0
      %v854 = vmax.f32 %v838, 0.0
      %v855 = vmax.f32 %v839, 0.0
      %v856 = vmax.f32 %v840, 0.0
      %v857 = vmax.f32 %v841, 0.0
      %v858 = vmax.f32 %v842, 0.0
      %v859 = vmax.f32 %v843, 0.0
      %v860 = vmax.f32 %v844, 0.0
      %v861 = vmax.f32 %v845, 0.0
      %862 = vst [vmem:[#allocation3 + $0x9] sm:$0xff] %v846
      %863 = vst [vmem:[#allocation3 + $0x11] sm:$0xff] %v847
      %864 = vst [vmem:[#allocation3 + $0x19] sm:$0xff] %v848
      %865 = vst [vmem:[#allocation3 + $0x21] sm:$0xff] %v849
      %866 = vst [vmem:[#allocation3 + $0x29] sm:$0xff] %v850
      %867 = vst [vmem:[#allocation3 + $0x31] sm:$0xff] %v851
      %868 = vst [vmem:[#allocation3 + $0x39] sm:$0xff] %v852
      %869 = vst [vmem:[#allocation3 + $0x41] sm:$0xff] %v853
      %870 = vst [vmem:[#allocation3 + $0x49] sm:$0xff] %v854
      %871 = vst [vmem:[#allocation3 + $0x51] sm:$0xff] %v855
      %872 = vst [vmem:[#allocation3 + $0x59] sm:$0xff] %v856
      %873 = vst [vmem:[#allocation3 + $0x61] sm:$0xff] %v857
      %874 = vst [vmem:[#allocation3 + $0x69] sm:$0xff] %v858
      %875 = vst [vmem:[#allocation3 + $0x71] sm:$0xff] %v859
      %876 = vst [vmem:[#allocation3 + $0x79] sm:$0xff] %v860
      %877 = vst [vmem:[#allocation3 + $0x81] sm:$0xff] %v861
      %v878 = vlaneseq
      %v879 = vshrl.u32 %v878, 7
      %v880 = vadd.s32 %v879, 8
      %v881 = vadd.s32 %v879, 16
      %v882 = vadd.s32 %v879, 24
      %v883 = vadd.s32 %v879, 32
      %v884 = vadd.s32 %v879, 40
      %v885 = vadd.s32 %v879, 48
      %v886 = vadd.s32 %v879, 56
      %v887 = vadd.s32 %v879, 64
      %v888 = vadd.s32 %v879, 72
      %v889 = vadd.s32 %v879, 80
      %v890 = vadd.s32 %v879, 88
      %v891 = vadd.s32 %v879, 96
      %v892 = vadd.s32 %v879, 104
      %v893 = vadd.s32 %v879, 112
      %v894 = vadd.s32 %v879, 120
      %v895 = vand.u32 %v879, 7
      %v896 = vand.u32 %v880, 7
      %v897 = vand.u32 %v881, 7
      %v898 = vand.u32 %v882, 7
      %v899 = vand.u32 %v883, 7
      %v900 = vand.u32 %v884, 7
      %v901 = vand.u32 %v885, 7
      %v902 = vand.u32 %v886, 7
      %v903 = vand.u32 %v887, 7
      %v904 = vand.u32 %v888, 7
      %v905 = vand.u32 %v889, 7
      %v906 = vand.u32 %v890, 7
      %v907 = vand.u32 %v891, 7
      %v908 = vand.u32 %v892, 7
      %v909 = vand.u32 %v893, 7
      %v910 = vand.u32 %v894, 7
      %v911 = vand.u32 %v879, 63
      %v912 = vand.u32 %v880, 63
      %v913 = vand.u32 %v881, 63
      %v914 = vand.u32 %v882, 63
      %v915 = vand.u32 %v883, 63
      %v916 = vand.u32 %v884, 63
      %v917 = vand.u32 %v885, 63
      %v918 = vand.u32 %v886, 63
      %v919 = vand.u32 %v887, 63
      %v920 = vand.u32 %v888, 63
      %v921 = vand.u32 %v889, 63
      %v922 = vand.u32 %v890, 63
      %v923 = vand.u32 %v891, 63
      %v924 = vand.u32 %v892, 63
      %v925 = vand.u32 %v893, 63
      %v926 = vand.u32 %v894, 63
      %v927 = vshra.s32 %v911, 3
      %v928 = vshra.s32 %v912, 3
      %v929 = vshra.s32 %v913, 3
      %v930 = vshra.s32 %v914, 3
      %v931 = vshra.s32 %v915, 3
      %v932 = vshra.s32 %v916, 3
      %v933 = vshra.s32 %v917, 3
      %v934 = vshra.s32 %v918, 3
      %v935 = vshra.s32 %v919, 3
      %v936 = vshra.s32 %v920, 3
      %v937 = vshra.s32 %v921, 3
      %v938 = vshra.s32 %v922, 3
      %v939 = vshra.s32 %v923, 3
      %v940 = vshra.s32 %v924, 3
      %v941 = vshra.s32 %v925, 3
      %v942 = vshra.s32 %v926, 3
      %vm943 = vcmp.ge.s32.totalorder %v927, 1
      %vm944 = vcmp.ge.s32.totalorder %v928, 1
      %vm945 = vcmp.ge.s32.totalorder %v929, 1
      %vm946 = vcmp.ge.s32.totalorder %v930, 1
      %vm947 = vcmp.ge.s32.totalorder %v931, 1
      %vm948 = vcmp.ge.s32.totalorder %v932, 1
      %vm949 = vcmp.ge.s32.totalorder %v933, 1
      %vm950 = vcmp.ge.s32.totalorder %v934, 1
      %vm951 = vcmp.ge.s32.totalorder %v935, 1
      %vm952 = vcmp.ge.s32.totalorder %v936, 1
      %vm953 = vcmp.ge.s32.totalorder %v937, 1
      %vm954 = vcmp.ge.s32.totalorder %v938, 1
      %vm955 = vcmp.ge.s32.totalorder %v939, 1
      %vm956 = vcmp.ge.s32.totalorder %v940, 1
      %vm957 = vcmp.ge.s32.totalorder %v941, 1
      %vm958 = vcmp.ge.s32.totalorder %v942, 1
      %v959 = vsel %vm943, 1, 0
      %v960 = vsel %vm944, 1, 0
      %v961 = vsel %vm945, 1, 0
      %v962 = vsel %vm946, 1, 0
      %v963 = vsel %vm947, 1, 0
      %v964 = vsel %vm948, 1, 0
      %v965 = vsel %vm949, 1, 0
      %v966 = vsel %vm950, 1, 0
      %v967 = vsel %vm951, 1, 0
      %v968 = vsel %vm952, 1, 0
      %v969 = vsel %vm953, 1, 0
      %v970 = vsel %vm954, 1, 0
      %v971 = vsel %vm955, 1, 0
      %v972 = vsel %vm956, 1, 0
      %v973 = vsel %vm957, 1, 0
      %v974 = vsel %vm958, 1, 0
      %v975 = vcvt.s32.f32 %v959
      %v976 = vcvt.s32.f32 %v960
      %v977 = vcvt.s32.f32 %v961
      %v978 = vcvt.s32.f32 %v962
      %v979 = vcvt.s32.f32 %v963
      %v980 = vcvt.s32.f32 %v964
      %v981 = vcvt.s32.f32 %v965
      %v982 = vcvt.s32.f32 %v966
      %v983 = vcvt.s32.f32 %v967
      %v984 = vcvt.s32.f32 %v968
      %v985 = vcvt.s32.f32 %v969
      %v986 = vcvt.s32.f32 %v970
      %v987 = vcvt.s32.f32 %v971
      %v988 = vcvt.s32.f32 %v972
      %v989 = vcvt.s32.f32 %v973
      %v990 = vcvt.s32.f32 %v974
      %vm991 = vcmp.lt.s32.totalorder %v927, 7
      %vm992 = vcmp.lt.s32.totalorder %v928, 7
      %vm993 = vcmp.lt.s32.totalorder %v929, 7
      %vm994 = vcmp.lt.s32.totalorder %v930, 7
      %vm995 = vcmp.lt.s32.totalorder %v931, 7
      %vm996 = vcmp.lt.s32.totalorder %v932, 7
      %vm997 = vcmp.lt.s32.totalorder %v933, 7
      %vm998 = vcmp.lt.s32.totalorder %v934, 7
      %vm999 = vcmp.lt.s32.totalorder %v935, 7
      %vm1000 = vcmp.lt.s32.totalorder %v936, 7
      %vm1001 = vcmp.lt.s32.totalorder %v937, 7
      %vm1002 = vcmp.lt.s32.totalorder %v938, 7
      %vm1003 = vcmp.lt.s32.totalorder %v939, 7
      %vm1004 = vcmp.lt.s32.totalorder %v940, 7
      %vm1005 = vcmp.lt.s32.totalorder %v941, 7
      %vm1006 = vcmp.lt.s32.totalorder %v942, 7
      %v1007 = vsel %vm991, 1, 0
      %v1008 = vsel %vm992, 1, 0
      %v1009 = vsel %vm993, 1, 0
      %v1010 = vsel %vm994, 1, 0
      %v1011 = vsel %vm995, 1, 0
      %v1012 = vsel %vm996, 1, 0
      %v1013 = vsel %vm997, 1, 0
      %v1014 = vsel %vm998, 1, 0
      %v1015 = vsel %vm999, 1, 0
      %v1016 = vsel %vm1000, 1, 0
      %v1017 = vsel %vm1001, 1, 0
      %v1018 = vsel %vm1002, 1, 0
      %v1019 = vsel %vm1003, 1, 0
      %v1020 = vsel %vm1004, 1, 0
      %v1021 = vsel %vm1005, 1, 0
      %v1022 = vsel %vm1006, 1, 0
      %v1023 = vcvt.s32.f32 %v1007
      %v1024 = vcvt.s32.f32 %v1008
      %v1025 = vcvt.s32.f32 %v1009
      %v1026 = vcvt.s32.f32 %v1010
      %v1027 = vcvt.s32.f32 %v1011
      %v1028 = vcvt.s32.f32 %v1012
      %v1029 = vcvt.s32.f32 %v1013
      %v1030 = vcvt.s32.f32 %v1014
      %v1031 = vcvt.s32.f32 %v1015
      %v1032 = vcvt.s32.f32 %v1016
      %v1033 = vcvt.s32.f32 %v1017
      %v1034 = vcvt.s32.f32 %v1018
      %v1035 = vcvt.s32.f32 %v1019
      %v1036 = vcvt.s32.f32 %v1020
      %v1037 = vcvt.s32.f32 %v1021
      %v1038 = vcvt.s32.f32 %v1022
      %vm1039 = vcmp.ge.s32.totalorder %v895, 1
      %vm1040 = vcmp.ge.s32.totalorder %v896, 1
      %vm1041 = vcmp.ge.s32.totalorder %v897, 1
      %vm1042 = vcmp.ge.s32.totalorder %v898, 1
      %vm1043 = vcmp.ge.s32.totalorder %v899, 1
      %vm1044 = vcmp.ge.s32.totalorder %v900, 1
      %vm1045 = vcmp.ge.s32.totalorder %v901, 1
      %vm1046 = vcmp.ge.s32.totalorder %v902, 1
      %vm1047 = vcmp.ge.s32.totalorder %v903, 1
      %vm1048 = vcmp.ge.s32.totalorder %v904, 1
      %vm1049 = vcmp.ge.s32.totalorder %v905, 1
      %vm1050 = vcmp.ge.s32.totalorder %v906, 1
      %vm1051 = vcmp.ge.s32.totalorder %v907, 1
      %vm1052 = vcmp.ge.s32.totalorder %v908, 1
      %vm1053 = vcmp.ge.s32.totalorder %v909, 1
      %vm1054 = vcmp.ge.s32.totalorder %v910, 1
      %v1055 = vsel %vm1039, 1, 0
      %v1056 = vsel %vm1040, 1, 0
      %v1057 = vsel %vm1041, 1, 0
      %v1058 = vsel %vm1042, 1, 0
      %v1059 = vsel %vm1043, 1, 0
      %v1060 = vsel %vm1044, 1, 0
      %v1061 = vsel %vm1045, 1, 0
      %v1062 = vsel %vm1046, 1, 0
      %v1063 = vsel %vm1047, 1, 0
      %v1064 = vsel %vm1048, 1, 0
      %v1065 = vsel %vm1049, 1, 0
      %v1066 = vsel %vm1050, 1, 0
      %v1067 = vsel %vm1051, 1, 0
      %v1068 = vsel %vm1052, 1, 0
      %v1069 = vsel %vm1053, 1, 0
      %v1070 = vsel %vm1054, 1, 0
      %v1071 = vcvt.s32.f32 %v1055
      %v1072 = vcvt.s32.f32 %v1056
      %v1073 = vcvt.s32.f32 %v1057
      %v1074 = vcvt.s32.f32 %v1058
      %v1075 = vcvt.s32.f32 %v1059
      %v1076 = vcvt.s32.f32 %v1060
      %v1077 = vcvt.s32.f32 %v1061
      %v1078 = vcvt.s32.f32 %v1062
      %v1079 = vcvt.s32.f32 %v1063
      %v1080 = vcvt.s32.f32 %v1064
      %v1081 = vcvt.s32.f32 %v1065
      %v1082 = vcvt.s32.f32 %v1066
      %v1083 = vcvt.s32.f32 %v1067
      %v1084 = vcvt.s32.f32 %v1068
      %v1085 = vcvt.s32.f32 %v1069
      %v1086 = vcvt.s32.f32 %v1070
      %vm1087 = vcmp.lt.s32.totalorder %v895, 7
      %vm1088 = vcmp.lt.s32.totalorder %v896, 7
      %vm1089 = vcmp.lt.s32.totalorder %v897, 7
      %vm1090 = vcmp.lt.s32.totalorder %v898, 7
      %vm1091 = vcmp.lt.s32.totalorder %v899, 7
      %vm1092 = vcmp.lt.s32.totalorder %v900, 7
      %vm1093 = vcmp.lt.s32.totalorder %v901, 7
      %vm1094 = vcmp.lt.s32.totalorder %v902, 7
      %vm1095 = vcmp.lt.s32.totalorder %v903, 7
      %vm1096 = vcmp.lt.s32.totalorder %v904, 7
      %vm1097 = vcmp.lt.s32.totalorder %v905, 7
      %vm1098 = vcmp.lt.s32.totalorder %v906, 7
      %vm1099 = vcmp.lt.s32.totalorder %v907, 7
      %vm1100 = vcmp.lt.s32.totalorder %v908, 7
      %vm1101 = vcmp.lt.s32.totalorder %v909, 7
      %vm1102 = vcmp.lt.s32.totalorder %v910, 7
      %v1103 = vsel %vm1087, 1, 0
      %v1104 = vsel %vm1088, 1, 0
      %v1105 = vsel %vm1089, 1, 0
      %v1106 = vsel %vm1090, 1, 0
      %v1107 = vsel %vm1091, 1, 0
      %v1108 = vsel %vm1092, 1, 0
      %v1109 = vsel %vm1093, 1, 0
      %v1110 = vsel %vm1094, 1, 0
      %v1111 = vsel %vm1095, 1, 0
      %v1112 = vsel %vm1096, 1, 0
      %v1113 = vsel %vm1097, 1, 0
      %v1114 = vsel %vm1098, 1, 0
      %v1115 = vsel %vm1099, 1, 0
      %v1116 = vsel %vm1100, 1, 0
      %v1117 = vsel %vm1101, 1, 0
      %v1118 = vsel %vm1102, 1, 0
      %v1119 = vcvt.s32.f32 %v1103
      %v1120 = vcvt.s32.f32 %v1104
      %v1121 = vcvt.s32.f32 %v1105
      %v1122 = vcvt.s32.f32 %v1106
      %v1123 = vcvt.s32.f32 %v1107
      %v1124 = vcvt.s32.f32 %v1108
      %v1125 = vcvt.s32.f32 %v1109
      %v1126 = vcvt.s32.f32 %v1110
      %v1127 = vcvt.s32.f32 %v1111
      %v1128 = vcvt.s32.f32 %v1112
      %v1129 = vcvt.s32.f32 %v1113
      %v1130 = vcvt.s32.f32 %v1114
      %v1131 = vcvt.s32.f32 %v1115
      %v1132 = vcvt.s32.f32 %v1116
      %v1133 = vcvt.s32.f32 %v1117
      %v1134 = vcvt.s32.f32 %v1118
      %v1135 = vlaneseq
      %v1136 = vand.u32 %v1135, 127
      %v1137 = vld [vmem:[#allocation3] sm:$0xff]
      %v1138 = vld [vmem:[#allocation3 + $0x8] sm:$0xff]
      %v1139 = vld [vmem:[#allocation3 + $0x10] sm:$0xff]
      %v1140 = vld [vmem:[#allocation3 + $0x18] sm:$0xff]
      %v1141 = vld [vmem:[#allocation3 + $0x20] sm:$0xff]
      %v1142 = vld [vmem:[#allocation3 + $0x28] sm:$0xff]
      %v1143 = vld [vmem:[#allocation3 + $0x30] sm:$0xff]
      %v1144 = vld [vmem:[#allocation3 + $0x38] sm:$0xff]
      %v1145 = vld [vmem:[#allocation3 + $0x40] sm:$0xff]
      %v1146 = vld [vmem:[#allocation3 + $0x48] sm:$0xff]
      %v1147 = vld [vmem:[#allocation3 + $0x50] sm:$0xff]
      %v1148 = vld [vmem:[#allocation3 + $0x58] sm:$0xff]
      %v1149 = vld [vmem:[#allocation3 + $0x60] sm:$0xff]
      %v1150 = vld [vmem:[#allocation3 + $0x68] sm:$0xff]
      %v1151 = vld [vmem:[#allocation3 + $0x70] sm:$0xff]
      %v1152 = vld [vmem:[#allocation3 + $0x78] sm:$0xff]
      %vm1153 = vcmp.ge.s32.totalorder %v1136, 0
      %vm1154 = vcmp.lt.s32.totalorder %v1136, 32
      %vm1155 = vmand %vm1153, %vm1154
      %v1156 = vsel %vm1155, 1, 0
      %v1157 = vcvt.s32.f32 %v1156
      %v1158 = vmul.f32 %v975, %v1071
      %v1159 = vmul.f32 %v976, %v1072
      %v1160 = vmul.f32 %v977, %v1073
      %v1161 = vmul.f32 %v978, %v1074
      %v1162 = vmul.f32 %v979, %v1075
      %v1163 = vmul.f32 %v980, %v1076
      %v1164 = vmul.f32 %v981, %v1077
      %v1165 = vmul.f32 %v982, %v1078
      %v1166 = vmul.f32 %v983, %v1079
      %v1167 = vmul.f32 %v984, %v1080
      %v1168 = vmul.f32 %v985, %v1081
      %v1169 = vmul.f32 %v986, %v1082
      %v1170 = vmul.f32 %v987, %v1083
      %v1171 = vmul.f32 %v988, %v1084
      %v1172 = vmul.f32 %v989, %v1085
      %v1173 = vmul.f32 %v990, %v1086
      %v1174 = vmul.f32 %v1158, %v1157
      %v1175 = vmul.f32 %v1159, %v1157
      %v1176 = vmul.f32 %v1160, %v1157
      %v1177 = vmul.f32 %v1161, %v1157
      %v1178 = vmul.f32 %v1162, %v1157
      %v1179 = vmul.f32 %v1163, %v1157
      %v1180 = vmul.f32 %v1164, %v1157
      %v1181 = vmul.f32 %v1165, %v1157
      %v1182 = vmul.f32 %v1166, %v1157
      %v1183 = vmul.f32 %v1167, %v1157
      %v1184 = vmul.f32 %v1168, %v1157
      %v1185 = vmul.f32 %v1169, %v1157
      %v1186 = vmul.f32 %v1170, %v1157
      %v1187 = vmul.f32 %v1171, %v1157
      %v1188 = vmul.f32 %v1172, %v1157
      %v1189 = vmul.f32 %v1173, %v1157
      %v1190 = vmul.f32 %v1137, %v1174
      %v1191 = vmul.f32 %v1138, %v1175
      %v1192 = vmul.f32 %v1139, %v1176
      %v1193 = vmul.f32 %v1140, %v1177
      %v1194 = vmul.f32 %v1141, %v1178
      %v1195 = vmul.f32 %v1142, %v1179
      %v1196 = vmul.f32 %v1143, %v1180
      %v1197 = vmul.f32 %v1144, %v1181
      %v1198 = vmul.f32 %v1145, %v1182
      %v1199 = vmul.f32 %v1146, %v1183
      %v1200 = vmul.f32 %v1147, %v1184
      %v1201 = vmul.f32 %v1148, %v1185
      %v1202 = vmul.f32 %v1149, %v1186
      %v1203 = vmul.f32 %v1150, %v1187
      %v1204 = vmul.f32 %v1151, %v1188
      %v1205 = vmul.f32 %v1152, %v1189
      %v1206 = vld [vmem:[#allocation3 + $0x1] sm:$0xff]
      %v1207 = vld [vmem:[#allocation3 + $0x9] sm:$0xff]
      %v1208 = vld [vmem:[#allocation3 + $0x11] sm:$0xff]
      %v1209 = vld [vmem:[#allocation3 + $0x19] sm:$0xff]
      %v1210 = vld [vmem:[#allocation3 + $0x21] sm:$0xff]
      %v1211 = vld [vmem:[#allocation3 + $0x29] sm:$0xff]
      %v1212 = vld [vmem:[#allocation3 + $0x31] sm:$0xff]
      %v1213 = vld [vmem:[#allocation3 + $0x39] sm:$0xff]
      %v1214 = vld [vmem:[#allocation3 + $0x41] sm:$0xff]
      %v1215 = vld [vmem:[#allocation3 + $0x49] sm:$0xff]
      %v1216 = vld [vmem:[#allocation3 + $0x51] sm:$0xff]
      %v1217 = vld [vmem:[#allocation3 + $0x59] sm:$0xff]
      %v1218 = vld [vmem:[#allocation3 + $0x61] sm:$0xff]
      %v1219 = vld [vmem:[#allocation3 + $0x69] sm:$0xff]
      %v1220 = vld [vmem:[#allocation3 + $0x71] sm:$0xff]
      %v1221 = vld [vmem:[#allocation3 + $0x79] sm:$0xff]
      %vm1222 = vcmp.ge.s32.totalorder %v1136, 32
      %vm1223 = vcmp.lt.s32.totalorder %v1136, 64
      %vm1224 = vmand %vm1222, %vm1223
      %v1225 = vsel %vm1224, 1, 0
      %v1226 = vcvt.s32.f32 %v1225
      %v1227 = vmul.f32 %v975, %v1226
      %v1228 = vmul.f32 %v976, %v1226
      %v1229 = vmul.f32 %v977, %v1226
      %v1230 = vmul.f32 %v978, %v1226
      %v1231 = vmul.f32 %v979, %v1226
      %v1232 = vmul.f32 %v980, %v1226
      %v1233 = vmul.f32 %v981, %v1226
      %v1234 = vmul.f32 %v982, %v1226
      %v1235 = vmul.f32 %v983, %v1226
      %v1236 = vmul.f32 %v984, %v1226
      %v1237 = vmul.f32 %v985, %v1226
      %v1238 = vmul.f32 %v986, %v1226
      %v1239 = vmul.f32 %v987, %v1226
      %v1240 = vmul.f32 %v988, %v1226
      %v1241 = vmul.f32 %v989, %v1226
      %v1242 = vmul.f32 %v990, %v1226
      %v1243 = vmul.f32 %v1206, %v1227
      %v1244 = vmul.f32 %v1207, %v1228
      %v1245 = vmul.f32 %v1208, %v1229
      %v1246 = vmul.f32 %v1209, %v1230
      %v1247 = vmul.f32 %v1210, %v1231
      %v1248 = vmul.f32 %v1211, %v1232
      %v1249 = vmul.f32 %v1212, %v1233
      %v1250 = vmul.f32 %v1213, %v1234
      %v1251 = vmul.f32 %v1214, %v1235
      %v1252 = vmul.f32 %v1215, %v1236
      %v1253 = vmul.f32 %v1216, %v1237
      %v1254 = vmul.f32 %v1217, %v1238
      %v1255 = vmul.f32 %v1218, %v1239
      %v1256 = vmul.f32 %v1219, %v1240
      %v1257 = vmul.f32 %v1220, %v1241
      %v1258 = vmul.f32 %v1221, %v1242
      %v1259 = vadd.f32 %v1190, %v1243
      %v1260 = vadd.f32 %v1191, %v1244
      %v1261 = vadd.f32 %v1192, %v1245
      %v1262 = vadd.f32 %v1193, %v1246
      %v1263 = vadd.f32 %v1194, %v1247
      %v1264 = vadd.f32 %v1195, %v1248
      %v1265 = vadd.f32 %v1196, %v1249
      %v1266 = vadd.f32 %v1197, %v1250
      %v1267 = vadd.f32 %v1198, %v1251
      %v1268 = vadd.f32 %v1199, %v1252
      %v1269 = vadd.f32 %v1200, %v1253
      %v1270 = vadd.f32 %v1201, %v1254
      %v1271 = vadd.f32 %v1202, %v1255
      %v1272 = vadd.f32 %v1203, %v1256
      %v1273 = vadd.f32 %v1204, %v1257
      %v1274 = vadd.f32 %v1205, %v1258
      %v1275 = vld [vmem:[#allocation3 + $0x2] sm:$0xff]
      %v1276 = vld [vmem:[#allocation3 + $0xa] sm:$0xff]
      %v1277 = vld [vmem:[#allocation3 + $0x12] sm:$0xff]
      %v1278 = vld [vmem:[#allocation3 + $0x1a] sm:$0xff]
      %v1279 = vld [vmem:[#allocation3 + $0x22] sm:$0xff]
      %v1280 = vld [vmem:[#allocation3 + $0x2a] sm:$0xff]
      %v1281 = vld [vmem:[#allocation3 + $0x32] sm:$0xff]
      %v1282 = vld [vmem:[#allocation3 + $0x3a] sm:$0xff]
      %v1283 = vld [vmem:[#allocation3 + $0x42] sm:$0xff]
      %v1284 = vld [vmem:[#allocation3 + $0x4a] sm:$0xff]
      %v1285 = vld [vmem:[#allocation3 + $0x52] sm:$0xff]
      %v1286 = vld [vmem:[#allocation3 + $0x5a] sm:$0xff]
      %v1287 = vld [vmem:[#allocation3 + $0x62] sm:$0xff]
      %v1288 = vld [vmem:[#allocation3 + $0x6a] sm:$0xff]
      %v1289 = vld [vmem:[#allocation3 + $0x72] sm:$0xff]
      %v1290 = vld [vmem:[#allocation3 + $0x7a] sm:$0xff]
      %vm1291 = vcmp.ge.s32.totalorder %v1136, 64
      %vm1292 = vcmp.lt.s32.totalorder %v1136, 96
      %vm1293 = vmand %vm1291, %vm1292
      %v1294 = vsel %vm1293, 1, 0
      %v1295 = vcvt.s32.f32 %v1294
      %v1296 = vmul.f32 %v975, %v1119
      %v1297 = vmul.f32 %v976, %v1120
      %v1298 = vmul.f32 %v977, %v1121
      %v1299 = vmul.f32 %v978, %v1122
      %v1300 = vmul.f32 %v979, %v1123
      %v1301 = vmul.f32 %v980, %v1124
      %v1302 = vmul.f32 %v981, %v1125
      %v1303 = vmul.f32 %v982, %v1126
      %v1304 = vmul.f32 %v983, %v1127
      %v1305 = vmul.f32 %v984, %v1128
      %v1306 = vmul.f32 %v985, %v1129
      %v1307 = vmul.f32 %v986, %v1130
      %v1308 = vmul.f32 %v987, %v1131
      %v1309 = vmul.f32 %v988, %v1132
      %v1310 = vmul.f32 %v989, %v1133
      %v1311 = vmul.f32 %v990, %v1134
      %v1312 = vmul.f32 %v1296, %v1295
      %v1313 = vmul.f32 %v1297, %v1295
      %v1314 = vmul.f32 %v1298, %v1295
      %v1315 = vmul.f32 %v1299, %v1295
      %v1316 = vmul.f32 %v1300, %v1295
      %v1317 = vmul.f32 %v1301, %v1295
      %v1318 = vmul.f32 %v1302, %v1295
      %v1319 = vmul.f32 %v1303, %v1295
      %v1320 = vmul.f32 %v1304, %v1295
      %v1321 = vmul.f32 %v1305, %v1295
      %v1322 = vmul.f32 %v1306, %v1295
      %v1323 = vmul.f32 %v1307, %v1295
      %v1324 = vmul.f32 %v1308, %v1295
      %v1325 = vmul.f32 %v1309, %v1295
      %v1326 = vmul.f32 %v1310, %v1295
      %v1327 = vmul.f32 %v1311, %v1295
      %v1328 = vmul.f32 %v1275, %v1312
      %v1329 = vmul.f32 %v1276, %v1313
      %v1330 = vmul.f32 %v1277, %v1314
      %v1331 = vmul.f32 %v1278, %v1315
      %v1332 = vmul.f32 %v1279, %v1316
      %v1333 = vmul.f32 %v1280, %v1317
      %v1334 = vmul.f32 %v1281, %v1318
      %v1335 = vmul.f32 %v1282, %v1319
      %v1336 = vmul.f32 %v1283, %v1320
      %v1337 = vmul.f32 %v1284, %v1321
      %v1338 = vmul.f32 %v1285, %v1322
      %v1339 = vmul.f32 %v1286, %v1323
      %v1340 = vmul.f32 %v1287, %v1324
      %v1341 = vmul.f32 %v1288, %v1325
      %v1342 = vmul.f32 %v1289, %v1326
      %v1343 = vmul.f32 %v1290, %v1327
      %v1344 = vadd.f32 %v1259, %v1328
      %v1345 = vadd.f32 %v1260, %v1329
      %v1346 = vadd.f32 %v1261, %v1330
      %v1347 = vadd.f32 %v1262, %v1331
      %v1348 = vadd.f32 %v1263, %v1332
      %v1349 = vadd.f32 %v1264, %v1333
      %v1350 = vadd.f32 %v1265, %v1334
      %v1351 = vadd.f32 %v1266, %v1335
      %v1352 = vadd.f32 %v1267, %v1336
      %v1353 = vadd.f32 %v1268, %v1337
      %v1354 = vadd.f32 %v1269, %v1338
      %v1355 = vadd.f32 %v1270, %v1339
      %v1356 = vadd.f32 %v1271, %v1340
      %v1357 = vadd.f32 %v1272, %v1341
      %v1358 = vadd.f32 %v1273, %v1342
      %v1359 = vadd.f32 %v1274, %v1343
      %v1360 = vld [vmem:[#allocation3 + $0x80] sm:$0xff]
      %vm1361 = vcmp.ge.s32.totalorder %v1136, 96
      %vm1362 = vcmp.lt.s32.totalorder %v1136, 128
      %vm1363 = vmand %vm1361, %vm1362
      %v1364 = vsel %vm1363, 1, 0
      %v1365 = vcvt.s32.f32 %v1364
      %v1366 = vmul.f32 %v1071, %v1365
      %v1367 = vmul.f32 %v1072, %v1365
      %v1368 = vmul.f32 %v1073, %v1365
      %v1369 = vmul.f32 %v1074, %v1365
      %v1370 = vmul.f32 %v1075, %v1365
      %v1371 = vmul.f32 %v1076, %v1365
      %v1372 = vmul.f32 %v1077, %v1365
      %v1373 = vmul.f32 %v1078, %v1365
      %v1374 = vmul.f32 %v1079, %v1365
      %v1375 = vmul.f32 %v1080, %v1365
      %v1376 = vmul.f32 %v1081, %v1365
      %v1377 = vmul.f32 %v1082, %v1365
      %v1378 = vmul.f32 %v1083, %v1365
      %v1379 = vmul.f32 %v1084, %v1365
      %v1380 = vmul.f32 %v1085, %v1365
      %v1381 = vmul.f32 %v1086, %v1365
      %v1382 = vmul.f32 %v1138, %v1366
      %v1383 = vmul.f32 %v1139, %v1367
      %v1384 = vmul.f32 %v1140, %v1368
      %v1385 = vmul.f32 %v1141, %v1369
      %v1386 = vmul.f32 %v1142, %v1370
      %v1387 = vmul.f32 %v1143, %v1371
      %v1388 = vmul.f32 %v1144, %v1372
      %v1389 = vmul.f32 %v1145, %v1373
      %v1390 = vmul.f32 %v1146, %v1374
      %v1391 = vmul.f32 %v1147, %v1375
      %v1392 = vmul.f32 %v1148, %v1376
      %v1393 = vmul.f32 %v1149, %v1377
      %v1394 = vmul.f32 %v1150, %v1378
      %v1395 = vmul.f32 %v1151, %v1379
      %v1396 = vmul.f32 %v1152, %v1380
      %v1397 = vmul.f32 %v1360, %v1381
      %v1398 = vadd.f32 %v1344, %v1382
      %v1399 = vadd.f32 %v1345, %v1383
      %v1400 = vadd.f32 %v1346, %v1384
      %v1401 = vadd.f32 %v1347, %v1385
      %v1402 = vadd.f32 %v1348, %v1386
      %v1403 = vadd.f32 %v1349, %v1387
      %v1404 = vadd.f32 %v1350, %v1388
      %v1405 = vadd.f32 %v1351, %v1389
      %v1406 = vadd.f32 %v1352, %v1390
      %v1407 = vadd.f32 %v1353, %v1391
      %v1408 = vadd.f32 %v1354, %v1392
      %v1409 = vadd.f32 %v1355, %v1393
      %v1410 = vadd.f32 %v1356, %v1394
      %v1411 = vadd.f32 %v1357, %v1395
      %v1412 = vadd.f32 %v1358, %v1396
      %v1413 = vadd.f32 %v1359, %v1397
      %v1414 = vpack.c.bf16 %v1399, %v1398
      %v1415 = vpack.c.bf16 %v1401, %v1400
      %v1416 = vpack.c.bf16 %v1403, %v1402
      %v1417 = vpack.c.bf16 %v1405, %v1404
      %v1418 = vpack.c.bf16 %v1407, %v1406
      %v1419 = vpack.c.bf16 %v1409, %v1408
      %v1420 = vpack.c.bf16 %v1411, %v1410
      %v1421 = vpack.c.bf16 %v1413, %v1412
      %v1422 = vld [vmem:[#allocation3 + $0x81] sm:$0xff]
      %v1423 = vmul.f32 %v1207, %v1157
      %v1424 = vmul.f32 %v1208, %v1157
      %v1425 = vmul.f32 %v1209, %v1157
      %v1426 = vmul.f32 %v1210, %v1157
      %v1427 = vmul.f32 %v1211, %v1157
      %v1428 = vmul.f32 %v1212, %v1157
      %v1429 = vmul.f32 %v1213, %v1157
      %v1430 = vmul.f32 %v1214, %v1157
      %v1431 = vmul.f32 %v1215, %v1157
      %v1432 = vmul.f32 %v1216, %v1157
      %v1433 = vmul.f32 %v1217, %v1157
      %v1434 = vmul.f32 %v1218, %v1157
      %v1435 = vmul.f32 %v1219, %v1157
      %v1436 = vmul.f32 %v1220, %v1157
      %v1437 = vmul.f32 %v1221, %v1157
      %v1438 = vmul.f32 %v1422, %v1157
      %v1439 = vld [vmem:[#allocation3 + $0x82] sm:$0xff]
      %v1440 = vmul.f32 %v1119, %v1226
      %v1441 = vmul.f32 %v1120, %v1226
      %v1442 = vmul.f32 %v1121, %v1226
      %v1443 = vmul.f32 %v1122, %v1226
      %v1444 = vmul.f32 %v1123, %v1226
      %v1445 = vmul.f32 %v1124, %v1226
      %v1446 = vmul.f32 %v1125, %v1226
      %v1447 = vmul.f32 %v1126, %v1226
      %v1448 = vmul.f32 %v1127, %v1226
      %v1449 = vmul.f32 %v1128, %v1226
      %v1450 = vmul.f32 %v1129, %v1226
      %v1451 = vmul.f32 %v1130, %v1226
      %v1452 = vmul.f32 %v1131, %v1226
      %v1453 = vmul.f32 %v1132, %v1226
      %v1454 = vmul.f32 %v1133, %v1226
      %v1455 = vmul.f32 %v1134, %v1226
      %v1456 = vmul.f32 %v1276, %v1440
      %v1457 = vmul.f32 %v1277, %v1441
      %v1458 = vmul.f32 %v1278, %v1442
      %v1459 = vmul.f32 %v1279, %v1443
      %v1460 = vmul.f32 %v1280, %v1444
      %v1461 = vmul.f32 %v1281, %v1445
      %v1462 = vmul.f32 %v1282, %v1446
      %v1463 = vmul.f32 %v1283, %v1447
      %v1464 = vmul.f32 %v1284, %v1448
      %v1465 = vmul.f32 %v1285, %v1449
      %v1466 = vmul.f32 %v1286, %v1450
      %v1467 = vmul.f32 %v1287, %v1451
      %v1468 = vmul.f32 %v1288, %v1452
      %v1469 = vmul.f32 %v1289, %v1453
      %v1470 = vmul.f32 %v1290, %v1454
      %v1471 = vmul.f32 %v1439, %v1455
      %v1472 = vadd.f32 %v1423, %v1456
      %v1473 = vadd.f32 %v1424, %v1457
      %v1474 = vadd.f32 %v1425, %v1458
      %v1475 = vadd.f32 %v1426, %v1459
      %v1476 = vadd.f32 %v1427, %v1460
      %v1477 = vadd.f32 %v1428, %v1461
      %v1478 = vadd.f32 %v1429, %v1462
      %v1479 = vadd.f32 %v1430, %v1463
      %v1480 = vadd.f32 %v1431, %v1464
      %v1481 = vadd.f32 %v1432, %v1465
      %v1482 = vadd.f32 %v1433, %v1466
      %v1483 = vadd.f32 %v1434, %v1467
      %v1484 = vadd.f32 %v1435, %v1468
      %v1485 = vadd.f32 %v1436, %v1469
      %v1486 = vadd.f32 %v1437, %v1470
      %v1487 = vadd.f32 %v1438, %v1471
      %v1488 = vld [vmem:[#allocation3 + $0x88] sm:$0xff]
      %v1489 = vmul.f32 %v1023, %v1071
      %v1490 = vmul.f32 %v1024, %v1072
      %v1491 = vmul.f32 %v1025, %v1073
      %v1492 = vmul.f32 %v1026, %v1074
      %v1493 = vmul.f32 %v1027, %v1075
      %v1494 = vmul.f32 %v1028, %v1076
      %v1495 = vmul.f32 %v1029, %v1077
      %v1496 = vmul.f32 %v1030, %v1078
      %v1497 = vmul.f32 %v1031, %v1079
      %v1498 = vmul.f32 %v1032, %v1080
      %v1499 = vmul.f32 %v1033, %v1081
      %v1500 = vmul.f32 %v1034, %v1082
      %v1501 = vmul.f32 %v1035, %v1083
      %v1502 = vmul.f32 %v1036, %v1084
      %v1503 = vmul.f32 %v1037, %v1085
      %v1504 = vmul.f32 %v1038, %v1086
      %v1505 = vmul.f32 %v1489, %v1295
      %v1506 = vmul.f32 %v1490, %v1295
      %v1507 = vmul.f32 %v1491, %v1295
      %v1508 = vmul.f32 %v1492, %v1295
      %v1509 = vmul.f32 %v1493, %v1295
      %v1510 = vmul.f32 %v1494, %v1295
      %v1511 = vmul.f32 %v1495, %v1295
      %v1512 = vmul.f32 %v1496, %v1295
      %v1513 = vmul.f32 %v1497, %v1295
      %v1514 = vmul.f32 %v1498, %v1295
      %v1515 = vmul.f32 %v1499, %v1295
      %v1516 = vmul.f32 %v1500, %v1295
      %v1517 = vmul.f32 %v1501, %v1295
      %v1518 = vmul.f32 %v1502, %v1295
      %v1519 = vmul.f32 %v1503, %v1295
      %v1520 = vmul.f32 %v1504, %v1295
      %v1521 = vmul.f32 %v1139, %v1505
      %v1522 = vmul.f32 %v1140, %v1506
      %v1523 = vmul.f32 %v1141, %v1507
      %v1524 = vmul.f32 %v1142, %v1508
      %v1525 = vmul.f32 %v1143, %v1509
      %v1526 = vmul.f32 %v1144, %v1510
      %v1527 = vmul.f32 %v1145, %v1511
      %v1528 = vmul.f32 %v1146, %v1512
      %v1529 = vmul.f32 %v1147, %v1513
      %v1530 = vmul.f32 %v1148, %v1514
      %v1531 = vmul.f32 %v1149, %v1515
      %v1532 = vmul.f32 %v1150, %v1516
      %v1533 = vmul.f32 %v1151, %v1517
      %v1534 = vmul.f32 %v1152, %v1518
      %v1535 = vmul.f32 %v1360, %v1519
      %v1536 = vmul.f32 %v1488, %v1520
      %v1537 = vadd.f32 %v1472, %v1521
      %v1538 = vadd.f32 %v1473, %v1522
      %v1539 = vadd.f32 %v1474, %v1523
      %v1540 = vadd.f32 %v1475, %v1524
      %v1541 = vadd.f32 %v1476, %v1525
      %v1542 = vadd.f32 %v1477, %v1526
      %v1543 = vadd.f32 %v1478, %v1527
      %v1544 = vadd.f32 %v1479, %v1528
      %v1545 = vadd.f32 %v1480, %v1529
      %v1546 = vadd.f32 %v1481, %v1530
      %v1547 = vadd.f32 %v1482, %v1531
      %v1548 = vadd.f32 %v1483, %v1532
      %v1549 = vadd.f32 %v1484, %v1533
      %v1550 = vadd.f32 %v1485, %v1534
      %v1551 = vadd.f32 %v1486, %v1535
      %v1552 = vadd.f32 %v1487, %v1536
      %v1553 = vld [vmem:[#allocation3 + $0x89] sm:$0xff]
      %v1554 = vmul.f32 %v1023, %v1365
      %v1555 = vmul.f32 %v1024, %v1365
      %v1556 = vmul.f32 %v1025, %v1365
      %v1557 = vmul.f32 %v1026, %v1365
      %v1558 = vmul.f32 %v1027, %v1365
      %v1559 = vmul.f32 %v1028, %v1365
      %v1560 = vmul.f32 %v1029, %v1365
      %v1561 = vmul.f32 %v1030, %v1365
      %v1562 = vmul.f32 %v1031, %v1365
      %v1563 = vmul.f32 %v1032, %v1365
      %v1564 = vmul.f32 %v1033, %v1365
      %v1565 = vmul.f32 %v1034, %v1365
      %v1566 = vmul.f32 %v1035, %v1365
      %v1567 = vmul.f32 %v1036, %v1365
      %v1568 = vmul.f32 %v1037, %v1365
      %v1569 = vmul.f32 %v1038, %v1365
      %v1570 = vmul.f32 %v1208, %v1554
      %v1571 = vmul.f32 %v1209, %v1555
      %v1572 = vmul.f32 %v1210, %v1556
      %v1573 = vmul.f32 %v1211, %v1557
      %v1574 = vmul.f32 %v1212, %v1558
      %v1575 = vmul.f32 %v1213, %v1559
      %v1576 = vmul.f32 %v1214, %v1560
      %v1577 = vmul.f32 %v1215, %v1561
      %v1578 = vmul.f32 %v1216, %v1562
      %v1579 = vmul.f32 %v1217, %v1563
      %v1580 = vmul.f32 %v1218, %v1564
      %v1581 = vmul.f32 %v1219, %v1565
      %v1582 = vmul.f32 %v1220, %v1566
      %v1583 = vmul.f32 %v1221, %v1567
      %v1584 = vmul.f32 %v1422, %v1568
      %v1585 = vmul.f32 %v1553, %v1569
      %v1586 = vadd.f32 %v1537, %v1570
      %v1587 = vadd.f32 %v1538, %v1571
      %v1588 = vadd.f32 %v1539, %v1572
      %v1589 = vadd.f32 %v1540, %v1573
      %v1590 = vadd.f32 %v1541, %v1574
      %v1591 = vadd.f32 %v1542, %v1575
      %v1592 = vadd.f32 %v1543, %v1576
      %v1593 = vadd.f32 %v1544, %v1577
      %v1594 = vadd.f32 %v1545, %v1578
      %v1595 = vadd.f32 %v1546, %v1579
      %v1596 = vadd.f32 %v1547, %v1580
      %v1597 = vadd.f32 %v1548, %v1581
      %v1598 = vadd.f32 %v1549, %v1582
      %v1599 = vadd.f32 %v1550, %v1583
      %v1600 = vadd.f32 %v1551, %v1584
      %v1601 = vadd.f32 %v1552, %v1585
      %v1602 = vpack.c.bf16 %v1587, %v1586
      %v1603 = vpack.c.bf16 %v1589, %v1588
      %v1604 = vpack.c.bf16 %v1591, %v1590
      %v1605 = vpack.c.bf16 %v1593, %v1592
      %v1606 = vpack.c.bf16 %v1595, %v1594
      %v1607 = vpack.c.bf16 %v1597, %v1596
      %v1608 = vpack.c.bf16 %v1599, %v1598
      %v1609 = vpack.c.bf16 %v1601, %v1600
      %v1610 = vld [vmem:[#allocation3 + $0x12] sm:$0xff]
      %v1611 = vld [vmem:[#allocation3 + $0x1a] sm:$0xff]
      %v1612 = vld [vmem:[#allocation3 + $0x22] sm:$0xff]
      %v1613 = vld [vmem:[#allocation3 + $0x2a] sm:$0xff]
      %v1614 = vld [vmem:[#allocation3 + $0x32] sm:$0xff]
      %v1615 = vld [vmem:[#allocation3 + $0x3a] sm:$0xff]
      %v1616 = vld [vmem:[#allocation3 + $0x42] sm:$0xff]
      %v1617 = vld [vmem:[#allocation3 + $0x4a] sm:$0xff]
      %v1618 = vld [vmem:[#allocation3 + $0x52] sm:$0xff]
      %v1619 = vld [vmem:[#allocation3 + $0x5a] sm:$0xff]
      %v1620 = vld [vmem:[#allocation3 + $0x62] sm:$0xff]
      %v1621 = vld [vmem:[#allocation3 + $0x6a] sm:$0xff]
      %v1622 = vld [vmem:[#allocation3 + $0x72] sm:$0xff]
      %v1623 = vld [vmem:[#allocation3 + $0x7a] sm:$0xff]
      %v1624 = vld [vmem:[#allocation3 + $0x82] sm:$0xff]
      %v1625 = vld [vmem:[#allocation3 + $0x8a] sm:$0xff]
      %v1626 = vmul.f32 %v1023, %v1119
      %v1627 = vmul.f32 %v1024, %v1120
      %v1628 = vmul.f32 %v1025, %v1121
      %v1629 = vmul.f32 %v1026, %v1122
      %v1630 = vmul.f32 %v1027, %v1123
      %v1631 = vmul.f32 %v1028, %v1124
      %v1632 = vmul.f32 %v1029, %v1125
      %v1633 = vmul.f32 %v1030, %v1126
      %v1634 = vmul.f32 %v1031, %v1127
      %v1635 = vmul.f32 %v1032, %v1128
      %v1636 = vmul.f32 %v1033, %v1129
      %v1637 = vmul.f32 %v1034, %v1130
      %v1638 = vmul.f32 %v1035, %v1131
      %v1639 = vmul.f32 %v1036, %v1132
      %v1640 = vmul.f32 %v1037, %v1133
      %v1641 = vmul.f32 %v1038, %v1134
      %v1642 = vmul.f32 %v1626, %v1157
      %v1643 = vmul.f32 %v1627, %v1157
      %v1644 = vmul.f32 %v1628, %v1157
      %v1645 = vmul.f32 %v1629, %v1157
      %v1646 = vmul.f32 %v1630, %v1157
      %v1647 = vmul.f32 %v1631, %v1157
      %v1648 = vmul.f32 %v1632, %v1157
      %v1649 = vmul.f32 %v1633, %v1157
      %v1650 = vmul.f32 %v1634, %v1157
      %v1651 = vmul.f32 %v1635, %v1157
      %v1652 = vmul.f32 %v1636, %v1157
      %v1653 = vmul.f32 %v1637, %v1157
      %v1654 = vmul.f32 %v1638, %v1157
      %v1655 = vmul.f32 %v1639, %v1157
      %v1656 = vmul.f32 %v1640, %v1157
      %v1657 = vmul.f32 %v1641, %v1157
      %v1658 = vmul.f32 %v1610, %v1642
      %v1659 = vmul.f32 %v1611, %v1643
      %v1660 = vmul.f32 %v1612, %v1644
      %v1661 = vmul.f32 %v1613, %v1645
      %v1662 = vmul.f32 %v1614, %v1646
      %v1663 = vmul.f32 %v1615, %v1647
      %v1664 = vmul.f32 %v1616, %v1648
      %v1665 = vmul.f32 %v1617, %v1649
      %v1666 = vmul.f32 %v1618, %v1650
      %v1667 = vmul.f32 %v1619, %v1651
      %v1668 = vmul.f32 %v1620, %v1652
      %v1669 = vmul.f32 %v1621, %v1653
      %v1670 = vmul.f32 %v1622, %v1654
      %v1671 = vmul.f32 %v1623, %v1655
      %v1672 = vmul.f32 %v1624, %v1656
      %v1673 = vmul.f32 %v1625, %v1657
      %v1674 = vpack.c.bf16 %v1659, %v1658
      %v1675 = vpack.c.bf16 %v1661, %v1660
      %v1676 = vpack.c.bf16 %v1663, %v1662
      %v1677 = vpack.c.bf16 %v1665, %v1664
      %v1678 = vpack.c.bf16 %v1667, %v1666
      %v1679 = vpack.c.bf16 %v1669, %v1668
      %v1680 = vpack.c.bf16 %v1671, %v1670
      %v1681 = vpack.c.bf16 %v1673, %v1672
      %v1682 = vld [vmem:[%s339] sm:$0xf]
      %v1683 = vld [vmem:[%s339 + $0x4] sm:$0xf]
      %v1684 = vld [vmem:[%s339 + $0x8] sm:$0xf]
      %v1685 = vld [vmem:[%s339 + $0xc] sm:$0xf]
      %v1686 = vld [vmem:[%s339 + $0x10] sm:$0xf]
      %v1687 = vld [vmem:[%s339 + $0x14] sm:$0xf]
      %v1688 = vld [vmem:[%s339 + $0x18] sm:$0xf]
      %v1689 = vld [vmem:[%s339 + $0x1c] sm:$0xf]
      %v1690 = vld [vmem:[%s339 + $0x20] sm:$0xf]
      %v1691 = vld [vmem:[%s339 + $0x24] sm:$0xf]
      %v1692 = vld [vmem:[%s339 + $0x28] sm:$0xf]
      %v1693 = vld [vmem:[%s339 + $0x2c] sm:$0xf]
      %v1694 = vld [vmem:[%s339 + $0x30] sm:$0xf]
      %v1695 = vld [vmem:[%s339 + $0x34] sm:$0xf]
      %v1696 = vld [vmem:[%s339 + $0x38] sm:$0xf]
      %v1697 = vld [vmem:[%s339 + $0x3c] sm:$0xf]
      %v1698 = vld [vmem:[%s339 + $0x40] sm:$0xf]
      %v1699 = vld [vmem:[%s339 + $0x44] sm:$0xf]
      %v1700 = vld [vmem:[%s339 + $0x48] sm:$0xf]
      %v1701 = vld [vmem:[%s339 + $0x4c] sm:$0xf]
      %v1702 = vld [vmem:[%s339 + $0x50] sm:$0xf]
      %v1703 = vld [vmem:[%s339 + $0x54] sm:$0xf]
      %v1704 = vld [vmem:[%s339 + $0x58] sm:$0xf]
      %v1705 = vld [vmem:[%s339 + $0x5c] sm:$0xf]
      %v1706 = vld [vmem:[%s339 + $0x60] sm:$0xf]
      %v1707 = vld [vmem:[%s339 + $0x64] sm:$0xf]
      %v1708 = vld [vmem:[%s339 + $0x68] sm:$0xf]
      %v1709 = vld [vmem:[%s339 + $0x6c] sm:$0xf]
      %v1710 = vld [vmem:[%s339 + $0x70] sm:$0xf]
      %v1711 = vld [vmem:[%s339 + $0x74] sm:$0xf]
      %v1712 = vld [vmem:[%s339 + $0x78] sm:$0xf]
      %v1713 = vld [vmem:[%s339 + $0x7c] sm:$0xf]
      %v1714 = vld [vmem:[%s339 + $0x80] sm:$0xf]
      %v1715 = vld [vmem:[%s339 + $0x84] sm:$0xf]
      %v1716 = vld [vmem:[%s339 + $0x88] sm:$0xf]
      %v1717 = vld [vmem:[%s339 + $0x8c] sm:$0xf]
      %v1718 = vld [vmem:[%s339 + $0x90] sm:$0xf]
      %v1719 = vld [vmem:[%s339 + $0x94] sm:$0xf]
      %v1720 = vld [vmem:[%s339 + $0x98] sm:$0xf]
      %v1721 = vld [vmem:[%s339 + $0x9c] sm:$0xf]
      %v1722 = vld [vmem:[%s339 + $0xa0] sm:$0xf]
      %v1723 = vld [vmem:[%s339 + $0xa4] sm:$0xf]
      %v1724 = vld [vmem:[%s339 + $0xa8] sm:$0xf]
      %v1725 = vld [vmem:[%s339 + $0xac] sm:$0xf]
      %v1726 = vld [vmem:[%s339 + $0xb0] sm:$0xf]
      %v1727 = vld [vmem:[%s339 + $0xb4] sm:$0xf]
      %v1728 = vld [vmem:[%s339 + $0xb8] sm:$0xf]
      %v1729 = vld [vmem:[%s339 + $0xbc] sm:$0xf]
      %v1778 = vunpack.c.l.b16 %v1682
      %v1779 = vunpack.c.l.b16 %v1683
      %v1780 = vunpack.c.l.b16 %v1684
      %v1781 = vunpack.c.l.b16 %v1685
      %v1782 = vunpack.c.l.b16 %v1686
      %v1783 = vunpack.c.l.b16 %v1687
      %v1784 = vunpack.c.l.b16 %v1688
      %v1785 = vunpack.c.l.b16 %v1689
      %v1786 = vunpack.c.l.b16 %v1690
      %v1787 = vunpack.c.l.b16 %v1691
      %v1788 = vunpack.c.l.b16 %v1692
      %v1789 = vunpack.c.l.b16 %v1693
      %v1790 = vunpack.c.l.b16 %v1694
      %v1791 = vunpack.c.l.b16 %v1695
      %v1792 = vunpack.c.l.b16 %v1696
      %v1793 = vunpack.c.l.b16 %v1697
      %v1794 = vunpack.c.l.b16 %v1698
      %v1795 = vunpack.c.l.b16 %v1699
      %v1796 = vunpack.c.l.b16 %v1700
      %v1797 = vunpack.c.l.b16 %v1701
      %v1798 = vunpack.c.l.b16 %v1702
      %v1799 = vunpack.c.l.b16 %v1703
      %v1800 = vunpack.c.l.b16 %v1704
      %v1801 = vunpack.c.l.b16 %v1705
      %v1802 = vunpack.c.l.b16 %v1706
      %v1803 = vunpack.c.l.b16 %v1707
      %v1804 = vunpack.c.l.b16 %v1708
      %v1805 = vunpack.c.l.b16 %v1709
      %v1806 = vunpack.c.l.b16 %v1710
      %v1807 = vunpack.c.l.b16 %v1711
      %v1808 = vunpack.c.l.b16 %v1712
      %v1809 = vunpack.c.l.b16 %v1713
      %v1810 = vunpack.c.l.b16 %v1714
      %v1811 = vunpack.c.l.b16 %v1715
      %v1812 = vunpack.c.l.b16 %v1716
      %v1813 = vunpack.c.l.b16 %v1717
      %v1814 = vunpack.c.l.b16 %v1718
      %v1815 = vunpack.c.l.b16 %v1719
      %v1816 = vunpack.c.l.b16 %v1720
      %v1817 = vunpack.c.l.b16 %v1721
      %v1818 = vunpack.c.l.b16 %v1722
      %v1819 = vunpack.c.l.b16 %v1723
      %v1820 = vunpack.c.l.b16 %v1724
      %v1821 = vunpack.c.l.b16 %v1725
      %v1822 = vunpack.c.l.b16 %v1726
      %v1823 = vunpack.c.l.b16 %v1727
      %v1824 = vunpack.c.l.b16 %v1728
      %v1825 = vunpack.c.l.b16 %v1729
      %v1826 = vpack.c.b16 %v1779, %v1778
      %v1827 = vpack.c.b16 %v1781, %v1780
      %v1828 = vpack.c.b16 %v1783, %v1782
      %v1829 = vpack.c.b16 %v1785, %v1784
      %v1830 = vpack.c.b16 %v1787, %v1786
      %v1831 = vpack.c.b16 %v1789, %v1788
      %v1832 = vpack.c.b16 %v1791, %v1790
      %v1833 = vpack.c.b16 %v1793, %v1792
      %v1834 = vpack.c.b16 %v1795, %v1794
      %v1835 = vpack.c.b16 %v1797, %v1796
      %v1836 = vpack.c.b16 %v1799, %v1798
      %v1837 = vpack.c.b16 %v1801, %v1800
      %v1838 = vpack.c.b16 %v1803, %v1802
      %v1839 = vpack.c.b16 %v1805, %v1804
      %v1840 = vpack.c.b16 %v1807, %v1806
      %v1841 = vpack.c.b16 %v1809, %v1808
      %v1842 = vpack.c.b16 %v1811, %v1810
      %v1843 = vpack.c.b16 %v1813, %v1812
      %v1844 = vpack.c.b16 %v1815, %v1814
      %v1845 = vpack.c.b16 %v1817, %v1816
      %v1846 = vpack.c.b16 %v1819, %v1818
      %v1847 = vpack.c.b16 %v1821, %v1820
      %v1848 = vpack.c.b16 %v1823, %v1822
      %v1849 = vpack.c.b16 %v1825, %v1824
      %1874 = vmatprep.subr.bf16.mxu0 0
      %1875 = vmatpush1.bf16.msra.mxu0 %v1826
      %1876 = vmatprep.subr.bf16.mxu0 0
      %1877 = vmatpush1.bf16.msra.mxu0 %v1827
      %1878 = vmatprep.subr.bf16.mxu0 0
      %1879 = vmatpush1.bf16.msra.mxu0 %v1828
      %1880 = vmatprep.subr.bf16.mxu0 0
      %1881 = vmatpush1.bf16.msra.mxu0 %v1829
      %1882 = vmatprep.subr.bf16.mxu0 0
      %1883 = vmatpush1.bf16.msra.mxu0 %v1830
      %1884 = vmatprep.subr.bf16.mxu0 0
      %1885 = vmatpush1.bf16.msra.mxu0 %v1831
      %1886 = vmatprep.subr.bf16.mxu0 0
      %1887 = vmatpush1.bf16.msra.mxu0 %v1832
      %1888 = vmatprep.subr.bf16.mxu0 0
      %1889 = vmatpush1.bf16.msra.mxu0 %v1833
      %1890 = vmatprep.subr.bf16.mxu0 0
      %1891 = vmatpush1.bf16.msra.mxu0 %v1834
      %1892 = vmatprep.subr.bf16.mxu0 0
      %1893 = vmatpush1.bf16.msra.mxu0 %v1835
      %1894 = vmatprep.subr.bf16.mxu0 0
      %1895 = vmatpush1.bf16.msra.mxu0 %v1836
      %1896 = vmatprep.subr.bf16.mxu0 0
      %1897 = vmatpush1.bf16.msra.mxu0 %v1837
      %1898 = vmatprep.subr.bf16.mxu0 0
      %1899 = vmatpush1.bf16.msra.mxu0 %v1838
      %1900 = vmatprep.subr.bf16.mxu0 0
      %1901 = vmatpush1.bf16.msra.mxu0 %v1839
      %1902 = vmatprep.subr.bf16.mxu0 0
      %1903 = vmatpush1.bf16.msra.mxu0 %v1840
      %1904 = vmatprep.subr.bf16.mxu0 0
      %1905 = vmatpush1.bf16.msra.mxu0 %v1841
      %1906 = vmatprep.mubr.bf16.mxu0 %v1602
      %1907 = vmatmul.mubr.bf16.gmra.mrb[0].mxu0 %v1414
      %v1908 = vpop.f32.mrb[0].mxu0
      %v1909 = vadd.f32 0.0, %v1908
      %v1910 = vpop.f32.mrb[0].mxu0
      %v1911 = vpop.f32.mrb[0].mxu0
      %v1912 = vadd.f32 0.0, %v1911
      %v1913 = vpop.f32.mrb[0].mxu0
      %1914 = vmatprep.mubr.bf16.mxu0 %v1603
      %1915 = vmatmul.mubr.bf16.gmra.mrb[0].mxu0 %v1415
      %v1916 = vpop.f32.mrb[0].mxu0
      %v1917 = vadd.f32 0.0, %v1916
      %v1918 = vpop.f32.mrb[0].mxu0
      %v1919 = vpop.f32.mrb[0].mxu0
      %v1920 = vadd.f32 0.0, %v1919
      %v1921 = vpop.f32.mrb[0].mxu0
      %1922 = vmatprep.mubr.bf16.mxu0 %v1604
      %1923 = vmatmul.mubr.bf16.gmra.mrb[0].mxu0 %v1416
      %v1924 = vpop.f32.mrb[0].mxu0
      %v1925 = vadd.f32 0.0, %v1924
      %v1926 = vpop.f32.mrb[0].mxu0
      %v1927 = vpop.f32.mrb[0].mxu0
      %v1928 = vadd.f32 0.0, %v1927
      %v1929 = vpop.f32.mrb[0].mxu0
      %1930 = vmatprep.mubr.bf16.mxu0 %v1605
      %1931 = vmatmul.mubr.bf16.gmra.mrb[0].mxu0 %v1417
      %v1932 = vpop.f32.mrb[0].mxu0
      %v1933 = vadd.f32 0.0, %v1932
      %v1934 = vpop.f32.mrb[0].mxu0
      %v1935 = vpop.f32.mrb[0].mxu0
      %v1936 = vadd.f32 0.0, %v1935
      %v1937 = vpop.f32.mrb[0].mxu0
      %1938 = vmatprep.mubr.bf16.mxu0 %v1606
      %1939 = vmatmul.mubr.bf16.gmra.mrb[0].mxu0 %v1418
      %v1940 = vpop.f32.mrb[0].mxu0
      %v1941 = vadd.f32 0.0, %v1940
      %v1942 = vpop.f32.mrb[0].mxu0
      %v1943 = vpop.f32.mrb[0].mxu0
      %v1944 = vadd.f32 0.0, %v1943
      %v1945 = vpop.f32.mrb[0].mxu0
      %1946 = vmatprep.mubr.bf16.mxu0 %v1607
      %1947 = vmatmul.mubr.bf16.gmra.mrb[0].mxu0 %v1419
      %v1948 = vpop.f32.mrb[0].mxu0
      %v1949 = vadd.f32 0.0, %v1948
      %v1950 = vpop.f32.mrb[0].mxu0
      %v1951 = vpop.f32.mrb[0].mxu0
      %v1952 = vadd.f32 0.0, %v1951
      %v1953 = vpop.f32.mrb[0].mxu0
      %1954 = vmatprep.mubr.bf16.mxu0 %v1608
      %1955 = vmatmul.mubr.bf16.gmra.mrb[0].mxu0 %v1420
      %v1956 = vpop.f32.mrb[0].mxu0
      %v1957 = vadd.f32 0.0, %v1956
      %v1958 = vpop.f32.mrb[0].mxu0
      %v1959 = vpop.f32.mrb[0].mxu0
      %v1960 = vadd.f32 0.0, %v1959
      %v1961 = vpop.f32.mrb[0].mxu0
      %1962 = vmatprep.mubr.bf16.mxu0 %v1609
      %1963 = vmatmul.mubr.bf16.gmra.mrb[0].mxu0 %v1421
      %v1964 = vpop.f32.mrb[0].mxu0
      %v1965 = vadd.f32 0.0, %v1964
      %v1966 = vpop.f32.mrb[0].mxu0
      %v1967 = vpop.f32.mrb[0].mxu0
      %v1968 = vadd.f32 0.0, %v1967
      %v1969 = vpop.f32.mrb[0].mxu0
      %1970 = vdwg.mxu0
      %1971 = vmatprep.subr.bf16.mxu0 0
      %1972 = vmatpush1.bf16.msra.mxu0 %v1842
      %1973 = vmatprep.subr.bf16.mxu0 0
      %1974 = vmatpush1.bf16.msra.mxu0 %v1843
      %1975 = vmatprep.subr.bf16.mxu0 0
      %1976 = vmatpush1.bf16.msra.mxu0 %v1844
      %1977 = vmatprep.subr.bf16.mxu0 0
      %1978 = vmatpush1.bf16.msra.mxu0 %v1845
      %1979 = vmatprep.subr.bf16.mxu0 0
      %1980 = vmatpush1.bf16.msra.mxu0 %v1846
      %1981 = vmatprep.subr.bf16.mxu0 0
      %1982 = vmatpush1.bf16.msra.mxu0 %v1847
      %1983 = vmatprep.subr.bf16.mxu0 0
      %1984 = vmatpush1.bf16.msra.mxu0 %v1848
      %1985 = vmatprep.subr.bf16.mxu0 0
      %1986 = vmatpush1.bf16.msra.mxu0 %v1849
      %1987 = vmatprep.subr.bf16.mxu0 0
      %1988 = vmatpush1.bf16.msra.mxu0 0
      %1989 = vmatprep.subr.bf16.mxu0 0
      %1990 = vmatpush1.bf16.msra.mxu0 0
      %1991 = vmatprep.subr.bf16.mxu0 0
      %1992 = vmatpush1.bf16.msra.mxu0 0
      %1993 = vmatprep.subr.bf16.mxu0 0
      %1994 = vmatpush1.bf16.msra.mxu0 0
      %1995 = vmatprep.subr.bf16.mxu0 0
      %1996 = vmatpush1.bf16.msra.mxu0 0
      %1997 = vmatprep.subr.bf16.mxu0 0
      %1998 = vmatpush1.bf16.msra.mxu0 0
      %1999 = vmatprep.subr.bf16.mxu0 0
      %2000 = vmatpush1.bf16.msra.mxu0 0
      %2001 = vmatprep.subr.bf16.mxu0 0
      %2002 = vmatpush1.bf16.msra.mxu0 0
      %2003 = vmatprep.mubr.bf16.mxu0 0
      %2004 = vmatmul.mubr.bf16.gmra.mrb[0].mxu0 %v1674
      %v2005 = vpop.f32.mrb[0].mxu0
      %v2006 = vadd.f32 %v1909, %v2005
      %v2007 = vpop.f32.mrb[0].mxu0
      %v2008 = vpop.f32.mrb[0].mxu0
      %v2009 = vadd.f32 %v1912, %v2008
      %v2010 = vpop.f32.mrb[0].mxu0
      %2011 = vmatprep.mubr.bf16.mxu0 0
      %2012 = vmatmul.mubr.bf16.gmra.mrb[0].mxu0 %v1675
      %v2013 = vpop.f32.mrb[0].mxu0
      %v2014 = vadd.f32 %v1917, %v2013
      %v2015 = vpop.f32.mrb[0].mxu0
      %v2016 = vpop.f32.mrb[0].mxu0
      %v2017 = vadd.f32 %v1920, %v2016
      %v2018 = vpop.f32.mrb[0].mxu0
      %2019 = vmatprep.mubr.bf16.mxu0 0
      %2020 = vmatmul.mubr.bf16.gmra.mrb[0].mxu0 %v1676
      %v2021 = vpop.f32.mrb[0].mxu0
      %v2022 = vadd.f32 %v1925, %v2021
      %v2023 = vpop.f32.mrb[0].mxu0
      %v2024 = vpop.f32.mrb[0].mxu0
      %v2025 = vadd.f32 %v1928, %v2024
      %v2026 = vpop.f32.mrb[0].mxu0
      %2027 = vmatprep.mubr.bf16.mxu0 0
      %2028 = vmatmul.mubr.bf16.gmra.mrb[0].mxu0 %v1677
      %v2029 = vpop.f32.mrb[0].mxu0
      %v2030 = vadd.f32 %v1933, %v2029
      %v2031 = vpop.f32.mrb[0].mxu0
      %v2032 = vpop.f32.mrb[0].mxu0
      %v2033 = vadd.f32 %v1936, %v2032
      %v2034 = vpop.f32.mrb[0].mxu0
      %2035 = vmatprep.mubr.bf16.mxu0 0
      %2036 = vmatmul.mubr.bf16.gmra.mrb[0].mxu0 %v1678
      %v2037 = vpop.f32.mrb[0].mxu0
      %v2038 = vadd.f32 %v1941, %v2037
      %v2039 = vpop.f32.mrb[0].mxu0
      %v2040 = vpop.f32.mrb[0].mxu0
      %v2041 = vadd.f32 %v1944, %v2040
      %v2042 = vpop.f32.mrb[0].mxu0
      %2043 = vmatprep.mubr.bf16.mxu0 0
      %2044 = vmatmul.mubr.bf16.gmra.mrb[0].mxu0 %v1679
      %v2045 = vpop.f32.mrb[0].mxu0
      %v2046 = vadd.f32 %v1949, %v2045
      %v2047 = vpop.f32.mrb[0].mxu0
      %v2048 = vpop.f32.mrb[0].mxu0
      %v2049 = vadd.f32 %v1952, %v2048
      %v2050 = vpop.f32.mrb[0].mxu0
      %2051 = vmatprep.mubr.bf16.mxu0 0
      %2052 = vmatmul.mubr.bf16.gmra.mrb[0].mxu0 %v1680
      %v2053 = vpop.f32.mrb[0].mxu0
      %v2054 = vadd.f32 %v1957, %v2053
      %v2055 = vpop.f32.mrb[0].mxu0
      %v2056 = vpop.f32.mrb[0].mxu0
      %v2057 = vadd.f32 %v1960, %v2056
      %v2058 = vpop.f32.mrb[0].mxu0
      %2059 = vmatprep.mubr.bf16.mxu0 0
      %2060 = vmatmul.mubr.bf16.gmra.mrb[0].mxu0 %v1681
      %v2061 = vpop.f32.mrb[0].mxu0
      %v2062 = vadd.f32 %v1965, %v2061
      %v2063 = vpop.f32.mrb[0].mxu0
      %v2064 = vpop.f32.mrb[0].mxu0
      %v2065 = vadd.f32 %v1968, %v2064
      %v2066 = vpop.f32.mrb[0].mxu0
      %2067 = vdwg.mxu0
      %v2068 = vadd.f32 %v417, %v2006
      %v2069 = vadd.f32 %v418, %v2009
      %v2070 = vadd.f32 %v419, %v2014
      %v2071 = vadd.f32 %v420, %v2017
      %v2072 = vadd.f32 %v421, %v2022
      %v2073 = vadd.f32 %v422, %v2025
      %v2074 = vadd.f32 %v423, %v2030
      %v2075 = vadd.f32 %v424, %v2033
      %v2076 = vadd.f32 %v425, %v2038
      %v2077 = vadd.f32 %v426, %v2041
      %v2078 = vadd.f32 %v427, %v2046
      %v2079 = vadd.f32 %v428, %v2049
      %v2080 = vadd.f32 %v429, %v2054
      %v2081 = vadd.f32 %v430, %v2057
      %v2082 = vadd.f32 %v431, %v2062
      %v2083 = vadd.f32 %v432, %v2065
      %2084 = vst [vmem:[#allocation2] sm:$0xff] %v2068
      %2085 = vst [vmem:[#allocation2 + $0x8] sm:$0xff] %v2069
      %2086 = vst [vmem:[#allocation2 + $0x10] sm:$0xff] %v2070
      %2087 = vst [vmem:[#allocation2 + $0x18] sm:$0xff] %v2071
      %2088 = vst [vmem:[#allocation2 + $0x20] sm:$0xff] %v2072
      %2089 = vst [vmem:[#allocation2 + $0x28] sm:$0xff] %v2073
      %2090 = vst [vmem:[#allocation2 + $0x30] sm:$0xff] %v2074
      %2091 = vst [vmem:[#allocation2 + $0x38] sm:$0xff] %v2075
      %2092 = vst [vmem:[#allocation2 + $0x40] sm:$0xff] %v2076
      %2093 = vst [vmem:[#allocation2 + $0x48] sm:$0xff] %v2077
      %2094 = vst [vmem:[#allocation2 + $0x50] sm:$0xff] %v2078
      %2095 = vst [vmem:[#allocation2 + $0x58] sm:$0xff] %v2079
      %2096 = vst [vmem:[#allocation2 + $0x60] sm:$0xff] %v2080
      %2097 = vst [vmem:[#allocation2 + $0x68] sm:$0xff] %v2081
      %2098 = vst [vmem:[#allocation2 + $0x70] sm:$0xff] %v2082
      %2099 = vst [vmem:[#allocation2 + $0x78] sm:$0xff] %v2083
      %p2100 = scmp.eq.s32.totalorder %s18, 1
      // Predicated region
      $region53: #{fconv_densenet_forward.7} parent=47 // pred_check
        %p2101 = pneg %p2100
      $region54: #{fconv_densenet_forward.7} parent=47 // pred_check_branch
        %2103 = sbr.rel (%p2101) target = $region56
      $region55: #{fconv_densenet_forward.7} parent=47 // pred_region
        %2104 = vst [vmem:[%s7] sm:$0xff] %v2068
        %2105 = vst [vmem:[%s7 + $0x8] sm:$0xff] %v2069
        %2106 = vst [vmem:[%s7 + $0x10] sm:$0xff] %v2070
        %2107 = vst [vmem:[%s7 + $0x18] sm:$0xff] %v2071
        %2108 = vst [vmem:[%s7 + $0x20] sm:$0xff] %v2072
        %2109 = vst [vmem:[%s7 + $0x28] sm:$0xff] %v2073
        %2110 = vst [vmem:[%s7 + $0x30] sm:$0xff] %v2074
        %2111 = vst [vmem:[%s7 + $0x38] sm:$0xff] %v2075
        %2112 = vst [vmem:[%s7 + $0x40] sm:$0xff] %v2076
        %2113 = vst [vmem:[%s7 + $0x48] sm:$0xff] %v2077
        %2114 = vst [vmem:[%s7 + $0x50] sm:$0xff] %v2078
        %2115 = vst [vmem:[%s7 + $0x58] sm:$0xff] %v2079
        %2116 = vst [vmem:[%s7 + $0x60] sm:$0xff] %v2080
        %2117 = vst [vmem:[%s7 + $0x68] sm:$0xff] %v2081
        %2118 = vst [vmem:[%s7 + $0x70] sm:$0xff] %v2082
        %2119 = vst [vmem:[%s7 + $0x78] sm:$0xff] %v2083
      $region56: #{fconv_densenet_forward.7} parent=47 // pred_fallthru
        _
      // Predicated region
      $region57: #{fconv_densenet_forward.7} parent=47 // pred_check
        %p2120 = pneg %p208
      $region58: #{fconv_densenet_forward.7} parent=47 // pred_check_branch
        %2122 = sbr.rel (%p2120) target = $region60
      $region59: #{fconv_densenet_forward.7} parent=47 // pred_region
        _
      $region60: #{fconv_densenet_forward.7} parent=47 // pred_fallthru
        _
      // Predicated region
      $region61: #{fconv_densenet_forward.7} parent=47 // pred_check
        %p2123 = pneg %p208
      $region62: #{fconv_densenet_forward.7} parent=47 // pred_check_branch
        %2125 = sbr.rel (%p2123) target = $region64
      $region63: #{fconv_densenet_forward.7} parent=47 // pred_region
        _
      $region64: #{fconv_densenet_forward.7} parent=47 // pred_fallthru
        _
    $region48: #{fconv_densenet_forward.7} parent=5 // pred_fallthru
      _
    %p2126 = scmp.le.s32.totalorder 2, %s13
    // Predicated region
    $region65: #{fconv_densenet_forward.7} parent=5 // pred_check
      %p2127 = pneg %p2126
    $region66: #{fconv_densenet_forward.7} parent=5 // pred_check_branch
      %2129 = sbr.rel (%p2127) target = $region68
    $region67: #{fconv_densenet_forward.7} parent=5 // pred_region
      %s2130 = ssub.s32 %s13, 2
    $region68: #{fconv_densenet_forward.7} parent=5 // pred_fallthru
      _
  $region6: #{fconv_densenet_forward.7} parent=0 // loop_footer
    %s17 = sadd.s32 1, %s13
  $region7: #{fconv_densenet_forward.7} parent=0 // loop_footer_branch
    %12 = sbr.rel target = $region3
  $region8: #{fconv_densenet_forward.7} parent=0 // loop_exit
    _

// kernel: fconv_densenet_forward.10
$region0: #{fconv_densenet_forward.10}
  #allocation0 [shape = 'u32[]', space=smem, size = 0x4, offset = 0x4, fixed_abs, tag = 'smem constant byte address 0x4 - core index']
  #allocation1 [shape = 'u32[144,128]{1,0:T(1,128)}', space=vmem, size = 0x12000, scoped, tag = 'internal scratch']
  %s0 = inlined_call_operand.vmem [shape: f32[32,128], index: 0, kind: input, shape index: {}]
  %s1 = inlined_call_operand.vmem [shape: f32[1,128], index: 1, kind: input, shape index: {}]
  %s2 = inlined_call_operand.vmem [shape: f32[1,128], index: 2, kind: input, shape index: {}]
  %s3 = inlined_call_operand.vmem [shape: f32[32,128], index: 3, kind: output, shape index: {}]
  %s4 = sld [smem:[#allocation0]]
  $region22: #{fconv_densenet_forward.10} parent=0
    _
  %s6 = ssub.s32 1, %s4
  %s7 = scalar_select 0, %s6, %s4
  // Predicated region
  $region2: #{fconv_densenet_forward.10} parent=0 // pred_check
    _
  $region3: #{fconv_densenet_forward.10} parent=0 // pred_check_branch
    %9 = sbr.rel (0) target = $region5
  $region4: #{fconv_densenet_forward.10} parent=0 // pred_region
    _
  $region5: #{fconv_densenet_forward.10} parent=0 // pred_fallthru
    _
  // Predicated region
  $region6: #{fconv_densenet_forward.10} parent=0 // pred_check
    _
  $region7: #{fconv_densenet_forward.10} parent=0 // pred_check_branch
    %11 = sbr.rel (0) target = $region9
  $region8: #{fconv_densenet_forward.10} parent=0 // pred_region
    _
  $region9: #{fconv_densenet_forward.10} parent=0 // pred_fallthru
    _
  // Predicated region
  $region10: #{fconv_densenet_forward.10} parent=0 // pred_check
    _
  $region11: #{fconv_densenet_forward.10} parent=0 // pred_check_branch
    %13 = sbr.rel (0) target = $region13
  $region12: #{fconv_densenet_forward.10} parent=0 // pred_region
    _
  $region13: #{fconv_densenet_forward.10} parent=0 // pred_fallthru
    _
  %v14 = vld [vmem:[%s0] sm:$0xff]
  %v15 = vld [vmem:[%s0 + $0x8] sm:$0xff]
  %v16 = vld [vmem:[%s0 + $0x10] sm:$0xff]
  %v17 = vld [vmem:[%s0 + $0x18] sm:$0xff]
  %v18 = vadd.f32 %v14, %v15
  %v19 = vadd.f32 %v18, %v16
  %v20 = vadd.f32 %v19, %v17
  %v21 = vrot.slane %v20, 4
  %v22 = vadd.f32 %v20, %v21
  %v23 = vrot.slane %v22, 2
  %v24 = vadd.f32 %v22, %v23
  %v25 = vrot.slane %v24, 1
  %v26 = vadd.f32 %v24, %v25
  %v27 = vmul.f32 %v26, 0.03125
  %v28 = vmul.f32 %v14, %v14
  %v29 = vmul.f32 %v15, %v15
  %v30 = vmul.f32 %v16, %v16
  %v31 = vmul.f32 %v17, %v17
  %v32 = vadd.f32 %v28, %v29
  %v33 = vadd.f32 %v32, %v30
  %v34 = vadd.f32 %v33, %v31
  %v35 = vrot.slane %v34, 4
  %v36 = vadd.f32 %v34, %v35
  %v37 = vrot.slane %v36, 2
  %v38 = vadd.f32 %v36, %v37
  %v39 = vrot.slane %v38, 1
  %v40 = vadd.f32 %v38, %v39
  %v41 = vmul.f32 %v40, 0.03125
  %v42 = vmul.f32 %v27, %v27
  %v43 = vsub.f32 %v41, %v42
  %v44 = vmax.f32 %v43, 0.0
  %v45 = vld [vmem:[%s1] sm:$0x1]
  %v46 = vadd.f32 %v44, 1e-05
  %v47 = vrsqrt.pop %v46
  %v48 = vmul.f32 %v45, %v47
  %v50 = vlaneseq
  %v51 = vshrl.u32 %v50, 7
  %v52 = vsub.s32 0, %v51
  %v53 = vrot.slane %v48, %v52
  %v55 = vmul.f32 %v14, %v53
  %v56 = vmul.f32 %v15, %v53
  %v57 = vmul.f32 %v16, %v53
  %v58 = vmul.f32 %v17, %v53
  %v59 = vld [vmem:[%s2] sm:$0x1]
  %v60 = vmul.f32 %v27, %v48
  %v61 = vsub.f32 %v59, %v60
  %v63 = vlaneseq
  %v64 = vshrl.u32 %v63, 7
  %v65 = vsub.s32 0, %v64
  %v66 = vrot.slane %v61, %v65
  %v68 = vadd.f32 %v55, %v66
  %v69 = vadd.f32 %v56, %v66
  %v70 = vadd.f32 %v57, %v66
  %v71 = vadd.f32 %v58, %v66
  %72 = vst [vmem:[%s3] sm:$0xff] %v68
  %73 = vst [vmem:[%s3 + $0x8] sm:$0xff] %v69
  %74 = vst [vmem:[%s3 + $0x10] sm:$0xff] %v70
  %75 = vst [vmem:[%s3 + $0x18] sm:$0xff] %v71
  // Predicated region
  $region14: #{fconv_densenet_forward.10} parent=0 // pred_check
    _
  $region15: #{fconv_densenet_forward.10} parent=0 // pred_check_branch
    %77 = sbr.rel (0) target = $region17
  $region16: #{fconv_densenet_forward.10} parent=0 // pred_region
    _
  $region17: #{fconv_densenet_forward.10} parent=0 // pred_fallthru
    _
  // Predicated region
  $region18: #{fconv_densenet_forward.10} parent=0 // pred_check
    _
  $region19: #{fconv_densenet_forward.10} parent=0 // pred_check_branch
    %79 = sbr.rel (0) target = $region21
  $region20: #{fconv_densenet_forward.10} parent=0 // pred_region
    _
  $region21: #{fconv_densenet_forward.10} parent=0 // pred_fallthru
    _

// kernel: fconv_densenet_forward.11
$region0: #{fconv_densenet_forward.11}
  #allocation0 [shape = 'u32[]', space=smem, size = 0x4, offset = 0x4, fixed_abs, tag = 'smem constant byte address 0x4 - core index']
  #allocation1 [shape = 'u32[144,128]{1,0:T(1,128)}', space=vmem, size = 0x12000, scoped, tag = 'internal scratch']
  %s0 = inlined_call_operand.vmem [shape: f32[2,128], index: 0, kind: input, shape index: {}]
  %s1 = inlined_call_operand.vmem [shape: bf16[1,128,128], index: 1, kind: input, shape index: {}]
  %s2 = inlined_call_operand.vmem [shape: f32[1,1,128], index: 2, kind: input, shape index: {}]
  %s3 = inlined_call_operand.vmem [shape: bf16[128,128], index: 3, kind: input, shape index: {}]
  %s4 = inlined_call_operand.vmem [shape: f32[1,128], index: 4, kind: input, shape index: {}]
  %s5 = inlined_call_operand.vmem [shape: f32[2,128], index: 5, kind: output, shape index: {}]
  %s6 = sld [smem:[#allocation0]]
  $region30: #{fconv_densenet_forward.11} parent=0
    _
  %s8 = ssub.s32 1, %s6
  %s9 = scalar_select 0, %s8, %s6
  // Predicated region
  $region2: #{fconv_densenet_forward.11} parent=0 // pred_check
    _
  $region3: #{fconv_densenet_forward.11} parent=0 // pred_check_branch
    %11 = sbr.rel (0) target = $region5
  $region4: #{fconv_densenet_forward.11} parent=0 // pred_region
    _
  $region5: #{fconv_densenet_forward.11} parent=0 // pred_fallthru
    _
  // Predicated region
  $region6: #{fconv_densenet_forward.11} parent=0 // pred_check
    _
  $region7: #{fconv_densenet_forward.11} parent=0 // pred_check_branch
    %13 = sbr.rel (0) target = $region9
  $region8: #{fconv_densenet_forward.11} parent=0 // pred_region
    _
  $region9: #{fconv_densenet_forward.11} parent=0 // pred_fallthru
    _
  // Predicated region
  $region10: #{fconv_densenet_forward.11} parent=0 // pred_check
    _
  $region11: #{fconv_densenet_forward.11} parent=0 // pred_check_branch
    %15 = sbr.rel (0) target = $region13
  $region12: #{fconv_densenet_forward.11} parent=0 // pred_region
    _
  $region13: #{fconv_densenet_forward.11} parent=0 // pred_fallthru
    _
  // Predicated region
  $region14: #{fconv_densenet_forward.11} parent=0 // pred_check
    _
  $region15: #{fconv_densenet_forward.11} parent=0 // pred_check_branch
    %17 = sbr.rel (0) target = $region17
  $region16: #{fconv_densenet_forward.11} parent=0 // pred_region
    _
  $region17: #{fconv_densenet_forward.11} parent=0 // pred_fallthru
    _
  // Predicated region
  $region18: #{fconv_densenet_forward.11} parent=0 // pred_check
    _
  $region19: #{fconv_densenet_forward.11} parent=0 // pred_check_branch
    %19 = sbr.rel (0) target = $region21
  $region20: #{fconv_densenet_forward.11} parent=0 // pred_region
    _
  $region21: #{fconv_densenet_forward.11} parent=0 // pred_fallthru
    _
  %v21 = vld [vmem:[%s0] sm:$0x3]
  %v22 = vpack.c.bf16 %v21, %v21
  %v23 = vld [vmem:[%s1] sm:$0xf]
  %v24 = vld [vmem:[%s1 + $0x4] sm:$0xf]
  %v25 = vld [vmem:[%s1 + $0x8] sm:$0xf]
  %v26 = vld [vmem:[%s1 + $0xc] sm:$0xf]
  %v27 = vld [vmem:[%s1 + $0x10] sm:$0xf]
  %v28 = vld [vmem:[%s1 + $0x14] sm:$0xf]
  %v29 = vld [vmem:[%s1 + $0x18] sm:$0xf]
  %v30 = vld [vmem:[%s1 + $0x1c] sm:$0xf]
  %v31 = vld [vmem:[%s1 + $0x20] sm:$0xf]
  %v32 = vld [vmem:[%s1 + $0x24] sm:$0xf]
  %v33 = vld [vmem:[%s1 + $0x28] sm:$0xf]
  %v34 = vld [vmem:[%s1 + $0x2c] sm:$0xf]
  %v35 = vld [vmem:[%s1 + $0x30] sm:$0xf]
  %v36 = vld [vmem:[%s1 + $0x34] sm:$0xf]
  %v37 = vld [vmem:[%s1 + $0x38] sm:$0xf]
  %v38 = vld [vmem:[%s1 + $0x3c] sm:$0xf]
  %v39 = vld [vmem:[%s2] sm:$0x1]
  %v41 = vlaneseq
  %v42 = vshrl.u32 %v41, 7
  %v43 = vsub.s32 0, %v42
  %v44 = vrot.slane %v39, %v43
  %v62 = vunpack.c.l.b16 %v23
  %v63 = vunpack.c.l.b16 %v24
  %v64 = vunpack.c.l.b16 %v25
  %v65 = vunpack.c.l.b16 %v26
  %v66 = vunpack.c.l.b16 %v27
  %v67 = vunpack.c.l.b16 %v28
  %v68 = vunpack.c.l.b16 %v29
  %v69 = vunpack.c.l.b16 %v30
  %v70 = vunpack.c.l.b16 %v31
  %v71 = vunpack.c.l.b16 %v32
  %v72 = vunpack.c.l.b16 %v33
  %v73 = vunpack.c.l.b16 %v34
  %v74 = vunpack.c.l.b16 %v35
  %v75 = vunpack.c.l.b16 %v36
  %v76 = vunpack.c.l.b16 %v37
  %v77 = vunpack.c.l.b16 %v38
  %v78 = vpack.c.b16 %v63, %v62
  %v79 = vpack.c.b16 %v65, %v64
  %v80 = vpack.c.b16 %v67, %v66
  %v81 = vpack.c.b16 %v69, %v68
  %v82 = vpack.c.b16 %v71, %v70
  %v83 = vpack.c.b16 %v73, %v72
  %v84 = vpack.c.b16 %v75, %v74
  %v85 = vpack.c.b16 %v77, %v76
  %94 = vmatprep.subr.bf16.mxu0 0
  %95 = vmatpush1.bf16.msra.mxu0 %v78
  %96 = vmatprep.subr.bf16.mxu0 0
  %97 = vmatpush1.bf16.msra.mxu0 %v79
  %98 = vmatprep.subr.bf16.mxu0 0
  %99 = vmatpush1.bf16.msra.mxu0 %v80
  %100 = vmatprep.subr.bf16.mxu0 0
  %101 = vmatpush1.bf16.msra.mxu0 %v81
  %102 = vmatprep.subr.bf16.mxu0 0
  %103 = vmatpush1.bf16.msra.mxu0 %v82
  %104 = vmatprep.subr.bf16.mxu0 0
  %105 = vmatpush1.bf16.msra.mxu0 %v83
  %106 = vmatprep.subr.bf16.mxu0 0
  %107 = vmatpush1.bf16.msra.mxu0 %v84
  %108 = vmatprep.subr.bf16.mxu0 0
  %109 = vmatpush1.bf16.msra.mxu0 %v85
  %110 = vmatprep.subr.bf16.mxu0 0
  %111 = vmatpush1.bf16.msra.mxu0 0
  %112 = vmatprep.subr.bf16.mxu0 0
  %113 = vmatpush1.bf16.msra.mxu0 0
  %114 = vmatprep.subr.bf16.mxu0 0
  %115 = vmatpush1.bf16.msra.mxu0 0
  %116 = vmatprep.subr.bf16.mxu0 0
  %117 = vmatpush1.bf16.msra.mxu0 0
  %118 = vmatprep.subr.bf16.mxu0 0
  %119 = vmatpush1.bf16.msra.mxu0 0
  %120 = vmatprep.subr.bf16.mxu0 0
  %121 = vmatpush1.bf16.msra.mxu0 0
  %122 = vmatprep.subr.bf16.mxu0 0
  %123 = vmatpush1.bf16.msra.mxu0 0
  %124 = vmatprep.subr.bf16.mxu0 0
  %125 = vmatpush1.bf16.msra.mxu0 0
  %126 = vmatprep.mubr.bf16.mxu0 0
  %127 = vmatmul.mubr.bf16.gmra.mrb[0].mxu0 %v22
  %v128 = vpop.f32.mrb[0].mxu0
  %v129 = vadd.f32 %v44, %v128
  %v130 = vpop.f32.mrb[0].mxu0
  %v131 = vpop.f32.mrb[0].mxu0
  %v132 = vpop.f32.mrb[0].mxu0
  %133 = vdwg.mxu0
  %v134 = vmax.f32 %v129, 0.0
  %v135 = vpack.c.bf16 %v134, %v134
  %v136 = vld [vmem:[%s3] sm:$0xf]
  %v137 = vld [vmem:[%s3 + $0x4] sm:$0xf]
  %v138 = vld [vmem:[%s3 + $0x8] sm:$0xf]
  %v139 = vld [vmem:[%s3 + $0xc] sm:$0xf]
  %v140 = vld [vmem:[%s3 + $0x10] sm:$0xf]
  %v141 = vld [vmem:[%s3 + $0x14] sm:$0xf]
  %v142 = vld [vmem:[%s3 + $0x18] sm:$0xf]
  %v143 = vld [vmem:[%s3 + $0x1c] sm:$0xf]
  %v144 = vld [vmem:[%s3 + $0x20] sm:$0xf]
  %v145 = vld [vmem:[%s3 + $0x24] sm:$0xf]
  %v146 = vld [vmem:[%s3 + $0x28] sm:$0xf]
  %v147 = vld [vmem:[%s3 + $0x2c] sm:$0xf]
  %v148 = vld [vmem:[%s3 + $0x30] sm:$0xf]
  %v149 = vld [vmem:[%s3 + $0x34] sm:$0xf]
  %v150 = vld [vmem:[%s3 + $0x38] sm:$0xf]
  %v151 = vld [vmem:[%s3 + $0x3c] sm:$0xf]
  %v152 = vld [vmem:[%s4] sm:$0x1]
  %v154 = vlaneseq
  %v155 = vshrl.u32 %v154, 7
  %v156 = vsub.s32 0, %v155
  %v157 = vrot.slane %v152, %v156
  %v175 = vunpack.c.l.b16 %v136
  %v176 = vunpack.c.l.b16 %v137
  %v177 = vunpack.c.l.b16 %v138
  %v178 = vunpack.c.l.b16 %v139
  %v179 = vunpack.c.l.b16 %v140
  %v180 = vunpack.c.l.b16 %v141
  %v181 = vunpack.c.l.b16 %v142
  %v182 = vunpack.c.l.b16 %v143
  %v183 = vunpack.c.l.b16 %v144
  %v184 = vunpack.c.l.b16 %v145
  %v185 = vunpack.c.l.b16 %v146
  %v186 = vunpack.c.l.b16 %v147
  %v187 = vunpack.c.l.b16 %v148
  %v188 = vunpack.c.l.b16 %v149
  %v189 = vunpack.c.l.b16 %v150
  %v190 = vunpack.c.l.b16 %v151
  %v191 = vpack.c.b16 %v176, %v175
  %v192 = vpack.c.b16 %v178, %v177
  %v193 = vpack.c.b16 %v180, %v179
  %v194 = vpack.c.b16 %v182, %v181
  %v195 = vpack.c.b16 %v184, %v183
  %v196 = vpack.c.b16 %v186, %v185
  %v197 = vpack.c.b16 %v188, %v187
  %v198 = vpack.c.b16 %v190, %v189
  %207 = vmatprep.subr.bf16.mxu0 0
  %208 = vmatpush1.bf16.msra.mxu0 %v191
  %209 = vmatprep.subr.bf16.mxu0 0
  %210 = vmatpush1.bf16.msra.mxu0 %v192
  %211 = vmatprep.subr.bf16.mxu0 0
  %212 = vmatpush1.bf16.msra.mxu0 %v193
  %213 = vmatprep.subr.bf16.mxu0 0
  %214 = vmatpush1.bf16.msra.mxu0 %v194
  %215 = vmatprep.subr.bf16.mxu0 0
  %216 = vmatpush1.bf16.msra.mxu0 %v195
  %217 = vmatprep.subr.bf16.mxu0 0
  %218 = vmatpush1.bf16.msra.mxu0 %v196
  %219 = vmatprep.subr.bf16.mxu0 0
  %220 = vmatpush1.bf16.msra.mxu0 %v197
  %221 = vmatprep.subr.bf16.mxu0 0
  %222 = vmatpush1.bf16.msra.mxu0 %v198
  %223 = vmatprep.subr.bf16.mxu0 0
  %224 = vmatpush1.bf16.msra.mxu0 0
  %225 = vmatprep.subr.bf16.mxu0 0
  %226 = vmatpush1.bf16.msra.mxu0 0
  %227 = vmatprep.subr.bf16.mxu0 0
  %228 = vmatpush1.bf16.msra.mxu0 0
  %229 = vmatprep.subr.bf16.mxu0 0
  %230 = vmatpush1.bf16.msra.mxu0 0
  %231 = vmatprep.subr.bf16.mxu0 0
  %232 = vmatpush1.bf16.msra.mxu0 0
  %233 = vmatprep.subr.bf16.mxu0 0
  %234 = vmatpush1.bf16.msra.mxu0 0
  %235 = vmatprep.subr.bf16.mxu0 0
  %236 = vmatpush1.bf16.msra.mxu0 0
  %237 = vmatprep.subr.bf16.mxu0 0
  %238 = vmatpush1.bf16.msra.mxu0 0
  %239 = vmatprep.mubr.bf16.mxu0 0
  %240 = vmatmul.mubr.bf16.gmra.mrb[0].mxu0 %v135
  %v241 = vpop.f32.mrb[0].mxu0
  %v242 = vadd.f32 %v157, %v241
  %v243 = vpop.f32.mrb[0].mxu0
  %v244 = vpop.f32.mrb[0].mxu0
  %v245 = vpop.f32.mrb[0].mxu0
  %246 = vdwg.mxu0
  %247 = vst [vmem:[%s5] sm:$0x3] %v242
  // Predicated region
  $region22: #{fconv_densenet_forward.11} parent=0 // pred_check
    _
  $region23: #{fconv_densenet_forward.11} parent=0 // pred_check_branch
    %249 = sbr.rel (0) target = $region25
  $region24: #{fconv_densenet_forward.11} parent=0 // pred_region
    _
  $region25: #{fconv_densenet_forward.11} parent=0 // pred_fallthru
    _
  // Predicated region
  $region26: #{fconv_densenet_forward.11} parent=0 // pred_check
    _
  $region27: #{fconv_densenet_forward.11} parent=0 // pred_check_branch
    %251 = sbr.rel (0) target = $region29
  $region28: #{fconv_densenet_forward.11} parent=0 // pred_region
    _
  $region29: #{fconv_densenet_forward.11} parent=0 // pred_fallthru
    _

// kernel: fconv_densenet_forward.9
$region0: #{fconv_densenet_forward.9}
  #allocation0 [shape = 'u32[]', space=smem, size = 0x4, offset = 0x4, fixed_abs, tag = 'smem constant byte address 0x4 - core index']
  #allocation1 [shape = 'u32[144,128]{1,0:T(1,128)}', space=vmem, size = 0x12000, scoped, tag = 'internal scratch']
  #allocation2 [shape = 'f32[32,128]{1,0:T(8,128)}', space=vmem, size = 0x4000, scoped, tag = 'scratch operand']
  #allocation3 [shape = 'f32[42,128]{1,0:T(8,128)}', space=vmem, size = 0x6000, scoped, tag = 'scratch operand']
  %s0 = inlined_call_operand.vmem [shape: f32[32,128], index: 0, kind: input, shape index: {}]
  %s1 = inlined_call_operand.vmem [shape: f32[2,1,128], index: 1, kind: input, shape index: {}]
  %s2 = inlined_call_operand.vmem [shape: f32[2,1,128], index: 2, kind: input, shape index: {}]
  %s3 = inlined_call_operand.vmem [shape: bf16[2,128,128], index: 3, kind: input, shape index: {}]
  %s4 = inlined_call_operand.vmem [shape: f32[2,1,128], index: 4, kind: input, shape index: {}]
  %s5 = inlined_call_operand.vmem [shape: f32[2,1,128], index: 5, kind: input, shape index: {}]
  %s6 = inlined_call_operand.vmem [shape: bf16[2,384,128], index: 6, kind: input, shape index: {}]
  %s7 = inlined_call_operand.vmem [shape: f32[32,128], index: 7, kind: output, shape index: {}]
  %s8 = sld [smem:[#allocation0]]
  $region69: #{fconv_densenet_forward.9} parent=0
    _
  %s10 = ssub.s32 1, %s8
  %s11 = scalar_select 0, %s10, %s8
  loop: start=0, step=1, limit=4
  $region2: #{fconv_densenet_forward.9} parent=0 // loop_pre_header
    _
  $region3: #{fconv_densenet_forward.9} parent=0 // loop_header
    %s13 = sphi 0, %s17
    %p14 = scmp.ge.s32.totalorder %s13, 4
    %s21 = sphi 0, %s21
    %s23 = sphi 0, %s21
    %s24 = sphi 0, %s23
    %s38 = sphi 0, %s24
    %s44 = sphi 0, %s46
    %s47 = sphi 0, %s44
    %s48 = sphi 0, %s47
    %s64 = sphi 0, %s48
    %s70 = sphi 0, %s72
    %s73 = sphi 0, %s70
    %s74 = sphi 0, %s73
    %s90 = sphi 0, %s74
    %s96 = sphi 0, %s98
    %s99 = sphi 0, %s96
    %s100 = sphi 0, %s99
    %s116 = sphi 0, %s100
    %s122 = sphi 0, %s124
    %s125 = sphi 0, %s122
    %s126 = sphi 0, %s125
    %s142 = sphi 0, %s126
    %s148 = sphi 0, %s150
    %s151 = sphi 0, %s148
    %s152 = sphi 0, %s151
    %s168 = sphi 0, %s152
    %s174 = sphi 0, %s176
    %s177 = sphi 0, %s174
    %s178 = sphi 0, %s177
    %s194 = sphi 0, %s178
    %s198 = sphi 0, %s198
    %s200 = sphi 0, %s198
    %s201 = sphi 0, %s200
    %s215 = sphi 0, %s201
  $region4: #{fconv_densenet_forward.9} parent=0 // loop_header_branch
    %16 = sbr.rel (%p14) target = $region8
  $region5: #{fconv_densenet_forward.9} parent=0 // loop_body
    %s18 = ssub.s32 %s13, 1
    %s19 = ssub.s32 %s13, 2
    %s20 = sadd.s32 %s13, 1
    %s22 = sadd.s32 %s21, 1
    %p25 = scmp.eq.s32.totalorder %s13, 1
    %p26 = scmp.ne.s32.totalorder %s21, %s23
    %p27 = scmp.eq.s32.totalorder %s13, 0
    %p28 = por %p26, %p27
    %p29 = scmp.ne.s32.totalorder %s21, %s23
    %p30 = scmp.eq.s32.totalorder %s18, 1
    %p31 = por %p29, %p30
    %p32 = scmp.ne.s32.totalorder %s23, %s24
    %p33 = scmp.eq.s32.totalorder %s18, 0
    %p34 = por %p32, %p33
    %p35 = scmp.ne.s32.totalorder %s23, %s24
    %p36 = scmp.eq.s32.totalorder %s19, 1
    %p37 = por %p35, %p36
    %p39 = scmp.ne.s32.totalorder %s24, %s38
    %p40 = scmp.eq.s32.totalorder %s19, 0
    %p41 = por %p39, %p40
    %s42 = ssub.s32 %s13, %s20
    %p43 = scmp.eq.s32.totalorder %s42, 0
    %s45 = sadd.s32 %s44, 1
    %s46 = scalar_select %p43, %s44, %s45
    %p49 = pneg %p43
    %p50 = scmp.eq.s32.totalorder %s13, 1
    %p51 = por %p49, %p50
    %p52 = scmp.ne.s32.totalorder %s44, %s47
    %p53 = scmp.eq.s32.totalorder %s13, 0
    %p54 = por %p52, %p53
    %p55 = scmp.ne.s32.totalorder %s44, %s47
    %p56 = scmp.eq.s32.totalorder %s18, 1
    %p57 = por %p55, %p56
    %p58 = scmp.ne.s32.totalorder %s47, %s48
    %p59 = scmp.eq.s32.totalorder %s18, 0
    %p60 = por %p58, %p59
    %p61 = scmp.ne.s32.totalorder %s47, %s48
    %p62 = scmp.eq.s32.totalorder %s19, 1
    %p63 = por %p61, %p62
    %p65 = scmp.ne.s32.totalorder %s48, %s64
    %p66 = scmp.eq.s32.totalorder %s19, 0
    %p67 = por %p65, %p66
    %s68 = ssub.s32 %s13, %s20
    %p69 = scmp.eq.s32.totalorder %s68, 0
    %s71 = sadd.s32 %s70, 1
    %s72 = scalar_select %p69, %s70, %s71
    %p75 = pneg %p69
    %p76 = scmp.eq.s32.totalorder %s13, 1
    %p77 = por %p75, %p76
    %p78 = scmp.ne.s32.totalorder %s70, %s73
    %p79 = scmp.eq.s32.totalorder %s13, 0
    %p80 = por %p78, %p79
    %p81 = scmp.ne.s32.totalorder %s70, %s73
    %p82 = scmp.eq.s32.totalorder %s18, 1
    %p83 = por %p81, %p82
    %p84 = scmp.ne.s32.totalorder %s73, %s74
    %p85 = scmp.eq.s32.totalorder %s18, 0
    %p86 = por %p84, %p85
    %p87 = scmp.ne.s32.totalorder %s73, %s74
    %p88 = scmp.eq.s32.totalorder %s19, 1
    %p89 = por %p87, %p88
    %p91 = scmp.ne.s32.totalorder %s74, %s90
    %p92 = scmp.eq.s32.totalorder %s19, 0
    %p93 = por %p91, %p92
    %s94 = ssub.s32 %s13, %s20
    %p95 = scmp.eq.s32.totalorder %s94, 0
    %s97 = sadd.s32 %s96, 1
    %s98 = scalar_select %p95, %s96, %s97
    %p101 = pneg %p95
    %p102 = scmp.eq.s32.totalorder %s13, 1
    %p103 = por %p101, %p102
    %p104 = scmp.ne.s32.totalorder %s96, %s99
    %p105 = scmp.eq.s32.totalorder %s13, 0
    %p106 = por %p104, %p105
    %p107 = scmp.ne.s32.totalorder %s96, %s99
    %p108 = scmp.eq.s32.totalorder %s18, 1
    %p109 = por %p107, %p108
    %p110 = scmp.ne.s32.totalorder %s99, %s100
    %p111 = scmp.eq.s32.totalorder %s18, 0
    %p112 = por %p110, %p111
    %p113 = scmp.ne.s32.totalorder %s99, %s100
    %p114 = scmp.eq.s32.totalorder %s19, 1
    %p115 = por %p113, %p114
    %p117 = scmp.ne.s32.totalorder %s100, %s116
    %p118 = scmp.eq.s32.totalorder %s19, 0
    %p119 = por %p117, %p118
    %s120 = ssub.s32 %s13, %s20
    %p121 = scmp.eq.s32.totalorder %s120, 0
    %s123 = sadd.s32 %s122, 1
    %s124 = scalar_select %p121, %s122, %s123
    %p127 = pneg %p121
    %p128 = scmp.eq.s32.totalorder %s13, 1
    %p129 = por %p127, %p128
    %p130 = scmp.ne.s32.totalorder %s122, %s125
    %p131 = scmp.eq.s32.totalorder %s13, 0
    %p132 = por %p130, %p131
    %p133 = scmp.ne.s32.totalorder %s122, %s125
    %p134 = scmp.eq.s32.totalorder %s18, 1
    %p135 = por %p133, %p134
    %p136 = scmp.ne.s32.totalorder %s125, %s126
    %p137 = scmp.eq.s32.totalorder %s18, 0
    %p138 = por %p136, %p137
    %p139 = scmp.ne.s32.totalorder %s125, %s126
    %p140 = scmp.eq.s32.totalorder %s19, 1
    %p141 = por %p139, %p140
    %p143 = scmp.ne.s32.totalorder %s126, %s142
    %p144 = scmp.eq.s32.totalorder %s19, 0
    %p145 = por %p143, %p144
    %s146 = ssub.s32 %s13, %s20
    %p147 = scmp.eq.s32.totalorder %s146, 0
    %s149 = sadd.s32 %s148, 1
    %s150 = scalar_select %p147, %s148, %s149
    %p153 = pneg %p147
    %p154 = scmp.eq.s32.totalorder %s13, 1
    %p155 = por %p153, %p154
    %p156 = scmp.ne.s32.totalorder %s148, %s151
    %p157 = scmp.eq.s32.totalorder %s13, 0
    %p158 = por %p156, %p157
    %p159 = scmp.ne.s32.totalorder %s148, %s151
    %p160 = scmp.eq.s32.totalorder %s18, 1
    %p161 = por %p159, %p160
    %p162 = scmp.ne.s32.totalorder %s151, %s152
    %p163 = scmp.eq.s32.totalorder %s18, 0
    %p164 = por %p162, %p163
    %p165 = scmp.ne.s32.totalorder %s151, %s152
    %p166 = scmp.eq.s32.totalorder %s19, 1
    %p167 = por %p165, %p166
    %p169 = scmp.ne.s32.totalorder %s152, %s168
    %p170 = scmp.eq.s32.totalorder %s19, 0
    %p171 = por %p169, %p170
    %s172 = ssub.s32 %s13, %s20
    %p173 = scmp.eq.s32.totalorder %s172, 0
    %s175 = sadd.s32 %s174, 1
    %s176 = scalar_select %p173, %s174, %s175
    %p179 = pneg %p173
    %p180 = scmp.eq.s32.totalorder %s13, 1
    %p181 = por %p179, %p180
    %p182 = scmp.ne.s32.totalorder %s174, %s177
    %p183 = scmp.eq.s32.totalorder %s13, 0
    %p184 = por %p182, %p183
    %p185 = scmp.ne.s32.totalorder %s174, %s177
    %p186 = scmp.eq.s32.totalorder %s18, 1
    %p187 = por %p185, %p186
    %p188 = scmp.ne.s32.totalorder %s177, %s178
    %p189 = scmp.eq.s32.totalorder %s18, 0
    %p190 = por %p188, %p189
    %p191 = scmp.ne.s32.totalorder %s177, %s178
    %p192 = scmp.eq.s32.totalorder %s19, 1
    %p193 = por %p191, %p192
    %p195 = scmp.ne.s32.totalorder %s178, %s194
    %p196 = scmp.eq.s32.totalorder %s19, 0
    %p197 = por %p195, %p196
    %s199 = sadd.s32 %s198, 1
    %p202 = scmp.eq.s32.totalorder %s13, 1
    %p203 = scmp.ne.s32.totalorder %s198, %s200
    %p204 = scmp.eq.s32.totalorder %s13, 0
    %p205 = por %p203, %p204
    %p206 = scmp.ne.s32.totalorder %s198, %s200
    %p207 = scmp.eq.s32.totalorder %s18, 1
    %p208 = por %p206, %p207
    %p209 = scmp.ne.s32.totalorder %s200, %s201
    %p210 = scmp.eq.s32.totalorder %s18, 0
    %p211 = por %p209, %p210
    %p212 = scmp.ne.s32.totalorder %s200, %s201
    %p213 = scmp.eq.s32.totalorder %s19, 1
    %p214 = por %p212, %p213
    %p216 = scmp.ne.s32.totalorder %s201, %s215
    %p217 = scmp.eq.s32.totalorder %s19, 0
    %p218 = por %p216, %p217
    %p219 = scmp.le.s32.totalorder 1, %s13
    %p220 = scmp.lt.s32.totalorder %s13, 3
    %p221 = pnand %p219, %p220
    %p222 = pneg %p221
    // Predicated region
    $region9: #{fconv_densenet_forward.9} parent=5 // pred_check
      _
    $region10: #{fconv_densenet_forward.9} parent=5 // pred_check_branch
      %224 = sbr.rel (%p221) target = $region12
    $region11: #{fconv_densenet_forward.9} parent=5 // pred_region
      %s225 = ssub.s32 %s13, 1
      // Predicated region
      $region13: #{fconv_densenet_forward.9} parent=11 // pred_check
        %p226 = pneg %p34
      $region14: #{fconv_densenet_forward.9} parent=11 // pred_check_branch
        %228 = sbr.rel (%p226) target = $region16
      $region15: #{fconv_densenet_forward.9} parent=11 // pred_region
        _
      $region16: #{fconv_densenet_forward.9} parent=11 // pred_fallthru
        _
    $region12: #{fconv_densenet_forward.9} parent=5 // pred_fallthru
      _
    %p229 = scmp.lt.s32.totalorder %s13, 2
    // Predicated region
    $region17: #{fconv_densenet_forward.9} parent=5 // pred_check
      %p230 = pneg %p229
    $region18: #{fconv_densenet_forward.9} parent=5 // pred_check_branch
      %232 = sbr.rel (%p230) target = $region20
    $region19: #{fconv_densenet_forward.9} parent=5 // pred_region
      // Predicated region
      $region21: #{fconv_densenet_forward.9} parent=19 // pred_check
        %p233 = pneg %p54
      $region22: #{fconv_densenet_forward.9} parent=19 // pred_check_branch
        %235 = sbr.rel (%p233) target = $region24
      $region23: #{fconv_densenet_forward.9} parent=19 // pred_region
        %p236 = scmp.lt.s32.totalorder %s13, 1
        %s237 = scalar_select %p236, %s13, 1
        %s238 = scalar_lea.vmem %s1, %s237
      $region24: #{fconv_densenet_forward.9} parent=19 // pred_fallthru
        _
      // Predicated region
      $region25: #{fconv_densenet_forward.9} parent=19 // pred_check
        %p239 = pneg %p80
      $region26: #{fconv_densenet_forward.9} parent=19 // pred_check_branch
        %241 = sbr.rel (%p239) target = $region28
      $region27: #{fconv_densenet_forward.9} parent=19 // pred_region
        %p242 = scmp.lt.s32.totalorder %s13, 1
        %s243 = scalar_select %p242, %s13, 1
        %s244 = scalar_lea.vmem %s2, %s243
      $region28: #{fconv_densenet_forward.9} parent=19 // pred_fallthru
        _
      // Predicated region
      $region29: #{fconv_densenet_forward.9} parent=19 // pred_check
        %p245 = pneg %p106
      $region30: #{fconv_densenet_forward.9} parent=19 // pred_check_branch
        %247 = sbr.rel (%p245) target = $region32
      $region31: #{fconv_densenet_forward.9} parent=19 // pred_region
        %p248 = scmp.lt.s32.totalorder %s13, 1
        %s249 = scalar_select %p248, %s13, 1
        %s250 = smul.addr %s249, 16
        %s251 = smul.addr %s250, 4
        %s252 = scalar_lea.vmem %s3, %s251
      $region32: #{fconv_densenet_forward.9} parent=19 // pred_fallthru
        _
      // Predicated region
      $region33: #{fconv_densenet_forward.9} parent=19 // pred_check
        %p253 = pneg %p132
      $region34: #{fconv_densenet_forward.9} parent=19 // pred_check_branch
        %255 = sbr.rel (%p253) target = $region36
      $region35: #{fconv_densenet_forward.9} parent=19 // pred_region
        %p256 = scmp.lt.s32.totalorder %s13, 1
        %s257 = scalar_select %p256, %s13, 1
        %s258 = scalar_lea.vmem %s4, %s257
      $region36: #{fconv_densenet_forward.9} parent=19 // pred_fallthru
        _
      // Predicated region
      $region37: #{fconv_densenet_forward.9} parent=19 // pred_check
        %p259 = pneg %p158
      $region38: #{fconv_densenet_forward.9} parent=19 // pred_check_branch
        %261 = sbr.rel (%p259) target = $region40
      $region39: #{fconv_densenet_forward.9} parent=19 // pred_region
        %p262 = scmp.lt.s32.totalorder %s13, 1
        %s263 = scalar_select %p262, %s13, 1
        %s264 = scalar_lea.vmem %s5, %s263
      $region40: #{fconv_densenet_forward.9} parent=19 // pred_fallthru
        _
      // Predicated region
      $region41: #{fconv_densenet_forward.9} parent=19 // pred_check
        %p265 = pneg %p184
      $region42: #{fconv_densenet_forward.9} parent=19 // pred_check_branch
        %267 = sbr.rel (%p265) target = $region44
      $region43: #{fconv_densenet_forward.9} parent=19 // pred_region
        %p268 = scmp.lt.s32.totalorder %s13, 1
        %s269 = scalar_select %p268, %s13, 1
        %s270 = smul.addr %s269, 48
        %s271 = smul.addr %s270, 4
        %s272 = scalar_lea.vmem %s6, %s271
      $region44: #{fconv_densenet_forward.9} parent=19 // pred_fallthru
        _
    $region20: #{fconv_densenet_forward.9} parent=5 // pred_fallthru
      _
    %p273 = scmp.le.s32.totalorder 1, %s13
    %p274 = scmp.lt.s32.totalorder %s13, 3
    %p275 = pnand %p273, %p274
    %p276 = pneg %p275
    // Predicated region
    $region45: #{fconv_densenet_forward.9} parent=5 // pred_check
      _
    $region46: #{fconv_densenet_forward.9} parent=5 // pred_check_branch
      %278 = sbr.rel (%p275) target = $region48
    $region47: #{fconv_densenet_forward.9} parent=5 // pred_region
      %s279 = ssub.s32 %s13, 1
      %p280 = pneg %p34
      %p281 = pneg %p31
      %p282 = scmp.lt.s32.totalorder %s18, 1
      %s283 = scalar_select %p282, %s18, 1
      %s284 = scalar_lea.vmem %s1, %s283
      %p285 = pneg %p60
      %p286 = pneg %p57
      %p287 = scmp.lt.s32.totalorder %s18, 1
      %s288 = scalar_select %p287, %s18, 1
      %s289 = scalar_lea.vmem %s2, %s288
      %p290 = pneg %p86
      %p291 = pneg %p83
      %p292 = scmp.lt.s32.totalorder %s18, 1
      %s293 = scalar_select %p292, %s18, 1
      %s294 = smul.addr %s293, 16
      %s295 = smul.addr %s294, 4
      %s296 = scalar_lea.vmem %s3, %s295
      %p297 = pneg %p112
      %p298 = pneg %p109
      %p299 = scmp.lt.s32.totalorder %s18, 1
      %s300 = scalar_select %p299, %s18, 1
      %s301 = scalar_lea.vmem %s4, %s300
      %p302 = pneg %p138
      %p303 = pneg %p135
      %p304 = scmp.lt.s32.totalorder %s18, 1
      %s305 = scalar_select %p304, %s18, 1
      %s306 = scalar_lea.vmem %s5, %s305
      %p307 = pneg %p164
      %p308 = pneg %p161
      %p309 = scmp.lt.s32.totalorder %s18, 1
      %s310 = scalar_select %p309, %s18, 1
      %s311 = smul.addr %s310, 48
      %s312 = smul.addr %s311, 4
      %s313 = scalar_lea.vmem %s6, %s312
      %p314 = pneg %p190
      %p315 = pneg %p187
      %p316 = pneg %p211
      %p317 = pneg %p208
      %p318 = scmp.lt.s32.totalorder %s18, 1
      %s319 = scalar_select %p318, %s18, 1
      %s320 = scalar_lea.vmem %s1, %s319
      %p321 = scmp.lt.s32.totalorder %s18, 1
      %s322 = scalar_select %p321, %s18, 1
      %s323 = scalar_lea.vmem %s2, %s322
      %p324 = scmp.lt.s32.totalorder %s18, 1
      %s325 = scalar_select %p324, %s18, 1
      %s326 = smul.addr %s325, 16
      %s327 = smul.addr %s326, 4
      %s328 = scalar_lea.vmem %s3, %s327
      %p329 = scmp.lt.s32.totalorder %s18, 1
      %s330 = scalar_select %p329, %s18, 1
      %s331 = scalar_lea.vmem %s4, %s330
      %p332 = scmp.lt.s32.totalorder %s18, 1
      %s333 = scalar_select %p332, %s18, 1
      %s334 = scalar_lea.vmem %s5, %s333
      %p335 = scmp.lt.s32.totalorder %s18, 1
      %s336 = scalar_select %p335, %s18, 1
      %s337 = smul.addr %s336, 48
      %s338 = smul.addr %s337, 4
      %s339 = scalar_lea.vmem %s6, %s338
      %p341 = scmp.eq.s32.totalorder %s18, 0
      // Predicated region
      $region49: #{fconv_densenet_forward.9} parent=47 // pred_check
        %p342 = pneg %p341
      $region50: #{fconv_densenet_forward.9} parent=47 // pred_check_branch
        %344 = sbr.rel (%p342) target = $region52
      $region51: #{fconv_densenet_forward.9} parent=47 // pred_region
        %v345 = vlaneseq
        %v346 = vand.u32 %v345, 127
        %vm347 = vcmp.lt.s32.totalorder %v346, 16
        %v348 = vld [vmem:[%s0] sm:$0xff]
        %v349 = vld [vmem:[%s0 + $0x8] sm:$0xff]
        %v350 = vld [vmem:[%s0 + $0x10] sm:$0xff]
        %v351 = vld [vmem:[%s0 + $0x18] sm:$0xff]
        %v352 = vsel %vm347, 1, 0
        %vm353 = vcmp.eq.s32.totalorder %v352, 1
        %v354 = vsel %vm353, %v348, 0.0
        %v355 = vsel %vm353, %v349, 0.0
        %v356 = vsel %vm353, %v350, 0.0
        %v357 = vsel %vm353, %v351, 0.0
        %358 = vst [vmem:[#allocation2] sm:$0xff] %v354
        %359 = vst [vmem:[#allocation2 + $0x8] sm:$0xff] %v355
        %360 = vst [vmem:[#allocation2 + $0x10] sm:$0xff] %v356
        %361 = vst [vmem:[#allocation2 + $0x18] sm:$0xff] %v357
        %362 = vst [vmem:[#allocation3] sm:$0xff] 0.0
        %363 = vst [vmem:[#allocation3 + $0x8] sm:$0xff] 0.0
        %364 = vst [vmem:[#allocation3 + $0x10] sm:$0xff] 0.0
        %365 = vst [vmem:[#allocation3 + $0x18] sm:$0xff] 0.0
        %366 = vst [vmem:[#allocation3 + $0x20] sm:$0xff] 0.0
        %367 = vst [vmem:[#allocation3 + $0x28] sm:$0x3] 0.0
      $region52: #{fconv_densenet_forward.9} parent=47 // pred_fallthru
        _
      %v368 = vld [vmem:[#allocation2] sm:$0xff]
      %v369 = vld [vmem:[#allocation2 + $0x8] sm:$0xff]
      %v370 = vld [vmem:[#allocation2 + $0x10] sm:$0xff]
      %v371 = vld [vmem:[#allocation2 + $0x18] sm:$0xff]
      %v372 = vadd.f32 %v368, %v369
      %v373 = vadd.f32 %v372, %v370
      %v374 = vadd.f32 %v373, %v371
      %v375 = vrot.slane %v374, 4
      %v376 = vadd.f32 %v374, %v375
      %v377 = vrot.slane %v376, 2
      %v378 = vadd.f32 %v376, %v377
      %v379 = vrot.slane %v378, 1
      %v380 = vadd.f32 %v378, %v379
      %v381 = vmul.f32 %v380, 0.03125
      %v382 = vmul.f32 %v368, %v368
      %v383 = vmul.f32 %v369, %v369
      %v384 = vmul.f32 %v370, %v370
      %v385 = vmul.f32 %v371, %v371
      %v386 = vadd.f32 %v382, %v383
      %v387 = vadd.f32 %v386, %v384
      %v388 = vadd.f32 %v387, %v385
      %v389 = vrot.slane %v388, 4
      %v390 = vadd.f32 %v388, %v389
      %v391 = vrot.slane %v390, 2
      %v392 = vadd.f32 %v390, %v391
      %v393 = vrot.slane %v392, 1
      %v394 = vadd.f32 %v392, %v393
      %v395 = vmul.f32 %v394, 0.03125
      %v396 = vmul.f32 %v381, %v381
      %v397 = vsub.f32 %v395, %v396
      %v398 = vmax.f32 %v397, 0.0
      %v399 = vld [vmem:[%s320] sm:$0x1]
      %v400 = vadd.f32 %v398, 1e-05
      %v401 = vrsqrt.pop %v400
      %v402 = vmul.f32 %v399, %v401
      %v404 = vlaneseq
      %v405 = vshrl.u32 %v404, 7
      %v406 = vsub.s32 0, %v405
      %v407 = vrot.slane %v402, %v406
      %v409 = vmul.f32 %v368, %v407
      %v410 = vmul.f32 %v369, %v407
      %v411 = vmul.f32 %v370, %v407
      %v412 = vmul.f32 %v371, %v407
      %v413 = vld [vmem:[%s323] sm:$0x1]
      %v414 = vmul.f32 %v381, %v402
      %v415 = vsub.f32 %v413, %v414
      %v417 = vlaneseq
      %v418 = vshrl.u32 %v417, 7
      %v419 = vsub.s32 0, %v418
      %v420 = vrot.slane %v415, %v419
      %v422 = vadd.f32 %v409, %v420
      %v423 = vadd.f32 %v410, %v420
      %v424 = vadd.f32 %v411, %v420
      %v425 = vadd.f32 %v412, %v420
      %v426 = vmax.f32 %v422, 0.0
      %v427 = vmax.f32 %v423, 0.0
      %v428 = vmax.f32 %v424, 0.0
      %v429 = vmax.f32 %v425, 0.0
      %v430 = vpack.c.bf16 %v427, %v426
      %v431 = vpack.c.bf16 %v429, %v428
      %v432 = vld [vmem:[%s328] sm:$0xf]
      %v433 = vld [vmem:[%s328 + $0x4] sm:$0xf]
      %v434 = vld [vmem:[%s328 + $0x8] sm:$0xf]
      %v435 = vld [vmem:[%s328 + $0xc] sm:$0xf]
      %v436 = vld [vmem:[%s328 + $0x10] sm:$0xf]
      %v437 = vld [vmem:[%s328 + $0x14] sm:$0xf]
      %v438 = vld [vmem:[%s328 + $0x18] sm:$0xf]
      %v439 = vld [vmem:[%s328 + $0x1c] sm:$0xf]
      %v440 = vld [vmem:[%s328 + $0x20] sm:$0xf]
      %v441 = vld [vmem:[%s328 + $0x24] sm:$0xf]
      %v442 = vld [vmem:[%s328 + $0x28] sm:$0xf]
      %v443 = vld [vmem:[%s328 + $0x2c] sm:$0xf]
      %v444 = vld [vmem:[%s328 + $0x30] sm:$0xf]
      %v445 = vld [vmem:[%s328 + $0x34] sm:$0xf]
      %v446 = vld [vmem:[%s328 + $0x38] sm:$0xf]
      %v447 = vld [vmem:[%s328 + $0x3c] sm:$0xf]
      %v464 = vunpack.c.l.b16 %v432
      %v465 = vunpack.c.l.b16 %v433
      %v466 = vunpack.c.l.b16 %v434
      %v467 = vunpack.c.l.b16 %v435
      %v468 = vunpack.c.l.b16 %v436
      %v469 = vunpack.c.l.b16 %v437
      %v470 = vunpack.c.l.b16 %v438
      %v471 = vunpack.c.l.b16 %v439
      %v472 = vunpack.c.l.b16 %v440
      %v473 = vunpack.c.l.b16 %v441
      %v474 = vunpack.c.l.b16 %v442
      %v475 = vunpack.c.l.b16 %v443
      %v476 = vunpack.c.l.b16 %v444
      %v477 = vunpack.c.l.b16 %v445
      %v478 = vunpack.c.l.b16 %v446
      %v479 = vunpack.c.l.b16 %v447
      %v480 = vpack.c.b16 %v465, %v464
      %v481 = vpack.c.b16 %v467, %v466
      %v482 = vpack.c.b16 %v469, %v468
      %v483 = vpack.c.b16 %v471, %v470
      %v484 = vpack.c.b16 %v473, %v472
      %v485 = vpack.c.b16 %v475, %v474
      %v486 = vpack.c.b16 %v477, %v476
      %v487 = vpack.c.b16 %v479, %v478
      %496 = vmatprep.subr.bf16.mxu0 0
      %497 = vmatpush1.bf16.msra.mxu0 %v480
      %498 = vmatprep.subr.bf16.mxu0 0
      %499 = vmatpush1.bf16.msra.mxu0 %v481
      %500 = vmatprep.subr.bf16.mxu0 0
      %501 = vmatpush1.bf16.msra.mxu0 %v482
      %502 = vmatprep.subr.bf16.mxu0 0
      %503 = vmatpush1.bf16.msra.mxu0 %v483
      %504 = vmatprep.subr.bf16.mxu0 0
      %505 = vmatpush1.bf16.msra.mxu0 %v484
      %506 = vmatprep.subr.bf16.mxu0 0
      %507 = vmatpush1.bf16.msra.mxu0 %v485
      %508 = vmatprep.subr.bf16.mxu0 0
      %509 = vmatpush1.bf16.msra.mxu0 %v486
      %510 = vmatprep.subr.bf16.mxu0 0
      %511 = vmatpush1.bf16.msra.mxu0 %v487
      %512 = vmatprep.subr.bf16.mxu0 0
      %513 = vmatpush1.bf16.msra.mxu0 0
      %514 = vmatprep.subr.bf16.mxu0 0
      %515 = vmatpush1.bf16.msra.mxu0 0
      %516 = vmatprep.subr.bf16.mxu0 0
      %517 = vmatpush1.bf16.msra.mxu0 0
      %518 = vmatprep.subr.bf16.mxu0 0
      %519 = vmatpush1.bf16.msra.mxu0 0
      %520 = vmatprep.subr.bf16.mxu0 0
      %521 = vmatpush1.bf16.msra.mxu0 0
      %522 = vmatprep.subr.bf16.mxu0 0
      %523 = vmatpush1.bf16.msra.mxu0 0
      %524 = vmatprep.subr.bf16.mxu0 0
      %525 = vmatpush1.bf16.msra.mxu0 0
      %526 = vmatprep.subr.bf16.mxu0 0
      %527 = vmatpush1.bf16.msra.mxu0 0
      %528 = vmatprep.mubr.bf16.mxu0 0
      %529 = vmatmul.mubr.bf16.gmra.mrb[0].mxu0 %v430
      %v530 = vpop.f32.mrb[0].mxu0
      %v531 = vadd.f32 0.0, %v530
      %v532 = vpop.f32.mrb[0].mxu0
      %v533 = vpop.f32.mrb[0].mxu0
      %v534 = vadd.f32 0.0, %v533
      %v535 = vpop.f32.mrb[0].mxu0
      %536 = vmatprep.mubr.bf16.mxu0 0
      %537 = vmatmul.mubr.bf16.gmra.mrb[0].mxu0 %v431
      %v538 = vpop.f32.mrb[0].mxu0
      %v539 = vadd.f32 0.0, %v538
      %v540 = vpop.f32.mrb[0].mxu0
      %v541 = vpop.f32.mrb[0].mxu0
      %v542 = vadd.f32 0.0, %v541
      %v543 = vpop.f32.mrb[0].mxu0
      %544 = vdwg.mxu0
      %v545 = vadd.f32 %v531, %v534
      %v546 = vadd.f32 %v545, %v539
      %v547 = vadd.f32 %v546, %v542
      %v548 = vrot.slane %v547, 4
      %v549 = vadd.f32 %v547, %v548
      %v550 = vrot.slane %v549, 2
      %v551 = vadd.f32 %v549, %v550
      %v552 = vrot.slane %v551, 1
      %v553 = vadd.f32 %v551, %v552
      %v554 = vmul.f32 %v553, 0.03125
      %v555 = vmul.f32 %v531, %v531
      %v556 = vmul.f32 %v534, %v534
      %v557 = vmul.f32 %v539, %v539
      %v558 = vmul.f32 %v542, %v542
      %v559 = vadd.f32 %v555, %v556
      %v560 = vadd.f32 %v559, %v557
      %v561 = vadd.f32 %v560, %v558
      %v562 = vrot.slane %v561, 4
      %v563 = vadd.f32 %v561, %v562
      %v564 = vrot.slane %v563, 2
      %v565 = vadd.f32 %v563, %v564
      %v566 = vrot.slane %v565, 1
      %v567 = vadd.f32 %v565, %v566
      %v568 = vmul.f32 %v567, 0.03125
      %v569 = vmul.f32 %v554, %v554
      %v570 = vsub.f32 %v568, %v569
      %v571 = vmax.f32 %v570, 0.0
      %v572 = vld [vmem:[%s331] sm:$0x1]
      %v573 = vadd.f32 %v571, 1e-05
      %v574 = vrsqrt.pop %v573
      %v575 = vmul.f32 %v572, %v574
      %v577 = vlaneseq
      %v578 = vshrl.u32 %v577, 7
      %v579 = vsub.s32 0, %v578
      %v580 = vrot.slane %v575, %v579
      %v582 = vmul.f32 %v531, %v580
      %v583 = vmul.f32 %v534, %v580
      %v584 = vmul.f32 %v539, %v580
      %v585 = vmul.f32 %v542, %v580
      %v586 = vld [vmem:[%s334] sm:$0x1]
      %v587 = vmul.f32 %v554, %v575
      %v588 = vsub.f32 %v586, %v587
      %v590 = vlaneseq
      %v591 = vshrl.u32 %v590, 7
      %v592 = vsub.s32 0, %v591
      %v593 = vrot.slane %v588, %v592
      %v595 = vadd.f32 %v582, %v593
      %v596 = vadd.f32 %v583, %v593
      %v597 = vadd.f32 %v584, %v593
      %v598 = vadd.f32 %v585, %v593
      %v599 = vmax.f32 %v595, 0.0
      %v600 = vmax.f32 %v596, 0.0
      %v601 = vmax.f32 %v597, 0.0
      %v602 = vmax.f32 %v598, 0.0
      %603 = vst [vmem:[#allocation3 + $0x5] sm:$0xff] %v599
      %604 = vst [vmem:[#allocation3 + $0xd] sm:$0xff] %v600
      %605 = vst [vmem:[#allocation3 + $0x15] sm:$0xff] %v601
      %606 = vst [vmem:[#allocation3 + $0x1d] sm:$0xff] %v602
      %v607 = vlaneseq
      %v608 = vshrl.u32 %v607, 7
      %v609 = vadd.s32 %v608, 8
      %v610 = vadd.s32 %v608, 16
      %v611 = vadd.s32 %v608, 24
      %v612 = vand.u32 %v608, 3
      %v613 = vand.u32 %v609, 3
      %v614 = vand.u32 %v610, 3
      %v615 = vand.u32 %v611, 3
      %v616 = vand.u32 %v608, 15
      %v617 = vand.u32 %v609, 15
      %v618 = vand.u32 %v610, 15
      %v619 = vand.u32 %v611, 15
      %v620 = vshra.s32 %v616, 2
      %v621 = vshra.s32 %v617, 2
      %v622 = vshra.s32 %v618, 2
      %v623 = vshra.s32 %v619, 2
      %vm624 = vcmp.ge.s32.totalorder %v620, 1
      %vm625 = vcmp.ge.s32.totalorder %v621, 1
      %vm626 = vcmp.ge.s32.totalorder %v622, 1
      %vm627 = vcmp.ge.s32.totalorder %v623, 1
      %v628 = vsel %vm624, 1, 0
      %v629 = vsel %vm625, 1, 0
      %v630 = vsel %vm626, 1, 0
      %v631 = vsel %vm627, 1, 0
      %v632 = vcvt.s32.f32 %v628
      %v633 = vcvt.s32.f32 %v629
      %v634 = vcvt.s32.f32 %v630
      %v635 = vcvt.s32.f32 %v631
      %vm636 = vcmp.lt.s32.totalorder %v620, 3
      %vm637 = vcmp.lt.s32.totalorder %v621, 3
      %vm638 = vcmp.lt.s32.totalorder %v622, 3
      %vm639 = vcmp.lt.s32.totalorder %v623, 3
      %v640 = vsel %vm636, 1, 0
      %v641 = vsel %vm637, 1, 0
      %v642 = vsel %vm638, 1, 0
      %v643 = vsel %vm639, 1, 0
      %v644 = vcvt.s32.f32 %v640
      %v645 = vcvt.s32.f32 %v641
      %v646 = vcvt.s32.f32 %v642
      %v647 = vcvt.s32.f32 %v643
      %vm648 = vcmp.ge.s32.totalorder %v612, 1
      %vm649 = vcmp.ge.s32.totalorder %v613, 1
      %vm650 = vcmp.ge.s32.totalorder %v614, 1
      %vm651 = vcmp.ge.s32.totalorder %v615, 1
      %v652 = vsel %vm648, 1, 0
      %v653 = vsel %vm649, 1, 0
      %v654 = vsel %vm650, 1, 0
      %v655 = vsel %vm651, 1, 0
      %v656 = vcvt.s32.f32 %v652
      %v657 = vcvt.s32.f32 %v653
      %v658 = vcvt.s32.f32 %v654
      %v659 = vcvt.s32.f32 %v655
      %vm660 = vcmp.lt.s32.totalorder %v612, 3
      %vm661 = vcmp.lt.s32.totalorder %v613, 3
      %vm662 = vcmp.lt.s32.totalorder %v614, 3
      %vm663 = vcmp.lt.s32.totalorder %v615, 3
      %v664 = vsel %vm660, 1, 0
      %v665 = vsel %vm661, 1, 0
      %v666 = vsel %vm662, 1, 0
      %v667 = vsel %vm663, 1, 0
      %v668 = vcvt.s32.f32 %v664
      %v669 = vcvt.s32.f32 %v665
      %v670 = vcvt.s32.f32 %v666
      %v671 = vcvt.s32.f32 %v667
      %v672 = vlaneseq
      %v673 = vand.u32 %v672, 127
      %v674 = vld [vmem:[#allocation3] sm:$0xff]
      %v675 = vld [vmem:[#allocation3 + $0x8] sm:$0xff]
      %v676 = vld [vmem:[#allocation3 + $0x10] sm:$0xff]
      %v677 = vld [vmem:[#allocation3 + $0x18] sm:$0xff]
      %vm678 = vcmp.ge.s32.totalorder %v673, 0
      %vm679 = vcmp.lt.s32.totalorder %v673, 32
      %vm680 = vmand %vm678, %vm679
      %v681 = vsel %vm680, 1, 0
      %v682 = vcvt.s32.f32 %v681
      %v683 = vmul.f32 %v632, %v656
      %v684 = vmul.f32 %v633, %v657
      %v685 = vmul.f32 %v634, %v658
      %v686 = vmul.f32 %v635, %v659
      %v687 = vmul.f32 %v683, %v682
      %v688 = vmul.f32 %v684, %v682
      %v689 = vmul.f32 %v685, %v682
      %v690 = vmul.f32 %v686, %v682
      %v691 = vmul.f32 %v674, %v687
      %v692 = vmul.f32 %v675, %v688
      %v693 = vmul.f32 %v676, %v689
      %v694 = vmul.f32 %v677, %v690
      %v695 = vld [vmem:[#allocation3 + $0x1] sm:$0xff]
      %v696 = vld [vmem:[#allocation3 + $0x9] sm:$0xff]
      %v697 = vld [vmem:[#allocation3 + $0x11] sm:$0xff]
      %v698 = vld [vmem:[#allocation3 + $0x19] sm:$0xff]
      %vm699 = vcmp.ge.s32.totalorder %v673, 32
      %vm700 = vcmp.lt.s32.totalorder %v673, 64
      %vm701 = vmand %vm699, %vm700
      %v702 = vsel %vm701, 1, 0
      %v703 = vcvt.s32.f32 %v702
      %v704 = vmul.f32 %v632, %v703
      %v705 = vmul.f32 %v633, %v703
      %v706 = vmul.f32 %v634, %v703
      %v707 = vmul.f32 %v635, %v703
      %v708 = vmul.f32 %v695, %v704
      %v709 = vmul.f32 %v696, %v705
      %v710 = vmul.f32 %v697, %v706
      %v711 = vmul.f32 %v698, %v707
      %v712 = vadd.f32 %v691, %v708
      %v713 = vadd.f32 %v692, %v709
      %v714 = vadd.f32 %v693, %v710
      %v715 = vadd.f32 %v694, %v711
      %v716 = vld [vmem:[#allocation3 + $0x2] sm:$0xff]
      %v717 = vld [vmem:[#allocation3 + $0xa] sm:$0xff]
      %v718 = vld [vmem:[#allocation3 + $0x12] sm:$0xff]
      %v719 = vld [vmem:[#allocation3 + $0x1a] sm:$0xff]
      %vm720 = vcmp.ge.s32.totalorder %v673, 64
      %vm721 = vcmp.lt.s32.totalorder %v673, 96
      %vm722 = vmand %vm720, %vm721
      %v723 = vsel %vm722, 1, 0
      %v724 = vcvt.s32.f32 %v723
      %v725 = vmul.f32 %v632, %v668
      %v726 = vmul.f32 %v633, %v669
      %v727 = vmul.f32 %v634, %v670
      %v728 = vmul.f32 %v635, %v671
      %v729 = vmul.f32 %v725, %v724
      %v730 = vmul.f32 %v726, %v724
      %v731 = vmul.f32 %v727, %v724
      %v732 = vmul.f32 %v728, %v724
      %v733 = vmul.f32 %v716, %v729
      %v734 = vmul.f32 %v717, %v730
      %v735 = vmul.f32 %v718, %v731
      %v736 = vmul.f32 %v719, %v732
      %v737 = vadd.f32 %v712, %v733
      %v738 = vadd.f32 %v713, %v734
      %v739 = vadd.f32 %v714, %v735
      %v740 = vadd.f32 %v715, %v736
      %v741 = vld [vmem:[#allocation3 + $0x4] sm:$0xff]
      %v742 = vld [vmem:[#allocation3 + $0xc] sm:$0xff]
      %v743 = vld [vmem:[#allocation3 + $0x14] sm:$0xff]
      %v744 = vld [vmem:[#allocation3 + $0x1c] sm:$0xff]
      %vm745 = vcmp.ge.s32.totalorder %v673, 96
      %vm746 = vcmp.lt.s32.totalorder %v673, 128
      %vm747 = vmand %vm745, %vm746
      %v748 = vsel %vm747, 1, 0
      %v749 = vcvt.s32.f32 %v748
      %v750 = vmul.f32 %v656, %v749
      %v751 = vmul.f32 %v657, %v749
      %v752 = vmul.f32 %v658, %v749
      %v753 = vmul.f32 %v659, %v749
      %v754 = vmul.f32 %v741, %v750
      %v755 = vmul.f32 %v742, %v751
      %v756 = vmul.f32 %v743, %v752
      %v757 = vmul.f32 %v744, %v753
      %v758 = vadd.f32 %v737, %v754
      %v759 = vadd.f32 %v738, %v755
      %v760 = vadd.f32 %v739, %v756
      %v761 = vadd.f32 %v740, %v757
      %v762 = vpack.c.bf16 %v759, %v758
      %v763 = vpack.c.bf16 %v761, %v760
      %v764 = vld [vmem:[#allocation3 + $0x5] sm:$0xff]
      %v765 = vld [vmem:[#allocation3 + $0xd] sm:$0xff]
      %v766 = vld [vmem:[#allocation3 + $0x15] sm:$0xff]
      %v767 = vld [vmem:[#allocation3 + $0x1d] sm:$0xff]
      %v768 = vmul.f32 %v764, %v682
      %v769 = vmul.f32 %v765, %v682
      %v770 = vmul.f32 %v766, %v682
      %v771 = vmul.f32 %v767, %v682
      %v772 = vld [vmem:[#allocation3 + $0x6] sm:$0xff]
      %v773 = vld [vmem:[#allocation3 + $0xe] sm:$0xff]
      %v774 = vld [vmem:[#allocation3 + $0x16] sm:$0xff]
      %v775 = vld [vmem:[#allocation3 + $0x1e] sm:$0xff]
      %v776 = vmul.f32 %v668, %v703
      %v777 = vmul.f32 %v669, %v703
      %v778 = vmul.f32 %v670, %v703
      %v779 = vmul.f32 %v671, %v703
      %v780 = vmul.f32 %v772, %v776
      %v781 = vmul.f32 %v773, %v777
      %v782 = vmul.f32 %v774, %v778
      %v783 = vmul.f32 %v775, %v779
      %v784 = vadd.f32 %v768, %v780
      %v785 = vadd.f32 %v769, %v781
      %v786 = vadd.f32 %v770, %v782
      %v787 = vadd.f32 %v771, %v783
      %v788 = vld [vmem:[#allocation3 + $0x20] sm:$0xff]
      %v789 = vmul.f32 %v644, %v656
      %v790 = vmul.f32 %v645, %v657
      %v791 = vmul.f32 %v646, %v658
      %v792 = vmul.f32 %v647, %v659
      %v793 = vmul.f32 %v789, %v724
      %v794 = vmul.f32 %v790, %v724
      %v795 = vmul.f32 %v791, %v724
      %v796 = vmul.f32 %v792, %v724
      %v797 = vmul.f32 %v675, %v793
      %v798 = vmul.f32 %v676, %v794
      %v799 = vmul.f32 %v677, %v795
      %v800 = vmul.f32 %v788, %v796
      %v801 = vadd.f32 %v784, %v797
      %v802 = vadd.f32 %v785, %v798
      %v803 = vadd.f32 %v786, %v799
      %v804 = vadd.f32 %v787, %v800
      %v805 = vld [vmem:[#allocation3 + $0x21] sm:$0xff]
      %v806 = vmul.f32 %v644, %v749
      %v807 = vmul.f32 %v645, %v749
      %v808 = vmul.f32 %v646, %v749
      %v809 = vmul.f32 %v647, %v749
      %v810 = vmul.f32 %v696, %v806
      %v811 = vmul.f32 %v697, %v807
      %v812 = vmul.f32 %v698, %v808
      %v813 = vmul.f32 %v805, %v809
      %v814 = vadd.f32 %v801, %v810
      %v815 = vadd.f32 %v802, %v811
      %v816 = vadd.f32 %v803, %v812
      %v817 = vadd.f32 %v804, %v813
      %v818 = vpack.c.bf16 %v815, %v814
      %v819 = vpack.c.bf16 %v817, %v816
      %v820 = vld [vmem:[#allocation3 + $0xa] sm:$0xff]
      %v821 = vld [vmem:[#allocation3 + $0x12] sm:$0xff]
      %v822 = vld [vmem:[#allocation3 + $0x1a] sm:$0xff]
      %v823 = vld [vmem:[#allocation3 + $0x22] sm:$0xff]
      %v824 = vmul.f32 %v644, %v668
      %v825 = vmul.f32 %v645, %v669
      %v826 = vmul.f32 %v646, %v670
      %v827 = vmul.f32 %v647, %v671
      %v828 = vmul.f32 %v824, %v682
      %v829 = vmul.f32 %v825, %v682
      %v830 = vmul.f32 %v826, %v682
      %v831 = vmul.f32 %v827, %v682
      %v832 = vmul.f32 %v820, %v828
      %v833 = vmul.f32 %v821, %v829
      %v834 = vmul.f32 %v822, %v830
      %v835 = vmul.f32 %v823, %v831
      %v836 = vpack.c.bf16 %v833, %v832
      %v837 = vpack.c.bf16 %v835, %v834
      %v838 = vld [vmem:[%s339] sm:$0xf]
      %v839 = vld [vmem:[%s339 + $0x4] sm:$0xf]
      %v840 = vld [vmem:[%s339 + $0x8] sm:$0xf]
      %v841 = vld [vmem:[%s339 + $0xc] sm:$0xf]
      %v842 = vld [vmem:[%s339 + $0x10] sm:$0xf]
      %v843 = vld [vmem:[%s339 + $0x14] sm:$0xf]
      %v844 = vld [vmem:[%s339 + $0x18] sm:$0xf]
      %v845 = vld [vmem:[%s339 + $0x1c] sm:$0xf]
      %v846 = vld [vmem:[%s339 + $0x20] sm:$0xf]
      %v847 = vld [vmem:[%s339 + $0x24] sm:$0xf]
      %v848 = vld [vmem:[%s339 + $0x28] sm:$0xf]
      %v849 = vld [vmem:[%s339 + $0x2c] sm:$0xf]
      %v850 = vld [vmem:[%s339 + $0x30] sm:$0xf]
      %v851 = vld [vmem:[%s339 + $0x34] sm:$0xf]
      %v852 = vld [vmem:[%s339 + $0x38] sm:$0xf]
      %v853 = vld [vmem:[%s339 + $0x3c] sm:$0xf]
      %v854 = vld [vmem:[%s339 + $0x40] sm:$0xf]
      %v855 = vld [vmem:[%s339 + $0x44] sm:$0xf]
      %v856 = vld [vmem:[%s339 + $0x48] sm:$0xf]
      %v857 = vld [vmem:[%s339 + $0x4c] sm:$0xf]
      %v858 = vld [vmem:[%s339 + $0x50] sm:$0xf]
      %v859 = vld [vmem:[%s339 + $0x54] sm:$0xf]
      %v860 = vld [vmem:[%s339 + $0x58] sm:$0xf]
      %v861 = vld [vmem:[%s339 + $0x5c] sm:$0xf]
      %v862 = vld [vmem:[%s339 + $0x60] sm:$0xf]
      %v863 = vld [vmem:[%s339 + $0x64] sm:$0xf]
      %v864 = vld [vmem:[%s339 + $0x68] sm:$0xf]
      %v865 = vld [vmem:[%s339 + $0x6c] sm:$0xf]
      %v866 = vld [vmem:[%s339 + $0x70] sm:$0xf]
      %v867 = vld [vmem:[%s339 + $0x74] sm:$0xf]
      %v868 = vld [vmem:[%s339 + $0x78] sm:$0xf]
      %v869 = vld [vmem:[%s339 + $0x7c] sm:$0xf]
      %v870 = vld [vmem:[%s339 + $0x80] sm:$0xf]
      %v871 = vld [vmem:[%s339 + $0x84] sm:$0xf]
      %v872 = vld [vmem:[%s339 + $0x88] sm:$0xf]
      %v873 = vld [vmem:[%s339 + $0x8c] sm:$0xf]
      %v874 = vld [vmem:[%s339 + $0x90] sm:$0xf]
      %v875 = vld [vmem:[%s339 + $0x94] sm:$0xf]
      %v876 = vld [vmem:[%s339 + $0x98] sm:$0xf]
      %v877 = vld [vmem:[%s339 + $0x9c] sm:$0xf]
      %v878 = vld [vmem:[%s339 + $0xa0] sm:$0xf]
      %v879 = vld [vmem:[%s339 + $0xa4] sm:$0xf]
      %v880 = vld [vmem:[%s339 + $0xa8] sm:$0xf]
      %v881 = vld [vmem:[%s339 + $0xac] sm:$0xf]
      %v882 = vld [vmem:[%s339 + $0xb0] sm:$0xf]
      %v883 = vld [vmem:[%s339 + $0xb4] sm:$0xf]
      %v884 = vld [vmem:[%s339 + $0xb8] sm:$0xf]
      %v885 = vld [vmem:[%s339 + $0xbc] sm:$0xf]
      %v934 = vunpack.c.l.b16 %v838
      %v935 = vunpack.c.l.b16 %v839
      %v936 = vunpack.c.l.b16 %v840
      %v937 = vunpack.c.l.b16 %v841
      %v938 = vunpack.c.l.b16 %v842
      %v939 = vunpack.c.l.b16 %v843
      %v940 = vunpack.c.l.b16 %v844
      %v941 = vunpack.c.l.b16 %v845
      %v942 = vunpack.c.l.b16 %v846
      %v943 = vunpack.c.l.b16 %v847
      %v944 = vunpack.c.l.b16 %v848
      %v945 = vunpack.c.l.b16 %v849
      %v946 = vunpack.c.l.b16 %v850
      %v947 = vunpack.c.l.b16 %v851
      %v948 = vunpack.c.l.b16 %v852
      %v949 = vunpack.c.l.b16 %v853
      %v950 = vunpack.c.l.b16 %v854
      %v951 = vunpack.c.l.b16 %v855
      %v952 = vunpack.c.l.b16 %v856
      %v953 = vunpack.c.l.b16 %v857
      %v954 = vunpack.c.l.b16 %v858
      %v955 = vunpack.c.l.b16 %v859
      %v956 = vunpack.c.l.b16 %v860
      %v957 = vunpack.c.l.b16 %v861
      %v958 = vunpack.c.l.b16 %v862
      %v959 = vunpack.c.l.b16 %v863
      %v960 = vunpack.c.l.b16 %v864
      %v961 = vunpack.c.l.b16 %v865
      %v962 = vunpack.c.l.b16 %v866
      %v963 = vunpack.c.l.b16 %v867
      %v964 = vunpack.c.l.b16 %v868
      %v965 = vunpack.c.l.b16 %v869
      %v966 = vunpack.c.l.b16 %v870
      %v967 = vunpack.c.l.b16 %v871
      %v968 = vunpack.c.l.b16 %v872
      %v969 = vunpack.c.l.b16 %v873
      %v970 = vunpack.c.l.b16 %v874
      %v971 = vunpack.c.l.b16 %v875
      %v972 = vunpack.c.l.b16 %v876
      %v973 = vunpack.c.l.b16 %v877
      %v974 = vunpack.c.l.b16 %v878
      %v975 = vunpack.c.l.b16 %v879
      %v976 = vunpack.c.l.b16 %v880
      %v977 = vunpack.c.l.b16 %v881
      %v978 = vunpack.c.l.b16 %v882
      %v979 = vunpack.c.l.b16 %v883
      %v980 = vunpack.c.l.b16 %v884
      %v981 = vunpack.c.l.b16 %v885
      %v982 = vpack.c.b16 %v935, %v934
      %v983 = vpack.c.b16 %v937, %v936
      %v984 = vpack.c.b16 %v939, %v938
      %v985 = vpack.c.b16 %v941, %v940
      %v986 = vpack.c.b16 %v943, %v942
      %v987 = vpack.c.b16 %v945, %v944
      %v988 = vpack.c.b16 %v947, %v946
      %v989 = vpack.c.b16 %v949, %v948
      %v990 = vpack.c.b16 %v951, %v950
      %v991 = vpack.c.b16 %v953, %v952
      %v992 = vpack.c.b16 %v955, %v954
      %v993 = vpack.c.b16 %v957, %v956
      %v994 = vpack.c.b16 %v959, %v958
      %v995 = vpack.c.b16 %v961, %v960
      %v996 = vpack.c.b16 %v963, %v962
      %v997 = vpack.c.b16 %v965, %v964
      %v998 = vpack.c.b16 %v967, %v966
      %v999 = vpack.c.b16 %v969, %v968
      %v1000 = vpack.c.b16 %v971, %v970
      %v1001 = vpack.c.b16 %v973, %v972
      %v1002 = vpack.c.b16 %v975, %v974
      %v1003 = vpack.c.b16 %v977, %v976
      %v1004 = vpack.c.b16 %v979, %v978
      %v1005 = vpack.c.b16 %v981, %v980
      %1030 = vmatprep.subr.bf16.mxu0 0
      %1031 = vmatpush1.bf16.msra.mxu0 %v982
      %1032 = vmatprep.subr.bf16.mxu0 0
      %1033 = vmatpush1.bf16.msra.mxu0 %v983
      %1034 = vmatprep.subr.bf16.mxu0 0
      %1035 = vmatpush1.bf16.msra.mxu0 %v984
      %1036 = vmatprep.subr.bf16.mxu0 0
      %1037 = vmatpush1.bf16.msra.mxu0 %v985
      %1038 = vmatprep.subr.bf16.mxu0 0
      %1039 = vmatpush1.bf16.msra.mxu0 %v986
      %1040 = vmatprep.subr.bf16.mxu0 0
      %1041 = vmatpush1.bf16.msra.mxu0 %v987
      %1042 = vmatprep.subr.bf16.mxu0 0
      %1043 = vmatpush1.bf16.msra.mxu0 %v988
      %1044 = vmatprep.subr.bf16.mxu0 0
      %1045 = vmatpush1.bf16.msra.mxu0 %v989
      %1046 = vmatprep.subr.bf16.mxu0 0
      %1047 = vmatpush1.bf16.msra.mxu0 %v990
      %1048 = vmatprep.subr.bf16.mxu0 0
      %1049 = vmatpush1.bf16.msra.mxu0 %v991
      %1050 = vmatprep.subr.bf16.mxu0 0
      %1051 = vmatpush1.bf16.msra.mxu0 %v992
      %1052 = vmatprep.subr.bf16.mxu0 0
      %1053 = vmatpush1.bf16.msra.mxu0 %v993
      %1054 = vmatprep.subr.bf16.mxu0 0
      %1055 = vmatpush1.bf16.msra.mxu0 %v994
      %1056 = vmatprep.subr.bf16.mxu0 0
      %1057 = vmatpush1.bf16.msra.mxu0 %v995
      %1058 = vmatprep.subr.bf16.mxu0 0
      %1059 = vmatpush1.bf16.msra.mxu0 %v996
      %1060 = vmatprep.subr.bf16.mxu0 0
      %1061 = vmatpush1.bf16.msra.mxu0 %v997
      %1062 = vmatprep.mubr.bf16.mxu0 %v818
      %1063 = vmatmul.mubr.bf16.gmra.mrb[0].mxu0 %v762
      %v1064 = vpop.f32.mrb[0].mxu0
      %v1065 = vadd.f32 0.0, %v1064
      %v1066 = vpop.f32.mrb[0].mxu0
      %v1067 = vpop.f32.mrb[0].mxu0
      %v1068 = vadd.f32 0.0, %v1067
      %v1069 = vpop.f32.mrb[0].mxu0
      %1070 = vmatprep.mubr.bf16.mxu0 %v819
      %1071 = vmatmul.mubr.bf16.gmra.mrb[0].mxu0 %v763
      %v1072 = vpop.f32.mrb[0].mxu0
      %v1073 = vadd.f32 0.0, %v1072
      %v1074 = vpop.f32.mrb[0].mxu0
      %v1075 = vpop.f32.mrb[0].mxu0
      %v1076 = vadd.f32 0.0, %v1075
      %v1077 = vpop.f32.mrb[0].mxu0
      %1078 = vdwg.mxu0
      %1079 = vmatprep.subr.bf16.mxu0 0
      %1080 = vmatpush1.bf16.msra.mxu0 %v998
      %1081 = vmatprep.subr.bf16.mxu0 0
      %1082 = vmatpush1.bf16.msra.mxu0 %v999
      %1083 = vmatprep.subr.bf16.mxu0 0
      %1084 = vmatpush1.bf16.msra.mxu0 %v1000
      %1085 = vmatprep.subr.bf16.mxu0 0
      %1086 = vmatpush1.bf16.msra.mxu0 %v1001
      %1087 = vmatprep.subr.bf16.mxu0 0
      %1088 = vmatpush1.bf16.msra.mxu0 %v1002
      %1089 = vmatprep.subr.bf16.mxu0 0
      %1090 = vmatpush1.bf16.msra.mxu0 %v1003
      %1091 = vmatprep.subr.bf16.mxu0 0
      %1092 = vmatpush1.bf16.msra.mxu0 %v1004
      %1093 = vmatprep.subr.bf16.mxu0 0
      %1094 = vmatpush1.bf16.msra.mxu0 %v1005
      %1095 = vmatprep.subr.bf16.mxu0 0
      %1096 = vmatpush1.bf16.msra.mxu0 0
      %1097 = vmatprep.subr.bf16.mxu0 0
      %1098 = vmatpush1.bf16.msra.mxu0 0
      %1099 = vmatprep.subr.bf16.mxu0 0
      %1100 = vmatpush1.bf16.msra.mxu0 0
      %1101 = vmatprep.subr.bf16.mxu0 0
      %1102 = vmatpush1.bf16.msra.mxu0 0
      %1103 = vmatprep.subr.bf16.mxu0 0
      %1104 = vmatpush1.bf16.msra.mxu0 0
      %1105 = vmatprep.subr.bf16.mxu0 0
      %1106 = vmatpush1.bf16.msra.mxu0 0
      %1107 = vmatprep.subr.bf16.mxu0 0
      %1108 = vmatpush1.bf16.msra.mxu0 0
      %1109 = vmatprep.subr.bf16.mxu0 0
      %1110 = vmatpush1.bf16.msra.mxu0 0
      %1111 = vmatprep.mubr.bf16.mxu0 0
      %1112 = vmatmul.mubr.bf16.gmra.mrb[0].mxu0 %v836
      %v1113 = vpop.f32.mrb[0].mxu0
      %v1114 = vadd.f32 %v1065, %v1113
      %v1115 = vpop.f32.mrb[0].mxu0
      %v1116 = vpop.f32.mrb[0].mxu0
      %v1117 = vadd.f32 %v1068, %v1116
      %v1118 = vpop.f32.mrb[0].mxu0
      %1119 = vmatprep.mubr.bf16.mxu0 0
      %1120 = vmatmul.mubr.bf16.gmra.mrb[0].mxu0 %v837
      %v1121 = vpop.f32.mrb[0].mxu0
      %v1122 = vadd.f32 %v1073, %v1121
      %v1123 = vpop.f32.mrb[0].mxu0
      %v1124 = vpop.f32.mrb[0].mxu0
      %v1125 = vadd.f32 %v1076, %v1124
      %v1126 = vpop.f32.mrb[0].mxu0
      %1127 = vdwg.mxu0
      %v1128 = vadd.f32 %v368, %v1114
      %v1129 = vadd.f32 %v369, %v1117
      %v1130 = vadd.f32 %v370, %v1122
      %v1131 = vadd.f32 %v371, %v1125
      %1132 = vst [vmem:[#allocation2] sm:$0xff] %v1128
      %1133 = vst [vmem:[#allocation2 + $0x8] sm:$0xff] %v1129
      %1134 = vst [vmem:[#allocation2 + $0x10] sm:$0xff] %v1130
      %1135 = vst [vmem:[#allocation2 + $0x18] sm:$0xff] %v1131
      %p1136 = scmp.eq.s32.totalorder %s18, 1
      // Predicated region
      $region53: #{fconv_densenet_forward.9} parent=47 // pred_check
        %p1137 = pneg %p1136
      $region54: #{fconv_densenet_forward.9} parent=47 // pred_check_branch
        %1139 = sbr.rel (%p1137) target = $region56
      $region55: #{fconv_densenet_forward.9} parent=47 // pred_region
        %1140 = vst [vmem:[%s7] sm:$0xff] %v1128
        %1141 = vst [vmem:[%s7 + $0x8] sm:$0xff] %v1129
        %1142 = vst [vmem:[%s7 + $0x10] sm:$0xff] %v1130
        %1143 = vst [vmem:[%s7 + $0x18] sm:$0xff] %v1131
      $region56: #{fconv_densenet_forward.9} parent=47 // pred_fallthru
        _
      // Predicated region
      $region57: #{fconv_densenet_forward.9} parent=47 // pred_check
        %p1144 = pneg %p208
      $region58: #{fconv_densenet_forward.9} parent=47 // pred_check_branch
        %1146 = sbr.rel (%p1144) target = $region60
      $region59: #{fconv_densenet_forward.9} parent=47 // pred_region
        _
      $region60: #{fconv_densenet_forward.9} parent=47 // pred_fallthru
        _
      // Predicated region
      $region61: #{fconv_densenet_forward.9} parent=47 // pred_check
        %p1147 = pneg %p208
      $region62: #{fconv_densenet_forward.9} parent=47 // pred_check_branch
        %1149 = sbr.rel (%p1147) target = $region64
      $region63: #{fconv_densenet_forward.9} parent=47 // pred_region
        _
      $region64: #{fconv_densenet_forward.9} parent=47 // pred_fallthru
        _
    $region48: #{fconv_densenet_forward.9} parent=5 // pred_fallthru
      _
    %p1150 = scmp.le.s32.totalorder 2, %s13
    // Predicated region
    $region65: #{fconv_densenet_forward.9} parent=5 // pred_check
      %p1151 = pneg %p1150
    $region66: #{fconv_densenet_forward.9} parent=5 // pred_check_branch
      %1153 = sbr.rel (%p1151) target = $region68
    $region67: #{fconv_densenet_forward.9} parent=5 // pred_region
      %s1154 = ssub.s32 %s13, 2
    $region68: #{fconv_densenet_forward.9} parent=5 // pred_fallthru
      _
  $region6: #{fconv_densenet_forward.9} parent=0 // loop_footer
    %s17 = sadd.s32 1, %s13
  $region7: #{fconv_densenet_forward.9} parent=0 // loop_footer_branch
    %12 = sbr.rel target = $region3
  $region8: #{fconv_densenet_forward.9} parent=0 // loop_exit
    _

</llo_original>
